<compile_context>
chip_gen: v7x
topology: tpu7x:2x2x1
jax: 0.10.0
libtpu: 0.0.40
codegen_flags: <defaults>
</compile_context>

<pallas_src>
from functools import partial

import jax
import jax.numpy as jnp
from jax.experimental import pallas as pl
from jax.experimental.pallas import tpu as pltpu

_BN_EPS = 1e-5


# ---------------------------------------------------------------------------
# Pallas kernels
# ---------------------------------------------------------------------------
def _matmul_bias_act_kernel(x_ref, w_ref, b_ref, o_ref, *, act):
    """Fused (patches @ W + b) -> activation. MXU matmul, f32 accumulate."""
    acc = jnp.dot(x_ref[...], w_ref[...], preferred_element_type=jnp.float32)
    acc = acc + b_ref[...]
    if act == "relu":
        acc = jnp.maximum(acc, 0.0)
    elif act == "tanh":
        acc = jnp.tanh(acc)
    o_ref[...] = acc.astype(o_ref.dtype)


def matmul_bias_act(x, w, b, *, act="none", tile_m=256):
    """x: (M, K) @ w: (K, N) + b: (N,) -> act(.): (M, N)."""
    m, k = x.shape
    n = w.shape[1]
    # Row tile: multiple of 8 sublanes, as large as tile_m; remainder rows are
    # zero-padded (sliced off below) instead of asserting divisibility.
    tile = min(tile_m, ((m + 7) // 8) * 8)
    m_pad = ((m + tile - 1) // tile) * tile
    if m_pad != m:
        x = jnp.pad(x, ((0, m_pad - m), (0, 0)))
    out = pl.pallas_call(
        partial(_matmul_bias_act_kernel, act=act),
        out_shape=jax.ShapeDtypeStruct((m_pad, n), x.dtype),
        grid=(m_pad // tile,),
        in_specs=[
            pl.BlockSpec((tile, k), lambda i: (i, 0)),   # patches row-tile
            pl.BlockSpec((k, n), lambda i: (0, 0)),      # folded conv weight (resident)
            pl.BlockSpec((1, n), lambda i: (0, 0)),      # folded bias
        ],
        out_specs=pl.BlockSpec((tile, n), lambda i: (i, 0)),
        compiler_params=pltpu.CompilerParams(
            dimension_semantics=("parallel",),
            vmem_limit_bytes=32 * 1024 * 1024,
        ),
    )(x, w, b.reshape(1, n))
    return out[:m]


def _length_op_kernel(m_ref, x_ref, o_ref):
    """Apply a (L_out, L_in) operator along the length axis of one batch row."""
    o_ref[0] = jnp.dot(m_ref[...], x_ref[0],
                       preferred_element_type=jnp.float32).astype(o_ref.dtype)


def apply_length_operator(op, x):
    """op: (L_out, L_in); x: (B, L_in, C) -> (B, L_out, C) with out[b] = op @ x[b]."""
    bsz, l_in, ch = x.shape
    l_out = op.shape[0]
    return pl.pallas_call(
        _length_op_kernel,
        out_shape=jax.ShapeDtypeStruct((bsz, l_out, ch), x.dtype),
        grid=(bsz,),
        in_specs=[
            pl.BlockSpec((l_out, l_in), lambda i: (0, 0)),
            pl.BlockSpec((1, l_in, ch), lambda i: (i, 0, 0)),
        ],
        out_specs=pl.BlockSpec((1, l_out, ch), lambda i: (i, 0, 0)),
        compiler_params=pltpu.CompilerParams(
            dimension_semantics=("parallel",),
            vmem_limit_bytes=32 * 1024 * 1024,
        ),
    )(op, x)


# ---------------------------------------------------------------------------
# Host-side layout helpers (0 FLOPs): im2col, operator matrices, param folding
# ---------------------------------------------------------------------------
def _im2col(x_nlc, kernel_size, stride, padding):
    bsz, length, chans = x_nlc.shape
    l_out = (length + 2 * padding - (kernel_size - 1) - 1) // stride + 1
    x_pad = jnp.pad(x_nlc, ((0, 0), (padding, padding), (0, 0)))
    idx = (jnp.arange(l_out) * stride)[:, None] + jnp.arange(kernel_size)[None, :]
    patches = x_pad[:, idx, :]                       # (B, L_out, K, C)
    return patches.reshape(bsz * l_out, kernel_size * chans), l_out


def _avgpool_matrix(l_in, p):
    """nn.AvgPool1d(kernel_size=p, stride=p) as a (L_out, L_in) operator."""
    l_out = l_in // p
    rows = jnp.repeat(jnp.arange(l_out), p)
    cols = jnp.arange(l_out * p)
    return jnp.zeros((l_out, l_in), jnp.float32).at[rows, cols].set(1.0 / p)


def _upsample_matrix(l_in):
    """nn.Upsample(scale_factor=2, mode='linear', align_corners=True) as a matrix."""
    l_out = 2 * l_in
    if l_in == 1:
        return jnp.ones((l_out, 1), jnp.float32)
    pos = jnp.arange(l_out) * (l_in - 1) / (l_out - 1)
    i0 = jnp.floor(pos).astype(jnp.int32)
    i1 = jnp.minimum(i0 + 1, l_in - 1)
    w1 = (pos - i0).astype(jnp.float32)
    rows = jnp.arange(l_out)
    m = jnp.zeros((l_out, l_in), jnp.float32)
    m = m.at[rows, i0].add(1.0 - w1)
    m = m.at[rows, i1].add(w1)
    return m


def fold_params(raw):
    """Fold eval-mode BatchNorm into each conv's weight/bias and flatten the conv
    weight (C_out, C_in, K) -> (K*C_in, C_out) to match the im2col patch layout."""
    folded = {}
    for name, vals in raw.items():
        if name == "outcov":
            w, b = vals
            w_flat = jnp.transpose(w, (2, 1, 0)).reshape(-1, w.shape[0])
            folded[name] = (w_flat, b)
        else:
            w, b, gamma, beta, mean, var = vals
            scale = gamma / jnp.sqrt(var + _BN_EPS)
            w_flat = jnp.transpose(w, (2, 1, 0)).reshape(-1, w.shape[0])
            folded[name] = (w_flat * scale[None, :], (b - mean) * scale + beta)
    return folded


# ---------------------------------------------------------------------------
# Forward pass (backbone=True): returns (None, tanh(outcov(...)).squeeze())
# ---------------------------------------------------------------------------
def unet1d_forward(x_blc, params, *, kernel_size=5):
    """x_blc: (B, L, input_dim) — same input the PyTorch module receives before its
    permute(0, 2, 1); internally we keep channels-last instead of NCW."""
    bsz, length, _ = x_blc.shape

    def conbr(x, name, stride):
        w, b = params[name]
        patches, l_out = _im2col(x, kernel_size, stride, padding=2)
        y = matmul_bias_act(patches, w, b, act="relu")
        return y.reshape(x.shape[0], l_out, w.shape[1])

    pool_x1 = apply_length_operator(_avgpool_matrix(length, 2), x_blc)
    pool_x2 = apply_length_operator(_avgpool_matrix(length, 4), x_blc)

    out_0 = conbr(x_blc, "layer1", 1)
    out_1 = conbr(out_0, "layer2", 2)
    x1 = jnp.concatenate([out_1, pool_x1], axis=-1)
    out_2 = conbr(x1, "layer3", 2)
    x2 = jnp.concatenate([out_2, pool_x2], axis=-1)
    x3 = conbr(x2, "layer4", 2)

    up = apply_length_operator(_upsample_matrix(x3.shape[1]), x3)
    up = jnp.concatenate([up, out_2], axis=-1)
    up = conbr(up, "cbr_up1", 1)
    up = apply_length_operator(_upsample_matrix(up.shape[1]), up)
    up = jnp.concatenate([up, out_1], axis=-1)
    up = conbr(up, "cbr_up2", 1)
    up = apply_length_operator(_upsample_matrix(up.shape[1]), up)
    up = jnp.concatenate([up, out_0], axis=-1)
    up = conbr(up, "cbr_up3", 1)

    w_out, b_out = params["outcov"]
    patches, l_out = _im2col(up, kernel_size, 1, padding=2)
    out = matmul_bias_act(patches, w_out, b_out, act="tanh")   # (B*L, 1)
    out1 = out.reshape(bsz, l_out)                             # tanh(...).squeeze()
    # TODO(synk): BatchNorm1d is implemented in eval mode (running stats folded into
    # the conv); training-mode batch-statistic BN is not implemented.
    return None, out1


# ---------------------------------------------------------------------------
# Deterministic PyTorch-style parameters
# ---------------------------------------------------------------------------
def init_params(key, input_dim, layer_n, kernel_size):
    conv_specs = {
        "layer1":  (input_dim,               layer_n),
        "layer2":  (layer_n,                 layer_n * 2),
        "layer3":  (layer_n * 2 + input_dim, layer_n * 3),
        "layer4":  (layer_n * 3 + input_dim, layer_n * 4),
        "cbr_up1": (layer_n * 7,             layer_n * 3),
        "cbr_up2": (layer_n * 5,             layer_n * 2),
        "cbr_up3": (layer_n * 3,             layer_n),
    }
    raw = {}
    keys = jax.random.split(key, len(conv_specs) + 1)
    for sub, (name, (cin, cout)) in zip(keys[:-1], conv_specs.items()):
        kw, kb, kg, kbt, km, kv = jax.random.split(sub, 6)
        bound = 1.0 / (cin * kernel_size) ** 0.5
        raw[name] = (
            jax.random.uniform(kw, (cout, cin, kernel_size), jnp.float32, -bound, bound),
            jax.random.uniform(kb, (cout,), jnp.float32, -bound, bound),
            jax.random.uniform(kg, (cout,), jnp.float32, 0.5, 1.5),    # gamma
            jax.random.uniform(kbt, (cout,), jnp.float32, -0.2, 0.2),  # beta
            jax.random.uniform(km, (cout,), jnp.float32, -0.2, 0.2),   # running_mean
            jax.random.uniform(kv, (cout,), jnp.float32, 0.5, 1.5),    # running_var
        )
    kw, kb = jax.random.split(keys[-1], 2)
    bound = 1.0 / (layer_n * kernel_size) ** 0.5
    raw["outcov"] = (
        jax.random.uniform(kw, (1, layer_n, kernel_size), jnp.float32, -bound, bound),
        jax.random.uniform(kb, (1,), jnp.float32, -bound, bound),
    )
    return raw


# ---------------------------------------------------------------------------
# Pure-JAX reference (mirrors the PyTorch forward in NCW layout)
# ---------------------------------------------------------------------------
def _ref_conbr(x_ncl, params, stride):
    w, b, gamma, beta, mean, var = params
    y = jax.lax.conv_general_dilated(x_ncl, w, (stride,), [(2, 2)]) + b[None, :, None]
    y = (y - mean[None, :, None]) / jnp.sqrt(var[None, :, None] + _BN_EPS)
    y = gamma[None, :, None] * y + beta[None, :, None]
    return jnp.maximum(y, 0.0)


def _ref_avgpool(x_ncl, p):
    bsz, ch, length = x_ncl.shape
    lo = length // p
    return x_ncl[:, :, : lo * p].reshape(bsz, ch, lo, p).mean(axis=-1)


def _ref_upsample(x_ncl):
    bsz, ch, length = x_ncl.shape
    lo = 2 * length
    pos = jnp.arange(lo) * (length - 1) / (lo - 1)
    i0 = jnp.floor(pos).astype(jnp.int32)
    i1 = jnp.minimum(i0 + 1, length - 1)
    w = (pos - i0).astype(x_ncl.dtype)
    return x_ncl[:, :, i0] * (1.0 - w) + x_ncl[:, :, i1] * w


def ref_forward(x_blc, raw):
    x = jnp.transpose(x_blc, (0, 2, 1))              # x.permute(0, 2, 1)
    pool_x1 = _ref_avgpool(x, 2)
    pool_x2 = _ref_avgpool(x, 4)
    out_0 = _ref_conbr(x, raw["layer1"], 1)
    out_1 = _ref_conbr(out_0, raw["layer2"], 2)
    x1 = jnp.concatenate([out_1, pool_x1], axis=1)
    out_2 = _ref_conbr(x1, raw["layer3"], 2)
    x2 = jnp.concatenate([out_2, pool_x2], axis=1)
    x3 = _ref_conbr(x2, raw["layer4"], 2)
    up = _ref_upsample(x3)
    up = jnp.concatenate([up, out_2], axis=1)
    up = _ref_conbr(up, raw["cbr_up1"], 1)
    up = _ref_upsample(up)
    up = jnp.concatenate([up, out_1], axis=1)
    up = _ref_conbr(up, raw["cbr_up2"], 1)
    up = _ref_upsample(up)
    up = jnp.concatenate([up, out_0], axis=1)
    up = _ref_conbr(up, raw["cbr_up3"], 1)
    w_out, b_out = raw["outcov"]
    out = jax.lax.conv_general_dilated(up, w_out, (1,), [(2, 2)]) + b_out[None, :, None]
    return jnp.tanh(out.squeeze())


if __name__ == "__main__":
    # Small shapes consistent with the module: batch=2, seq=16 (divisible by 8 for the
    # three stride-2 stages), input_dim=4 channels, layer_n=8, kernel_size=5.
    B, L, INPUT_DIM, LAYER_N, KSIZE = 2, 16, 4, 8, 5

    key = jax.random.PRNGKey(0)
    kx, kp = jax.random.split(key)
    x = jax.random.normal(kx, (B, L, INPUT_DIM), jnp.float32)
    raw = init_params(kp, INPUT_DIM, LAYER_N, KSIZE)
    folded = fold_params(raw)

    fwd = jax.jit(partial(unet1d_forward, kernel_size=KSIZE))
    _, out1 = fwd(x, folded)
    out1 = jax.block_until_ready(out1)

    ref = ref_forward(x, raw)
    assert out1.shape == (B, L), out1.shape
    err = float(jnp.max(jnp.abs(out1 - ref)))
    assert jnp.allclose(out1, ref, atol=2e-2, rtol=2e-2), f"max abs err = {err}"
    print("KERNEL_OK")
</pallas_src>

<mosaic_0001>
module attributes {stable_mosaic.version = 11 : i64} {
  func.func private @main(%arg0: i32) attributes {dimension_semantics = [#tpu.dimension_semantics<core_parallel>], iteration_bounds = array<i64: 2>, tpu.core_type = #tpu.core_type<sc_scalar_subcore>, window_params = []} {
    return
  }
}

module attributes {stable_mosaic.version = 11 : i64} {
  func.func private @main(%arg0: i32) attributes {dimension_semantics = [#tpu.dimension_semantics<core_parallel>], iteration_bounds = array<i64: 2>, tpu.core_type = #tpu.core_type<sc_scalar_subcore>, window_params = []} {
    return
  }
}

module attributes {stable_mosaic.version = 11 : i64} {
  func.func @_matmul_bias_act_kernel(%arg0: i32, %arg1: memref<32x20xf32, #tpu.memory_space<vmem>>, %arg2: memref<20x8xf32, #tpu.memory_space<vmem>>, %arg3: memref<1x8xf32, #tpu.memory_space<vmem>>, %arg4: memref<32x8xf32, #tpu.memory_space<vmem>>) attributes {dimension_semantics = [#tpu.dimension_semantics<parallel>], iteration_bounds = array<i64: 1>, scalar_prefetch = 0 : i64, scratch_operands = 0 : i64, tpu.core_type = #tpu.core_type<tc>, window_params = [{transform_indices = @transform_0, window_bounds = array<i64: 32, 20>}, {pipeline_mode = #tpu.pipeline_mode<synchronous>, transform_indices = @transform_1, window_bounds = array<i64: 20, 8>}, {pipeline_mode = #tpu.pipeline_mode<synchronous>, transform_indices = @transform_2, window_bounds = array<i64: 1, 8>}, {transform_indices = @transform_3, window_bounds = array<i64: 32, 8>}]} {
    %c0 = arith.constant 0 : index
    %c0_0 = arith.constant 0 : index
    %0 = vector.load %arg1[%c0, %c0_0] : memref<32x20xf32, #tpu.memory_space<vmem>>, vector<32x20xf32>
    %c0_1 = arith.constant 0 : index
    %c0_2 = arith.constant 0 : index
    %1 = vector.load %arg2[%c0_1, %c0_2] : memref<20x8xf32, #tpu.memory_space<vmem>>, vector<20x8xf32>
    %cst = arith.constant dense<0.000000e+00> : vector<32x8xf32>
    %2 = tpu.matmul %0, %1, %cst {dimension_numbers = #tpu.dot_dimension_numbers<[1], [0], [0], [1], [0, 0, 1, 1], [], []>} : vector<32x20xf32>, vector<20x8xf32>, vector<32x8xf32> -> vector<32x8xf32>
    %c0_3 = arith.constant 0 : index
    %c0_4 = arith.constant 0 : index
    %3 = vector.load %arg3[%c0_3, %c0_4] : memref<1x8xf32, #tpu.memory_space<vmem>>, vector<1x8xf32>
    %4 = vector.broadcast %3 : vector<1x8xf32> to vector<32x8xf32>
    %5 = arith.addf %2, %4 : vector<32x8xf32>
    %cst_5 = arith.constant 0.000000e+00 : f32
    %6 = vector.broadcast %cst_5 : f32 to vector<32x8xf32>
    %7 = arith.maximumf %5, %6 : vector<32x8xf32>
    %c0_6 = arith.constant 0 : index
    %c0_7 = arith.constant 0 : index
    %8 = vector.load %arg4[%c0_6, %c0_7] : memref<32x8xf32, #tpu.memory_space<vmem>>, vector<32x8xf32>
    tpu.vector_store %arg4[%c0_6, %c0_7], %7 {strides = array<i32>} : memref<32x8xf32, #tpu.memory_space<vmem>>, vector<32x8xf32>,
    return
  }
  func.func @transform_0(%arg0: i32) -> (i32, i32) {
    %c0_i32 = arith.constant 0 : i32
    %c0_i32_0 = arith.constant 0 : i32
    return %arg0, %c0_i32 : i32, i32
  }
  func.func @transform_1(%arg0: i32) -> (i32, i32) {
    %c0_i32 = arith.constant 0 : i32
    %c0_i32_0 = arith.constant 0 : i32
    %c0_i32_1 = arith.constant 0 : i32
    return %c0_i32, %c0_i32_0 : i32, i32
  }
  func.func @transform_2(%arg0: i32) -> (i32, i32) {
    %c0_i32 = arith.constant 0 : i32
    %c0_i32_0 = arith.constant 0 : i32
    %c0_i32_1 = arith.constant 0 : i32
    return %c0_i32, %c0_i32_0 : i32, i32
  }
  func.func @transform_3(%arg0: i32) -> (i32, i32) {
    %c0_i32 = arith.constant 0 : i32
    %c0_i32_0 = arith.constant 0 : i32
    return %arg0, %c0_i32 : i32, i32
  }
}

module attributes {stable_mosaic.version = 11 : i64} {
  func.func @_matmul_bias_act_kernel(%arg0: i32, %arg1: memref<16x40xf32, #tpu.memory_space<vmem>>, %arg2: memref<40x16xf32, #tpu.memory_space<vmem>>, %arg3: memref<1x16xf32, #tpu.memory_space<vmem>>, %arg4: memref<16x16xf32, #tpu.memory_space<vmem>>) attributes {dimension_semantics = [#tpu.dimension_semantics<parallel>], iteration_bounds = array<i64: 1>, scalar_prefetch = 0 : i64, scratch_operands = 0 : i64, tpu.core_type = #tpu.core_type<tc>, window_params = [{transform_indices = @transform_0, window_bounds = array<i64: 16, 40>}, {pipeline_mode = #tpu.pipeline_mode<synchronous>, transform_indices = @transform_1, window_bounds = array<i64: 40, 16>}, {pipeline_mode = #tpu.pipeline_mode<synchronous>, transform_indices = @transform_2, window_bounds = array<i64: 1, 16>}, {transform_indices = @transform_3, window_bounds = array<i64: 16, 16>}]} {
    %c0 = arith.constant 0 : index
    %c0_0 = arith.constant 0 : index
    %0 = vector.load %arg1[%c0, %c0_0] : memref<16x40xf32, #tpu.memory_space<vmem>>, vector<16x40xf32>
    %c0_1 = arith.constant 0 : index
    %c0_2 = arith.constant 0 : index
    %1 = vector.load %arg2[%c0_1, %c0_2] : memref<40x16xf32, #tpu.memory_space<vmem>>, vector<40x16xf32>
    %cst = arith.constant dense<0.000000e+00> : vector<16x16xf32>
    %2 = tpu.matmul %0, %1, %cst {dimension_numbers = #tpu.dot_dimension_numbers<[1], [0], [0], [1], [0, 0, 1, 1], [], []>} : vector<16x40xf32>, vector<40x16xf32>, vector<16x16xf32> -> vector<16x16xf32>
    %c0_3 = arith.constant 0 : index
    %c0_4 = arith.constant 0 : index
    %3 = vector.load %arg3[%c0_3, %c0_4] : memref<1x16xf32, #tpu.memory_space<vmem>>, vector<1x16xf32>
    %4 = vector.broadcast %3 : vector<1x16xf32> to vector<16x16xf32>
    %5 = arith.addf %2, %4 : vector<16x16xf32>
    %cst_5 = arith.constant 0.000000e+00 : f32
    %6 = vector.broadcast %cst_5 : f32 to vector<16x16xf32>
    %7 = arith.maximumf %5, %6 : vector<16x16xf32>
    %c0_6 = arith.constant 0 : index
    %c0_7 = arith.constant 0 : index
    %8 = vector.load %arg4[%c0_6, %c0_7] : memref<16x16xf32, #tpu.memory_space<vmem>>, vector<16x16xf32>
    tpu.vector_store %arg4[%c0_6, %c0_7], %7 {strides = array<i32>} : memref<16x16xf32, #tpu.memory_space<vmem>>, vector<16x16xf32>,
    return
  }
  func.func @transform_0(%arg0: i32) -> (i32, i32) {
    %c0_i32 = arith.constant 0 : i32
    %c0_i32_0 = arith.constant 0 : i32
    return %arg0, %c0_i32 : i32, i32
  }
  func.func @transform_1(%arg0: i32) -> (i32, i32) {
    %c0_i32 = arith.constant 0 : i32
    %c0_i32_0 = arith.constant 0 : i32
    %c0_i32_1 = arith.constant 0 : i32
    return %c0_i32, %c0_i32_0 : i32, i32
  }
  func.func @transform_2(%arg0: i32) -> (i32, i32) {
    %c0_i32 = arith.constant 0 : i32
    %c0_i32_0 = arith.constant 0 : i32
    %c0_i32_1 = arith.constant 0 : i32
    return %c0_i32, %c0_i32_0 : i32, i32
  }
  func.func @transform_3(%arg0: i32) -> (i32, i32) {
    %c0_i32 = arith.constant 0 : i32
    %c0_i32_0 = arith.constant 0 : i32
    return %arg0, %c0_i32 : i32, i32
  }
}

module attributes {stable_mosaic.version = 11 : i64} {
  func.func @_length_op_kernel(%arg0: i32, %arg1: memref<8x16xf32, #tpu.memory_space<vmem>>, %arg2: memref<1x16x4xf32, #tpu.memory_space<vmem>>, %arg3: memref<1x8x4xf32, #tpu.memory_space<vmem>>) attributes {dimension_semantics = [#tpu.dimension_semantics<parallel>], iteration_bounds = array<i64: 2>, scalar_prefetch = 0 : i64, scratch_operands = 0 : i64, tpu.core_type = #tpu.core_type<tc>, window_params = [{pipeline_mode = #tpu.pipeline_mode<synchronous>, transform_indices = @transform_0, window_bounds = array<i64: 8, 16>}, {transform_indices = @transform_1, window_bounds = array<i64: 1, 16, 4>}, {transform_indices = @transform_2, window_bounds = array<i64: 1, 8, 4>}]} {
    %c0 = arith.constant 0 : index
    %c0_0 = arith.constant 0 : index
    %0 = vector.load %arg1[%c0, %c0_0] : memref<8x16xf32, #tpu.memory_space<vmem>>, vector<8x16xf32>
    %c0_1 = arith.constant 0 : index
    %c0_2 = arith.constant 0 : index
    %c0_3 = arith.constant 0 : index
    %1 = vector.load %arg2[%c0_1, %c0_2, %c0_3] : memref<1x16x4xf32, #tpu.memory_space<vmem>>, vector<1x16x4xf32>
    %2 = vector.shape_cast %1 : vector<1x16x4xf32> to vector<16x4xf32>
    %cst = arith.constant dense<0.000000e+00> : vector<8x4xf32>
    %3 = tpu.matmul %0, %2, %cst {dimension_numbers = #tpu.dot_dimension_numbers<[1], [0], [0], [1], [0, 0, 1, 1], [], []>} : vector<8x16xf32>, vector<16x4xf32>, vector<8x4xf32> -> vector<8x4xf32>
    %c0_4 = arith.constant 0 : index
    %c0_5 = arith.constant 0 : index
    %c0_6 = arith.constant 0 : index
    %4 = vector.load %arg3[%c0_4, %c0_5, %c0_6] : memref<1x8x4xf32, #tpu.memory_space<vmem>>, vector<1x8x4xf32>
    %5 = vector.shape_cast %4 : vector<1x8x4xf32> to vector<8x4xf32>
    %6 = vector.shape_cast %3 : vector<8x4xf32> to vector<1x8x4xf32>
    tpu.vector_store %arg3[%c0_4, %c0_5, %c0_6], %6 {strides = array<i32>} : memref<1x8x4xf32, #tpu.memory_space<vmem>>, vector<1x8x4xf32>,
    return
  }
  func.func @transform_0(%arg0: i32) -> (i32, i32) {
    %c0_i32 = arith.constant 0 : i32
    %c0_i32_0 = arith.constant 0 : i32
    %c0_i32_1 = arith.constant 0 : i32
    return %c0_i32, %c0_i32_0 : i32, i32
  }
  func.func @transform_1(%arg0: i32) -> (i32, i32, i32) {
    %c0_i32 = arith.constant 0 : i32
    %c0_i32_0 = arith.constant 0 : i32
    %c0_i32_1 = arith.constant 0 : i32
    return %arg0, %c0_i32, %c0_i32_0 : i32, i32, i32
  }
  func.func @transform_2(%arg0: i32) -> (i32, i32, i32) {
    %c0_i32 = arith.constant 0 : i32
    %c0_i32_0 = arith.constant 0 : i32
    %c0_i32_1 = arith.constant 0 : i32
    return %arg0, %c0_i32, %c0_i32_0 : i32, i32, i32
  }
}

module attributes {stable_mosaic.version = 11 : i64} {
  func.func @_length_op_kernel(%arg0: i32, %arg1: memref<4x16xf32, #tpu.memory_space<vmem>>, %arg2: memref<1x16x4xf32, #tpu.memory_space<vmem>>, %arg3: memref<1x4x4xf32, #tpu.memory_space<vmem>>) attributes {dimension_semantics = [#tpu.dimension_semantics<parallel>], iteration_bounds = array<i64: 2>, scalar_prefetch = 0 : i64, scratch_operands = 0 : i64, tpu.core_type = #tpu.core_type<tc>, window_params = [{pipeline_mode = #tpu.pipeline_mode<synchronous>, transform_indices = @transform_0, window_bounds = array<i64: 4, 16>}, {transform_indices = @transform_1, window_bounds = array<i64: 1, 16, 4>}, {transform_indices = @transform_2, window_bounds = array<i64: 1, 4, 4>}]} {
    %c0 = arith.constant 0 : index
    %c0_0 = arith.constant 0 : index
    %0 = vector.load %arg1[%c0, %c0_0] : memref<4x16xf32, #tpu.memory_space<vmem>>, vector<4x16xf32>
    %c0_1 = arith.constant 0 : index
    %c0_2 = arith.constant 0 : index
    %c0_3 = arith.constant 0 : index
    %1 = vector.load %arg2[%c0_1, %c0_2, %c0_3] : memref<1x16x4xf32, #tpu.memory_space<vmem>>, vector<1x16x4xf32>
    %2 = vector.shape_cast %1 : vector<1x16x4xf32> to vector<16x4xf32>
    %cst = arith.constant dense<0.000000e+00> : vector<4x4xf32>
    %3 = tpu.matmul %0, %2, %cst {dimension_numbers = #tpu.dot_dimension_numbers<[1], [0], [0], [1], [0, 0, 1, 1], [], []>} : vector<4x16xf32>, vector<16x4xf32>, vector<4x4xf32> -> vector<4x4xf32>
    %c0_4 = arith.constant 0 : index
    %c0_5 = arith.constant 0 : index
    %c0_6 = arith.constant 0 : index
    %4 = vector.load %arg3[%c0_4, %c0_5, %c0_6] : memref<1x4x4xf32, #tpu.memory_space<vmem>>, vector<1x4x4xf32>
    %5 = vector.shape_cast %4 : vector<1x4x4xf32> to vector<4x4xf32>
    %6 = vector.shape_cast %3 : vector<4x4xf32> to vector<1x4x4xf32>
    tpu.vector_store %arg3[%c0_4, %c0_5, %c0_6], %6 {strides = array<i32>} : memref<1x4x4xf32, #tpu.memory_space<vmem>>, vector<1x4x4xf32>,
    return
  }
  func.func @transform_0(%arg0: i32) -> (i32, i32) {
    %c0_i32 = arith.constant 0 : i32
    %c0_i32_0 = arith.constant 0 : i32
    %c0_i32_1 = arith.constant 0 : i32
    return %c0_i32, %c0_i32_0 : i32, i32
  }
  func.func @transform_1(%arg0: i32) -> (i32, i32, i32) {
    %c0_i32 = arith.constant 0 : i32
    %c0_i32_0 = arith.constant 0 : i32
    %c0_i32_1 = arith.constant 0 : i32
    return %arg0, %c0_i32, %c0_i32_0 : i32, i32, i32
  }
  func.func @transform_2(%arg0: i32) -> (i32, i32, i32) {
    %c0_i32 = arith.constant 0 : i32
    %c0_i32_0 = arith.constant 0 : i32
    %c0_i32_1 = arith.constant 0 : i32
    return %arg0, %c0_i32, %c0_i32_0 : i32, i32, i32
  }
}

module attributes {stable_mosaic.version = 11 : i64} {
  func.func @_matmul_bias_act_kernel(%arg0: i32, %arg1: memref<8x100xf32, #tpu.memory_space<vmem>>, %arg2: memref<100x24xf32, #tpu.memory_space<vmem>>, %arg3: memref<1x24xf32, #tpu.memory_space<vmem>>, %arg4: memref<8x24xf32, #tpu.memory_space<vmem>>) attributes {dimension_semantics = [#tpu.dimension_semantics<parallel>], iteration_bounds = array<i64: 1>, scalar_prefetch = 0 : i64, scratch_operands = 0 : i64, tpu.core_type = #tpu.core_type<tc>, window_params = [{transform_indices = @transform_0, window_bounds = array<i64: 8, 100>}, {pipeline_mode = #tpu.pipeline_mode<synchronous>, transform_indices = @transform_1, window_bounds = array<i64: 100, 24>}, {pipeline_mode = #tpu.pipeline_mode<synchronous>, transform_indices = @transform_2, window_bounds = array<i64: 1, 24>}, {transform_indices = @transform_3, window_bounds = array<i64: 8, 24>}]} {
    %c0 = arith.constant 0 : index
    %c0_0 = arith.constant 0 : index
    %0 = vector.load %arg1[%c0, %c0_0] : memref<8x100xf32, #tpu.memory_space<vmem>>, vector<8x100xf32>
    %c0_1 = arith.constant 0 : index
    %c0_2 = arith.constant 0 : index
    %1 = vector.load %arg2[%c0_1, %c0_2] : memref<100x24xf32, #tpu.memory_space<vmem>>, vector<100x24xf32>
    %cst = arith.constant dense<0.000000e+00> : vector<8x24xf32>
    %2 = tpu.matmul %0, %1, %cst {dimension_numbers = #tpu.dot_dimension_numbers<[1], [0], [0], [1], [0, 0, 1, 1], [], []>} : vector<8x100xf32>, vector<100x24xf32>, vector<8x24xf32> -> vector<8x24xf32>
    %c0_3 = arith.constant 0 : index
    %c0_4 = arith.constant 0 : index
    %3 = vector.load %arg3[%c0_3, %c0_4] : memref<1x24xf32, #tpu.memory_space<vmem>>, vector<1x24xf32>
    %4 = vector.broadcast %3 : vector<1x24xf32> to vector<8x24xf32>
    %5 = arith.addf %2, %4 : vector<8x24xf32>
    %cst_5 = arith.constant 0.000000e+00 : f32
    %6 = vector.broadcast %cst_5 : f32 to vector<8x24xf32>
    %7 = arith.maximumf %5, %6 : vector<8x24xf32>
    %c0_6 = arith.constant 0 : index
    %c0_7 = arith.constant 0 : index
    %8 = vector.load %arg4[%c0_6, %c0_7] : memref<8x24xf32, #tpu.memory_space<vmem>>, vector<8x24xf32>
    tpu.vector_store %arg4[%c0_6, %c0_7], %7 {strides = array<i32>} : memref<8x24xf32, #tpu.memory_space<vmem>>, vector<8x24xf32>,
    return
  }
  func.func @transform_0(%arg0: i32) -> (i32, i32) {
    %c0_i32 = arith.constant 0 : i32
    %c0_i32_0 = arith.constant 0 : i32
    return %arg0, %c0_i32 : i32, i32
  }
  func.func @transform_1(%arg0: i32) -> (i32, i32) {
    %c0_i32 = arith.constant 0 : i32
    %c0_i32_0 = arith.constant 0 : i32
    %c0_i32_1 = arith.constant 0 : i32
    return %c0_i32, %c0_i32_0 : i32, i32
  }
  func.func @transform_2(%arg0: i32) -> (i32, i32) {
    %c0_i32 = arith.constant 0 : i32
    %c0_i32_0 = arith.constant 0 : i32
    %c0_i32_1 = arith.constant 0 : i32
    return %c0_i32, %c0_i32_0 : i32, i32
  }
  func.func @transform_3(%arg0: i32) -> (i32, i32) {
    %c0_i32 = arith.constant 0 : i32
    %c0_i32_0 = arith.constant 0 : i32
    return %arg0, %c0_i32 : i32, i32
  }
}

module attributes {stable_mosaic.version = 11 : i64} {
  func.func @_matmul_bias_act_kernel(%arg0: i32, %arg1: memref<8x140xf32, #tpu.memory_space<vmem>>, %arg2: memref<140x32xf32, #tpu.memory_space<vmem>>, %arg3: memref<1x32xf32, #tpu.memory_space<vmem>>, %arg4: memref<8x32xf32, #tpu.memory_space<vmem>>) attributes {dimension_semantics = [#tpu.dimension_semantics<parallel>], iteration_bounds = array<i64: 1>, scalar_prefetch = 0 : i64, scratch_operands = 0 : i64, tpu.core_type = #tpu.core_type<tc>, window_params = [{transform_indices = @transform_0, window_bounds = array<i64: 8, 140>}, {pipeline_mode = #tpu.pipeline_mode<synchronous>, transform_indices = @transform_1, window_bounds = array<i64: 140, 32>}, {pipeline_mode = #tpu.pipeline_mode<synchronous>, transform_indices = @transform_2, window_bounds = array<i64: 1, 32>}, {transform_indices = @transform_3, window_bounds = array<i64: 8, 32>}]} {
    %c0 = arith.constant 0 : index
    %c0_0 = arith.constant 0 : index
    %0 = vector.load %arg1[%c0, %c0_0] : memref<8x140xf32, #tpu.memory_space<vmem>>, vector<8x140xf32>
    %c0_1 = arith.constant 0 : index
    %c0_2 = arith.constant 0 : index
    %1 = vector.load %arg2[%c0_1, %c0_2] : memref<140x32xf32, #tpu.memory_space<vmem>>, vector<140x32xf32>
    %cst = arith.constant dense<0.000000e+00> : vector<8x32xf32>
    %2 = tpu.matmul %0, %1, %cst {dimension_numbers = #tpu.dot_dimension_numbers<[1], [0], [0], [1], [0, 0, 1, 1], [], []>} : vector<8x140xf32>, vector<140x32xf32>, vector<8x32xf32> -> vector<8x32xf32>
    %c0_3 = arith.constant 0 : index
    %c0_4 = arith.constant 0 : index
    %3 = vector.load %arg3[%c0_3, %c0_4] : memref<1x32xf32, #tpu.memory_space<vmem>>, vector<1x32xf32>
    %4 = vector.broadcast %3 : vector<1x32xf32> to vector<8x32xf32>
    %5 = arith.addf %2, %4 : vector<8x32xf32>
    %cst_5 = arith.constant 0.000000e+00 : f32
    %6 = vector.broadcast %cst_5 : f32 to vector<8x32xf32>
    %7 = arith.maximumf %5, %6 : vector<8x32xf32>
    %c0_6 = arith.constant 0 : index
    %c0_7 = arith.constant 0 : index
    %8 = vector.load %arg4[%c0_6, %c0_7] : memref<8x32xf32, #tpu.memory_space<vmem>>, vector<8x32xf32>
    tpu.vector_store %arg4[%c0_6, %c0_7], %7 {strides = array<i32>} : memref<8x32xf32, #tpu.memory_space<vmem>>, vector<8x32xf32>,
    return
  }
  func.func @transform_0(%arg0: i32) -> (i32, i32) {
    %c0_i32 = arith.constant 0 : i32
    %c0_i32_0 = arith.constant 0 : i32
    return %arg0, %c0_i32 : i32, i32
  }
  func.func @transform_1(%arg0: i32) -> (i32, i32) {
    %c0_i32 = arith.constant 0 : i32
    %c0_i32_0 = arith.constant 0 : i32
    %c0_i32_1 = arith.constant 0 : i32
    return %c0_i32, %c0_i32_0 : i32, i32
  }
  func.func @transform_2(%arg0: i32) -> (i32, i32) {
    %c0_i32 = arith.constant 0 : i32
    %c0_i32_0 = arith.constant 0 : i32
    %c0_i32_1 = arith.constant 0 : i32
    return %c0_i32, %c0_i32_0 : i32, i32
  }
  func.func @transform_3(%arg0: i32) -> (i32, i32) {
    %c0_i32 = arith.constant 0 : i32
    %c0_i32_0 = arith.constant 0 : i32
    return %arg0, %c0_i32 : i32, i32
  }
}

module attributes {stable_mosaic.version = 11 : i64} {
  func.func @_length_op_kernel(%arg0: i32, %arg1: memref<4x2xf32, #tpu.memory_space<vmem>>, %arg2: memref<1x2x32xf32, #tpu.memory_space<vmem>>, %arg3: memref<1x4x32xf32, #tpu.memory_space<vmem>>) attributes {dimension_semantics = [#tpu.dimension_semantics<parallel>], iteration_bounds = array<i64: 2>, scalar_prefetch = 0 : i64, scratch_operands = 0 : i64, tpu.core_type = #tpu.core_type<tc>, window_params = [{pipeline_mode = #tpu.pipeline_mode<synchronous>, transform_indices = @transform_0, window_bounds = array<i64: 4, 2>}, {transform_indices = @transform_1, window_bounds = array<i64: 1, 2, 32>}, {transform_indices = @transform_2, window_bounds = array<i64: 1, 4, 32>}]} {
    %c0 = arith.constant 0 : index
    %c0_0 = arith.constant 0 : index
    %0 = vector.load %arg1[%c0, %c0_0] : memref<4x2xf32, #tpu.memory_space<vmem>>, vector<4x2xf32>
    %c0_1 = arith.constant 0 : index
    %c0_2 = arith.constant 0 : index
    %c0_3 = arith.constant 0 : index
    %1 = vector.load %arg2[%c0_1, %c0_2, %c0_3] : memref<1x2x32xf32, #tpu.memory_space<vmem>>, vector<1x2x32xf32>
    %2 = vector.shape_cast %1 : vector<1x2x32xf32> to vector<2x32xf32>
    %cst = arith.constant dense<0.000000e+00> : vector<4x32xf32>
    %3 = tpu.matmul %0, %2, %cst {dimension_numbers = #tpu.dot_dimension_numbers<[1], [0], [0], [1], [0, 0, 1, 1], [], []>} : vector<4x2xf32>, vector<2x32xf32>, vector<4x32xf32> -> vector<4x32xf32>
    %c0_4 = arith.constant 0 : index
    %c0_5 = arith.constant 0 : index
    %c0_6 = arith.constant 0 : index
    %4 = vector.load %arg3[%c0_4, %c0_5, %c0_6] : memref<1x4x32xf32, #tpu.memory_space<vmem>>, vector<1x4x32xf32>
    %5 = vector.shape_cast %4 : vector<1x4x32xf32> to vector<4x32xf32>
    %6 = vector.shape_cast %3 : vector<4x32xf32> to vector<1x4x32xf32>
    tpu.vector_store %arg3[%c0_4, %c0_5, %c0_6], %6 {strides = array<i32>} : memref<1x4x32xf32, #tpu.memory_space<vmem>>, vector<1x4x32xf32>,
    return
  }
  func.func @transform_0(%arg0: i32) -> (i32, i32) {
    %c0_i32 = arith.constant 0 : i32
    %c0_i32_0 = arith.constant 0 : i32
    %c0_i32_1 = arith.constant 0 : i32
    return %c0_i32, %c0_i32_0 : i32, i32
  }
  func.func @transform_1(%arg0: i32) -> (i32, i32, i32) {
    %c0_i32 = arith.constant 0 : i32
    %c0_i32_0 = arith.constant 0 : i32
    %c0_i32_1 = arith.constant 0 : i32
    return %arg0, %c0_i32, %c0_i32_0 : i32, i32, i32
  }
  func.func @transform_2(%arg0: i32) -> (i32, i32, i32) {
    %c0_i32 = arith.constant 0 : i32
    %c0_i32_0 = arith.constant 0 : i32
    %c0_i32_1 = arith.constant 0 : i32
    return %arg0, %c0_i32, %c0_i32_0 : i32, i32, i32
  }
}

module attributes {stable_mosaic.version = 11 : i64} {
  func.func @_matmul_bias_act_kernel(%arg0: i32, %arg1: memref<8x280xf32, #tpu.memory_space<vmem>>, %arg2: memref<280x24xf32, #tpu.memory_space<vmem>>, %arg3: memref<1x24xf32, #tpu.memory_space<vmem>>, %arg4: memref<8x24xf32, #tpu.memory_space<vmem>>) attributes {dimension_semantics = [#tpu.dimension_semantics<parallel>], iteration_bounds = array<i64: 1>, scalar_prefetch = 0 : i64, scratch_operands = 0 : i64, tpu.core_type = #tpu.core_type<tc>, window_params = [{transform_indices = @transform_0, window_bounds = array<i64: 8, 280>}, {pipeline_mode = #tpu.pipeline_mode<synchronous>, transform_indices = @transform_1, window_bounds = array<i64: 280, 24>}, {pipeline_mode = #tpu.pipeline_mode<synchronous>, transform_indices = @transform_2, window_bounds = array<i64: 1, 24>}, {transform_indices = @transform_3, window_bounds = array<i64: 8, 24>}]} {
    %c0 = arith.constant 0 : index
    %c0_0 = arith.constant 0 : index
    %0 = vector.load %arg1[%c0, %c0_0] : memref<8x280xf32, #tpu.memory_space<vmem>>, vector<8x280xf32>
    %c0_1 = arith.constant 0 : index
    %c0_2 = arith.constant 0 : index
    %1 = vector.load %arg2[%c0_1, %c0_2] : memref<280x24xf32, #tpu.memory_space<vmem>>, vector<280x24xf32>
    %cst = arith.constant dense<0.000000e+00> : vector<8x24xf32>
    %2 = tpu.matmul %0, %1, %cst {dimension_numbers = #tpu.dot_dimension_numbers<[1], [0], [0], [1], [0, 0, 1, 1], [], []>} : vector<8x280xf32>, vector<280x24xf32>, vector<8x24xf32> -> vector<8x24xf32>
    %c0_3 = arith.constant 0 : index
    %c0_4 = arith.constant 0 : index
    %3 = vector.load %arg3[%c0_3, %c0_4] : memref<1x24xf32, #tpu.memory_space<vmem>>, vector<1x24xf32>
    %4 = vector.broadcast %3 : vector<1x24xf32> to vector<8x24xf32>
    %5 = arith.addf %2, %4 : vector<8x24xf32>
    %cst_5 = arith.constant 0.000000e+00 : f32
    %6 = vector.broadcast %cst_5 : f32 to vector<8x24xf32>
    %7 = arith.maximumf %5, %6 : vector<8x24xf32>
    %c0_6 = arith.constant 0 : index
    %c0_7 = arith.constant 0 : index
    %8 = vector.load %arg4[%c0_6, %c0_7] : memref<8x24xf32, #tpu.memory_space<vmem>>, vector<8x24xf32>
    tpu.vector_store %arg4[%c0_6, %c0_7], %7 {strides = array<i32>} : memref<8x24xf32, #tpu.memory_space<vmem>>, vector<8x24xf32>,
    return
  }
  func.func @transform_0(%arg0: i32) -> (i32, i32) {
    %c0_i32 = arith.constant 0 : i32
    %c0_i32_0 = arith.constant 0 : i32
    return %arg0, %c0_i32 : i32, i32
  }
  func.func @transform_1(%arg0: i32) -> (i32, i32) {
    %c0_i32 = arith.constant 0 : i32
    %c0_i32_0 = arith.constant 0 : i32
    %c0_i32_1 = arith.constant 0 : i32
    return %c0_i32, %c0_i32_0 : i32, i32
  }
  func.func @transform_2(%arg0: i32) -> (i32, i32) {
    %c0_i32 = arith.constant 0 : i32
    %c0_i32_0 = arith.constant 0 : i32
    %c0_i32_1 = arith.constant 0 : i32
    return %c0_i32, %c0_i32_0 : i32, i32
  }
  func.func @transform_3(%arg0: i32) -> (i32, i32) {
    %c0_i32 = arith.constant 0 : i32
    %c0_i32_0 = arith.constant 0 : i32
    return %arg0, %c0_i32 : i32, i32
  }
}

module attributes {stable_mosaic.version = 11 : i64} {
  func.func @_length_op_kernel(%arg0: i32, %arg1: memref<8x4xf32, #tpu.memory_space<vmem>>, %arg2: memref<1x4x24xf32, #tpu.memory_space<vmem>>, %arg3: memref<1x8x24xf32, #tpu.memory_space<vmem>>) attributes {dimension_semantics = [#tpu.dimension_semantics<parallel>], iteration_bounds = array<i64: 2>, scalar_prefetch = 0 : i64, scratch_operands = 0 : i64, tpu.core_type = #tpu.core_type<tc>, window_params = [{pipeline_mode = #tpu.pipeline_mode<synchronous>, transform_indices = @transform_0, window_bounds = array<i64: 8, 4>}, {transform_indices = @transform_1, window_bounds = array<i64: 1, 4, 24>}, {transform_indices = @transform_2, window_bounds = array<i64: 1, 8, 24>}]} {
    %c0 = arith.constant 0 : index
    %c0_0 = arith.constant 0 : index
    %0 = vector.load %arg1[%c0, %c0_0] : memref<8x4xf32, #tpu.memory_space<vmem>>, vector<8x4xf32>
    %c0_1 = arith.constant 0 : index
    %c0_2 = arith.constant 0 : index
    %c0_3 = arith.constant 0 : index
    %1 = vector.load %arg2[%c0_1, %c0_2, %c0_3] : memref<1x4x24xf32, #tpu.memory_space<vmem>>, vector<1x4x24xf32>
    %2 = vector.shape_cast %1 : vector<1x4x24xf32> to vector<4x24xf32>
    %cst = arith.constant dense<0.000000e+00> : vector<8x24xf32>
    %3 = tpu.matmul %0, %2, %cst {dimension_numbers = #tpu.dot_dimension_numbers<[1], [0], [0], [1], [0, 0, 1, 1], [], []>} : vector<8x4xf32>, vector<4x24xf32>, vector<8x24xf32> -> vector<8x24xf32>
    %c0_4 = arith.constant 0 : index
    %c0_5 = arith.constant 0 : index
    %c0_6 = arith.constant 0 : index
    %4 = vector.load %arg3[%c0_4, %c0_5, %c0_6] : memref<1x8x24xf32, #tpu.memory_space<vmem>>, vector<1x8x24xf32>
    %5 = vector.shape_cast %4 : vector<1x8x24xf32> to vector<8x24xf32>
    %6 = vector.shape_cast %3 : vector<8x24xf32> to vector<1x8x24xf32>
    tpu.vector_store %arg3[%c0_4, %c0_5, %c0_6], %6 {strides = array<i32>} : memref<1x8x24xf32, #tpu.memory_space<vmem>>, vector<1x8x24xf32>,
    return
  }
  func.func @transform_0(%arg0: i32) -> (i32, i32) {
    %c0_i32 = arith.constant 0 : i32
    %c0_i32_0 = arith.constant 0 : i32
    %c0_i32_1 = arith.constant 0 : i32
    return %c0_i32, %c0_i32_0 : i32, i32
  }
  func.func @transform_1(%arg0: i32) -> (i32, i32, i32) {
    %c0_i32 = arith.constant 0 : i32
    %c0_i32_0 = arith.constant 0 : i32
    %c0_i32_1 = arith.constant 0 : i32
    return %arg0, %c0_i32, %c0_i32_0 : i32, i32, i32
  }
  func.func @transform_2(%arg0: i32) -> (i32, i32, i32) {
    %c0_i32 = arith.constant 0 : i32
    %c0_i32_0 = arith.constant 0 : i32
    %c0_i32_1 = arith.constant 0 : i32
    return %arg0, %c0_i32, %c0_i32_0 : i32, i32, i32
  }
}

module attributes {stable_mosaic.version = 11 : i64} {
  func.func @_matmul_bias_act_kernel(%arg0: i32, %arg1: memref<16x200xf32, #tpu.memory_space<vmem>>, %arg2: memref<200x16xf32, #tpu.memory_space<vmem>>, %arg3: memref<1x16xf32, #tpu.memory_space<vmem>>, %arg4: memref<16x16xf32, #tpu.memory_space<vmem>>) attributes {dimension_semantics = [#tpu.dimension_semantics<parallel>], iteration_bounds = array<i64: 1>, scalar_prefetch = 0 : i64, scratch_operands = 0 : i64, tpu.core_type = #tpu.core_type<tc>, window_params = [{transform_indices = @transform_0, window_bounds = array<i64: 16, 200>}, {pipeline_mode = #tpu.pipeline_mode<synchronous>, transform_indices = @transform_1, window_bounds = array<i64: 200, 16>}, {pipeline_mode = #tpu.pipeline_mode<synchronous>, transform_indices = @transform_2, window_bounds = array<i64: 1, 16>}, {transform_indices = @transform_3, window_bounds = array<i64: 16, 16>}]} {
    %c0 = arith.constant 0 : index
    %c0_0 = arith.constant 0 : index
    %0 = vector.load %arg1[%c0, %c0_0] : memref<16x200xf32, #tpu.memory_space<vmem>>, vector<16x200xf32>
    %c0_1 = arith.constant 0 : index
    %c0_2 = arith.constant 0 : index
    %1 = vector.load %arg2[%c0_1, %c0_2] : memref<200x16xf32, #tpu.memory_space<vmem>>, vector<200x16xf32>
    %cst = arith.constant dense<0.000000e+00> : vector<16x16xf32>
    %2 = tpu.matmul %0, %1, %cst {dimension_numbers = #tpu.dot_dimension_numbers<[1], [0], [0], [1], [0, 0, 1, 1], [], []>} : vector<16x200xf32>, vector<200x16xf32>, vector<16x16xf32> -> vector<16x16xf32>
    %c0_3 = arith.constant 0 : index
    %c0_4 = arith.constant 0 : index
    %3 = vector.load %arg3[%c0_3, %c0_4] : memref<1x16xf32, #tpu.memory_space<vmem>>, vector<1x16xf32>
    %4 = vector.broadcast %3 : vector<1x16xf32> to vector<16x16xf32>
    %5 = arith.addf %2, %4 : vector<16x16xf32>
    %cst_5 = arith.constant 0.000000e+00 : f32
    %6 = vector.broadcast %cst_5 : f32 to vector<16x16xf32>
    %7 = arith.maximumf %5, %6 : vector<16x16xf32>
    %c0_6 = arith.constant 0 : index
    %c0_7 = arith.constant 0 : index
    %8 = vector.load %arg4[%c0_6, %c0_7] : memref<16x16xf32, #tpu.memory_space<vmem>>, vector<16x16xf32>
    tpu.vector_store %arg4[%c0_6, %c0_7], %7 {strides = array<i32>} : memref<16x16xf32, #tpu.memory_space<vmem>>, vector<16x16xf32>,
    return
  }
  func.func @transform_0(%arg0: i32) -> (i32, i32) {
    %c0_i32 = arith.constant 0 : i32
    %c0_i32_0 = arith.constant 0 : i32
    return %arg0, %c0_i32 : i32, i32
  }
  func.func @transform_1(%arg0: i32) -> (i32, i32) {
    %c0_i32 = arith.constant 0 : i32
    %c0_i32_0 = arith.constant 0 : i32
    %c0_i32_1 = arith.constant 0 : i32
    return %c0_i32, %c0_i32_0 : i32, i32
  }
  func.func @transform_2(%arg0: i32) -> (i32, i32) {
    %c0_i32 = arith.constant 0 : i32
    %c0_i32_0 = arith.constant 0 : i32
    %c0_i32_1 = arith.constant 0 : i32
    return %c0_i32, %c0_i32_0 : i32, i32
  }
  func.func @transform_3(%arg0: i32) -> (i32, i32) {
    %c0_i32 = arith.constant 0 : i32
    %c0_i32_0 = arith.constant 0 : i32
    return %arg0, %c0_i32 : i32, i32
  }
}

module attributes {stable_mosaic.version = 11 : i64} {
  func.func @_length_op_kernel(%arg0: i32, %arg1: memref<16x8xf32, #tpu.memory_space<vmem>>, %arg2: memref<1x8x16xf32, #tpu.memory_space<vmem>>, %arg3: memref<1x16x16xf32, #tpu.memory_space<vmem>>) attributes {dimension_semantics = [#tpu.dimension_semantics<parallel>], iteration_bounds = array<i64: 2>, scalar_prefetch = 0 : i64, scratch_operands = 0 : i64, tpu.core_type = #tpu.core_type<tc>, window_params = [{pipeline_mode = #tpu.pipeline_mode<synchronous>, transform_indices = @transform_0, window_bounds = array<i64: 16, 8>}, {transform_indices = @transform_1, window_bounds = array<i64: 1, 8, 16>}, {transform_indices = @transform_2, window_bounds = array<i64: 1, 16, 16>}]} {
    %c0 = arith.constant 0 : index
    %c0_0 = arith.constant 0 : index
    %0 = vector.load %arg1[%c0, %c0_0] : memref<16x8xf32, #tpu.memory_space<vmem>>, vector<16x8xf32>
    %c0_1 = arith.constant 0 : index
    %c0_2 = arith.constant 0 : index
    %c0_3 = arith.constant 0 : index
    %1 = vector.load %arg2[%c0_1, %c0_2, %c0_3] : memref<1x8x16xf32, #tpu.memory_space<vmem>>, vector<1x8x16xf32>
    %2 = vector.shape_cast %1 : vector<1x8x16xf32> to vector<8x16xf32>
    %cst = arith.constant dense<0.000000e+00> : vector<16x16xf32>
    %3 = tpu.matmul %0, %2, %cst {dimension_numbers = #tpu.dot_dimension_numbers<[1], [0], [0], [1], [0, 0, 1, 1], [], []>} : vector<16x8xf32>, vector<8x16xf32>, vector<16x16xf32> -> vector<16x16xf32>
    %c0_4 = arith.constant 0 : index
    %c0_5 = arith.constant 0 : index
    %c0_6 = arith.constant 0 : index
    %4 = vector.load %arg3[%c0_4, %c0_5, %c0_6] : memref<1x16x16xf32, #tpu.memory_space<vmem>>, vector<1x16x16xf32>
    %5 = vector.shape_cast %4 : vector<1x16x16xf32> to vector<16x16xf32>
    %6 = vector.shape_cast %3 : vector<16x16xf32> to vector<1x16x16xf32>
    tpu.vector_store %arg3[%c0_4, %c0_5, %c0_6], %6 {strides = array<i32>} : memref<1x16x16xf32, #tpu.memory_space<vmem>>, vector<1x16x16xf32>,
    return
  }
  func.func @transform_0(%arg0: i32) -> (i32, i32) {
    %c0_i32 = arith.constant 0 : i32
    %c0_i32_0 = arith.constant 0 : i32
    %c0_i32_1 = arith.constant 0 : i32
    return %c0_i32, %c0_i32_0 : i32, i32
  }
  func.func @transform_1(%arg0: i32) -> (i32, i32, i32) {
    %c0_i32 = arith.constant 0 : i32
    %c0_i32_0 = arith.constant 0 : i32
    %c0_i32_1 = arith.constant 0 : i32
    return %arg0, %c0_i32, %c0_i32_0 : i32, i32, i32
  }
  func.func @transform_2(%arg0: i32) -> (i32, i32, i32) {
    %c0_i32 = arith.constant 0 : i32
    %c0_i32_0 = arith.constant 0 : i32
    %c0_i32_1 = arith.constant 0 : i32
    return %arg0, %c0_i32, %c0_i32_0 : i32, i32, i32
  }
}

module attributes {stable_mosaic.version = 11 : i64} {
  func.func @_matmul_bias_act_kernel(%arg0: i32, %arg1: memref<32x120xf32, #tpu.memory_space<vmem>>, %arg2: memref<120x8xf32, #tpu.memory_space<vmem>>, %arg3: memref<1x8xf32, #tpu.memory_space<vmem>>, %arg4: memref<32x8xf32, #tpu.memory_space<vmem>>) attributes {dimension_semantics = [#tpu.dimension_semantics<parallel>], iteration_bounds = array<i64: 1>, scalar_prefetch = 0 : i64, scratch_operands = 0 : i64, tpu.core_type = #tpu.core_type<tc>, window_params = [{transform_indices = @transform_0, window_bounds = array<i64: 32, 120>}, {pipeline_mode = #tpu.pipeline_mode<synchronous>, transform_indices = @transform_1, window_bounds = array<i64: 120, 8>}, {pipeline_mode = #tpu.pipeline_mode<synchronous>, transform_indices = @transform_2, window_bounds = array<i64: 1, 8>}, {transform_indices = @transform_3, window_bounds = array<i64: 32, 8>}]} {
    %c0 = arith.constant 0 : index
    %c0_0 = arith.constant 0 : index
    %0 = vector.load %arg1[%c0, %c0_0] : memref<32x120xf32, #tpu.memory_space<vmem>>, vector<32x120xf32>
    %c0_1 = arith.constant 0 : index
    %c0_2 = arith.constant 0 : index
    %1 = vector.load %arg2[%c0_1, %c0_2] : memref<120x8xf32, #tpu.memory_space<vmem>>, vector<120x8xf32>
    %cst = arith.constant dense<0.000000e+00> : vector<32x8xf32>
    %2 = tpu.matmul %0, %1, %cst {dimension_numbers = #tpu.dot_dimension_numbers<[1], [0], [0], [1], [0, 0, 1, 1], [], []>} : vector<32x120xf32>, vector<120x8xf32>, vector<32x8xf32> -> vector<32x8xf32>
    %c0_3 = arith.constant 0 : index
    %c0_4 = arith.constant 0 : index
    %3 = vector.load %arg3[%c0_3, %c0_4] : memref<1x8xf32, #tpu.memory_space<vmem>>, vector<1x8xf32>
    %4 = vector.broadcast %3 : vector<1x8xf32> to vector<32x8xf32>
    %5 = arith.addf %2, %4 : vector<32x8xf32>
    %cst_5 = arith.constant 0.000000e+00 : f32
    %6 = vector.broadcast %cst_5 : f32 to vector<32x8xf32>
    %7 = arith.maximumf %5, %6 : vector<32x8xf32>
    %c0_6 = arith.constant 0 : index
    %c0_7 = arith.constant 0 : index
    %8 = vector.load %arg4[%c0_6, %c0_7] : memref<32x8xf32, #tpu.memory_space<vmem>>, vector<32x8xf32>
    tpu.vector_store %arg4[%c0_6, %c0_7], %7 {strides = array<i32>} : memref<32x8xf32, #tpu.memory_space<vmem>>, vector<32x8xf32>,
    return
  }
  func.func @transform_0(%arg0: i32) -> (i32, i32) {
    %c0_i32 = arith.constant 0 : i32
    %c0_i32_0 = arith.constant 0 : i32
    return %arg0, %c0_i32 : i32, i32
  }
  func.func @transform_1(%arg0: i32) -> (i32, i32) {
    %c0_i32 = arith.constant 0 : i32
    %c0_i32_0 = arith.constant 0 : i32
    %c0_i32_1 = arith.constant 0 : i32
    return %c0_i32, %c0_i32_0 : i32, i32
  }
  func.func @transform_2(%arg0: i32) -> (i32, i32) {
    %c0_i32 = arith.constant 0 : i32
    %c0_i32_0 = arith.constant 0 : i32
    %c0_i32_1 = arith.constant 0 : i32
    return %c0_i32, %c0_i32_0 : i32, i32
  }
  func.func @transform_3(%arg0: i32) -> (i32, i32) {
    %c0_i32 = arith.constant 0 : i32
    %c0_i32_0 = arith.constant 0 : i32
    return %arg0, %c0_i32 : i32, i32
  }
}

module attributes {stable_mosaic.version = 11 : i64} {
  func.func @_matmul_bias_act_kernel(%arg0: i32, %arg1: memref<32x40xf32, #tpu.memory_space<vmem>>, %arg2: memref<40x1xf32, #tpu.memory_space<vmem>>, %arg3: memref<1x1xf32, #tpu.memory_space<vmem>>, %arg4: memref<32x1xf32, #tpu.memory_space<vmem>>) attributes {dimension_semantics = [#tpu.dimension_semantics<parallel>], iteration_bounds = array<i64: 1>, scalar_prefetch = 0 : i64, scratch_operands = 0 : i64, tpu.core_type = #tpu.core_type<tc>, window_params = [{transform_indices = @transform_0, window_bounds = array<i64: 32, 40>}, {pipeline_mode = #tpu.pipeline_mode<synchronous>, transform_indices = @transform_1, window_bounds = array<i64: 40, 1>}, {pipeline_mode = #tpu.pipeline_mode<synchronous>, transform_indices = @transform_2, window_bounds = array<i64: 1, 1>}, {transform_indices = @transform_3, window_bounds = array<i64: 32, 1>}]} {
    %c0 = arith.constant 0 : index
    %c0_0 = arith.constant 0 : index
    %0 = vector.load %arg1[%c0, %c0_0] : memref<32x40xf32, #tpu.memory_space<vmem>>, vector<32x40xf32>
    %c0_1 = arith.constant 0 : index
    %c0_2 = arith.constant 0 : index
    %1 = vector.load %arg2[%c0_1, %c0_2] : memref<40x1xf32, #tpu.memory_space<vmem>>, vector<40x1xf32>
    %cst = arith.constant dense<0.000000e+00> : vector<32x1xf32>
    %2 = tpu.matmul %0, %1, %cst {dimension_numbers = #tpu.dot_dimension_numbers<[1], [0], [0], [1], [0, 0, 1, 1], [], []>} : vector<32x40xf32>, vector<40x1xf32>, vector<32x1xf32> -> vector<32x1xf32>
    %c0_3 = arith.constant 0 : index
    %c0_4 = arith.constant 0 : index
    %3 = vector.load %arg3[%c0_3, %c0_4] : memref<1x1xf32, #tpu.memory_space<vmem>>, vector<1x1xf32>
    %4 = vector.broadcast %3 : vector<1x1xf32> to vector<32x1xf32>
    %5 = arith.addf %2, %4 : vector<32x1xf32>
    %6 = math.tanh %5 : vector<32x1xf32>
    %c0_5 = arith.constant 0 : index
    %c0_6 = arith.constant 0 : index
    %7 = vector.load %arg4[%c0_5, %c0_6] : memref<32x1xf32, #tpu.memory_space<vmem>>, vector<32x1xf32>
    tpu.vector_store %arg4[%c0_5, %c0_6], %6 {strides = array<i32>} : memref<32x1xf32, #tpu.memory_space<vmem>>, vector<32x1xf32>,
    return
  }
  func.func @transform_0(%arg0: i32) -> (i32, i32) {
    %c0_i32 = arith.constant 0 : i32
    %c0_i32_0 = arith.constant 0 : i32
    return %arg0, %c0_i32 : i32, i32
  }
  func.func @transform_1(%arg0: i32) -> (i32, i32) {
    %c0_i32 = arith.constant 0 : i32
    %c0_i32_0 = arith.constant 0 : i32
    %c0_i32_1 = arith.constant 0 : i32
    return %c0_i32, %c0_i32_0 : i32, i32
  }
  func.func @transform_2(%arg0: i32) -> (i32, i32) {
    %c0_i32 = arith.constant 0 : i32
    %c0_i32_0 = arith.constant 0 : i32
    %c0_i32_1 = arith.constant 0 : i32
    return %c0_i32, %c0_i32_0 : i32, i32
  }
  func.func @transform_3(%arg0: i32) -> (i32, i32) {
    %c0_i32 = arith.constant 0 : i32
    %c0_i32_0 = arith.constant 0 : i32
    return %arg0, %c0_i32 : i32, i32
  }
}

</mosaic_0001>

<llo_original>
// kernel: unet1d_forward.15
$region0: #{unet1d_forward.15}
  #allocation0 [shape = 'u32[]', space=smem, size = 0x4, offset = 0x4, fixed_abs, tag = 'smem constant byte address 0x4 - core index']
  #allocation1 [shape = 'u32[144,128]{1,0:T(1,128)}', space=vmem, size = 0x12000, scoped, tag = 'internal scratch']
  %s0 = inlined_call_operand.vmem [shape: f32[32,20], index: 0, kind: input, shape index: {}]
  %s1 = inlined_call_operand.vmem [shape: f32[20,8], index: 1, kind: input, shape index: {}]
  %s2 = inlined_call_operand.vmem [shape: f32[1,8], index: 2, kind: input, shape index: {}]
  %s3 = inlined_call_operand.vmem [shape: f32[32,8], index: 3, kind: output, shape index: {}]
  %s4 = sld [smem:[#allocation0]]
  $region22: #{unet1d_forward.15} parent=0
    _
  %s6 = ssub.s32 1, %s4
  %s7 = scalar_select 0, %s6, %s4
  // Predicated region
  $region2: #{unet1d_forward.15} parent=0 // pred_check
    _
  $region3: #{unet1d_forward.15} parent=0 // pred_check_branch
    %9 = sbr.rel (0) target = $region5
  $region4: #{unet1d_forward.15} parent=0 // pred_region
    _
  $region5: #{unet1d_forward.15} parent=0 // pred_fallthru
    _
  // Predicated region
  $region6: #{unet1d_forward.15} parent=0 // pred_check
    _
  $region7: #{unet1d_forward.15} parent=0 // pred_check_branch
    %11 = sbr.rel (0) target = $region9
  $region8: #{unet1d_forward.15} parent=0 // pred_region
    _
  $region9: #{unet1d_forward.15} parent=0 // pred_fallthru
    _
  // Predicated region
  $region10: #{unet1d_forward.15} parent=0 // pred_check
    _
  $region11: #{unet1d_forward.15} parent=0 // pred_check_branch
    %13 = sbr.rel (0) target = $region13
  $region12: #{unet1d_forward.15} parent=0 // pred_region
    _
  $region13: #{unet1d_forward.15} parent=0 // pred_fallthru
    _
  %v14 = vld [vmem:[%s0] sm:$0xff]
  %v15 = vld [vmem:[%s0 + $0x8] sm:$0xff]
  %v16 = vld [vmem:[%s0 + $0x10] sm:$0xff]
  %v17 = vld [vmem:[%s0 + $0x18] sm:$0xff]
  %v18 = vld [vmem:[%s1] sm:$0xff]
  %v19 = vld [vmem:[%s1 + $0x8] sm:$0xff]
  %v20 = vld [vmem:[%s1 + $0x10] sm:$0xf]
  %v21 = vld [vmem:[%s2] sm:$0x1]
  %v23 = vlaneseq
  %v24 = vshrl.u32 %v23, 7
  %v25 = vsub.s32 0, %v24
  %v26 = vrot.slane %v21, %v25
  %vm28 = vcmask 162816
  %v30 = vsel %vm28, %v14, 0
  %v33 = vsel %vm28, %v15, 0
  %v36 = vsel %vm28, %v16, 0
  %v39 = vsel %vm28, %v17, 0
  %vm41 = vcmask 1043456
  %v43 = vsel %vm41, %v20, 0
  %45 = vmatprep.subr.mxu0 0.0
  %46 = vmatpush1.msra.mxu0 %v18
  %47 = vmatprep.subr.mxu0 0.0
  %48 = vmatpush1.msra.mxu0 %v19
  %49 = vmatprep.subr.mxu0 0.0
  %50 = vmatpush1.msra.mxu0 %v43
  %51 = vmatprep.subr.mxu0 0.0
  %52 = vmatpush1.msra.mxu0 0.0
  %53 = vmatprep.subr.mxu0 0.0
  %54 = vmatpush1.msra.mxu0 0.0
  %55 = vmatprep.subr.mxu0 0.0
  %56 = vmatpush1.msra.mxu0 0.0
  %57 = vmatprep.subr.mxu0 0.0
  %58 = vmatpush1.msra.mxu0 0.0
  %59 = vmatprep.subr.mxu0 0.0
  %60 = vmatpush1.msra.mxu0 0.0
  %61 = vmatprep.subr.mxu0 0.0
  %62 = vmatpush1.msra.mxu0 0.0
  %63 = vmatprep.subr.mxu0 0.0
  %64 = vmatpush1.msra.mxu0 0.0
  %65 = vmatprep.subr.mxu0 0.0
  %66 = vmatpush1.msra.mxu0 0.0
  %67 = vmatprep.subr.mxu0 0.0
  %68 = vmatpush1.msra.mxu0 0.0
  %69 = vmatprep.subr.mxu0 0.0
  %70 = vmatpush1.msra.mxu0 0.0
  %71 = vmatprep.subr.mxu0 0.0
  %72 = vmatpush1.msra.mxu0 0.0
  %73 = vmatprep.subr.mxu0 0.0
  %74 = vmatpush1.msra.mxu0 0.0
  %75 = vmatprep.subr.mxu0 0.0
  %76 = vmatpush1.msra.mxu0 0.0
  %77 = vmatprep.subr.mxu0 0.0
  %78 = vmatpush1.msra.mxu0 0.0
  %79 = vmatprep.subr.mxu0 0.0
  %80 = vmatpush1.msra.mxu0 0.0
  %81 = vmatprep.subr.mxu0 0.0
  %82 = vmatpush1.msra.mxu0 0.0
  %83 = vmatprep.subr.mxu0 0.0
  %84 = vmatpush1.msra.mxu0 0.0
  %85 = vmatprep.subr.mxu0 0.0
  %86 = vmatpush1.msra.mxu0 0.0
  %87 = vmatprep.subr.mxu0 0.0
  %88 = vmatpush1.msra.mxu0 0.0
  %89 = vmatprep.subr.mxu0 0.0
  %90 = vmatpush1.msra.mxu0 0.0
  %91 = vmatprep.subr.mxu0 0.0
  %92 = vmatpush1.msra.mxu0 0.0
  %93 = vmatprep.subr.mxu0 0.0
  %94 = vmatpush1.msra.mxu0 0.0
  %95 = vmatprep.subr.mxu0 0.0
  %96 = vmatpush1.msra.mxu0 0.0
  %97 = vmatprep.subr.mxu0 0.0
  %98 = vmatpush1.msra.mxu0 0.0
  %99 = vmatprep.subr.mxu0 0.0
  %100 = vmatpush1.msra.mxu0 0.0
  %101 = vmatprep.subr.mxu0 0.0
  %102 = vmatpush1.msra.mxu0 0.0
  %103 = vmatprep.subr.mxu0 0.0
  %104 = vmatpush1.msra.mxu0 0.0
  %105 = vmatprep.subr.mxu0 0.0
  %106 = vmatpush1.msra.mxu0 0.0
  %107 = vmatprep.subr.mxu0 0.0
  %108 = vmatpush1.msra.mxu0 0.0
  %109 = vmatprep.mubr.f32.mxu0 0.0
  %110 = vmatmul.mubr.f32.gmra.mrb[0].mxu0 %v30
  %v111 = vpop.f32.mrb[0].mxu0
  %v112 = vadd.f32 %v26, %v111
  %v113 = vpop.f32.mrb[0].mxu0
  %114 = vmatprep.mubr.f32.mxu0 0.0
  %115 = vmatmul.mubr.f32.gmra.mrb[0].mxu0 %v33
  %v116 = vpop.f32.mrb[0].mxu0
  %v117 = vadd.f32 %v26, %v116
  %v118 = vpop.f32.mrb[0].mxu0
  %119 = vmatprep.mubr.f32.mxu0 0.0
  %120 = vmatmul.mubr.f32.gmra.mrb[0].mxu0 %v36
  %v121 = vpop.f32.mrb[0].mxu0
  %v122 = vadd.f32 %v26, %v121
  %v123 = vpop.f32.mrb[0].mxu0
  %124 = vmatprep.mubr.f32.mxu0 0.0
  %125 = vmatmul.mubr.f32.gmra.mrb[0].mxu0 %v39
  %v126 = vpop.f32.mrb[0].mxu0
  %v127 = vadd.f32 %v26, %v126
  %v128 = vpop.f32.mrb[0].mxu0
  %129 = vdwg.mxu0
  %v130 = vmax.f32 %v112, 0.0
  %v131 = vmax.f32 %v117, 0.0
  %v132 = vmax.f32 %v122, 0.0
  %v133 = vmax.f32 %v127, 0.0
  %vm134 = vcmask 64512
  %135 = vst.msk [vmem:[%s3] sm:$0xff] %vm134, %v130
  %136 = vst.msk [vmem:[%s3 + $0x8] sm:$0xff] %vm134, %v131
  %137 = vst.msk [vmem:[%s3 + $0x10] sm:$0xff] %vm134, %v132
  %138 = vst.msk [vmem:[%s3 + $0x18] sm:$0xff] %vm134, %v133
  // Predicated region
  $region14: #{unet1d_forward.15} parent=0 // pred_check
    _
  $region15: #{unet1d_forward.15} parent=0 // pred_check_branch
    %140 = sbr.rel (0) target = $region17
  $region16: #{unet1d_forward.15} parent=0 // pred_region
    _
  $region17: #{unet1d_forward.15} parent=0 // pred_fallthru
    _
  // Predicated region
  $region18: #{unet1d_forward.15} parent=0 // pred_check
    _
  $region19: #{unet1d_forward.15} parent=0 // pred_check_branch
    %142 = sbr.rel (0) target = $region21
  $region20: #{unet1d_forward.15} parent=0 // pred_region
    _
  $region21: #{unet1d_forward.15} parent=0 // pred_fallthru
    _

// kernel: unet1d_forward.16
$region0: #{unet1d_forward.16}
  #allocation0 [shape = 'u32[]', space=smem, size = 0x4, offset = 0x4, fixed_abs, tag = 'smem constant byte address 0x4 - core index']
  #allocation1 [shape = 'u32[144,128]{1,0:T(1,128)}', space=vmem, size = 0x12000, scoped, tag = 'internal scratch']
  %s0 = inlined_call_operand.vmem [shape: f32[16,40], index: 0, kind: input, shape index: {}]
  %s1 = inlined_call_operand.vmem [shape: f32[40,16], index: 1, kind: input, shape index: {}]
  %s2 = inlined_call_operand.vmem [shape: f32[1,16], index: 2, kind: input, shape index: {}]
  %s3 = inlined_call_operand.vmem [shape: f32[16,16], index: 3, kind: output, shape index: {}]
  %s4 = sld [smem:[#allocation0]]
  $region22: #{unet1d_forward.16} parent=0
    _
  %s6 = ssub.s32 1, %s4
  %s7 = scalar_select 0, %s6, %s4
  // Predicated region
  $region2: #{unet1d_forward.16} parent=0 // pred_check
    _
  $region3: #{unet1d_forward.16} parent=0 // pred_check_branch
    %9 = sbr.rel (0) target = $region5
  $region4: #{unet1d_forward.16} parent=0 // pred_region
    _
  $region5: #{unet1d_forward.16} parent=0 // pred_fallthru
    _
  // Predicated region
  $region6: #{unet1d_forward.16} parent=0 // pred_check
    _
  $region7: #{unet1d_forward.16} parent=0 // pred_check_branch
    %11 = sbr.rel (0) target = $region9
  $region8: #{unet1d_forward.16} parent=0 // pred_region
    _
  $region9: #{unet1d_forward.16} parent=0 // pred_fallthru
    _
  // Predicated region
  $region10: #{unet1d_forward.16} parent=0 // pred_check
    _
  $region11: #{unet1d_forward.16} parent=0 // pred_check_branch
    %13 = sbr.rel (0) target = $region13
  $region12: #{unet1d_forward.16} parent=0 // pred_region
    _
  $region13: #{unet1d_forward.16} parent=0 // pred_fallthru
    _
  %v14 = vld [vmem:[%s0] sm:$0xff]
  %v15 = vld [vmem:[%s0 + $0x8] sm:$0xff]
  %v16 = vld [vmem:[%s1] sm:$0xff]
  %v17 = vld [vmem:[%s1 + $0x8] sm:$0xff]
  %v18 = vld [vmem:[%s1 + $0x10] sm:$0xff]
  %v19 = vld [vmem:[%s1 + $0x18] sm:$0xff]
  %v20 = vld [vmem:[%s1 + $0x20] sm:$0xff]
  %v21 = vld [vmem:[%s2] sm:$0x1]
  %v23 = vlaneseq
  %v24 = vshrl.u32 %v23, 7
  %v25 = vsub.s32 0, %v24
  %v26 = vrot.slane %v21, %v25
  %vm28 = vcmask 326656
  %v30 = vsel %vm28, %v14, 0
  %v33 = vsel %vm28, %v15, 0
  %35 = vmatprep.subr.mxu0 0.0
  %36 = vmatpush1.msra.mxu0 %v16
  %37 = vmatprep.subr.mxu0 0.0
  %38 = vmatpush1.msra.mxu0 %v17
  %39 = vmatprep.subr.mxu0 0.0
  %40 = vmatpush1.msra.mxu0 %v18
  %41 = vmatprep.subr.mxu0 0.0
  %42 = vmatpush1.msra.mxu0 %v19
  %43 = vmatprep.subr.mxu0 0.0
  %44 = vmatpush1.msra.mxu0 %v20
  %45 = vmatprep.subr.mxu0 0.0
  %46 = vmatpush1.msra.mxu0 0.0
  %47 = vmatprep.subr.mxu0 0.0
  %48 = vmatpush1.msra.mxu0 0.0
  %49 = vmatprep.subr.mxu0 0.0
  %50 = vmatpush1.msra.mxu0 0.0
  %51 = vmatprep.subr.mxu0 0.0
  %52 = vmatpush1.msra.mxu0 0.0
  %53 = vmatprep.subr.mxu0 0.0
  %54 = vmatpush1.msra.mxu0 0.0
  %55 = vmatprep.subr.mxu0 0.0
  %56 = vmatpush1.msra.mxu0 0.0
  %57 = vmatprep.subr.mxu0 0.0
  %58 = vmatpush1.msra.mxu0 0.0
  %59 = vmatprep.subr.mxu0 0.0
  %60 = vmatpush1.msra.mxu0 0.0
  %61 = vmatprep.subr.mxu0 0.0
  %62 = vmatpush1.msra.mxu0 0.0
  %63 = vmatprep.subr.mxu0 0.0
  %64 = vmatpush1.msra.mxu0 0.0
  %65 = vmatprep.subr.mxu0 0.0
  %66 = vmatpush1.msra.mxu0 0.0
  %67 = vmatprep.subr.mxu0 0.0
  %68 = vmatpush1.msra.mxu0 0.0
  %69 = vmatprep.subr.mxu0 0.0
  %70 = vmatpush1.msra.mxu0 0.0
  %71 = vmatprep.subr.mxu0 0.0
  %72 = vmatpush1.msra.mxu0 0.0
  %73 = vmatprep.subr.mxu0 0.0
  %74 = vmatpush1.msra.mxu0 0.0
  %75 = vmatprep.subr.mxu0 0.0
  %76 = vmatpush1.msra.mxu0 0.0
  %77 = vmatprep.subr.mxu0 0.0
  %78 = vmatpush1.msra.mxu0 0.0
  %79 = vmatprep.subr.mxu0 0.0
  %80 = vmatpush1.msra.mxu0 0.0
  %81 = vmatprep.subr.mxu0 0.0
  %82 = vmatpush1.msra.mxu0 0.0
  %83 = vmatprep.subr.mxu0 0.0
  %84 = vmatpush1.msra.mxu0 0.0
  %85 = vmatprep.subr.mxu0 0.0
  %86 = vmatpush1.msra.mxu0 0.0
  %87 = vmatprep.subr.mxu0 0.0
  %88 = vmatpush1.msra.mxu0 0.0
  %89 = vmatprep.subr.mxu0 0.0
  %90 = vmatpush1.msra.mxu0 0.0
  %91 = vmatprep.subr.mxu0 0.0
  %92 = vmatpush1.msra.mxu0 0.0
  %93 = vmatprep.subr.mxu0 0.0
  %94 = vmatpush1.msra.mxu0 0.0
  %95 = vmatprep.subr.mxu0 0.0
  %96 = vmatpush1.msra.mxu0 0.0
  %97 = vmatprep.subr.mxu0 0.0
  %98 = vmatpush1.msra.mxu0 0.0
  %99 = vmatprep.mubr.f32.mxu0 0.0
  %100 = vmatmul.mubr.f32.gmra.mrb[0].mxu0 %v30
  %v101 = vpop.f32.mrb[0].mxu0
  %v102 = vadd.f32 %v26, %v101
  %v103 = vpop.f32.mrb[0].mxu0
  %104 = vmatprep.mubr.f32.mxu0 0.0
  %105 = vmatmul.mubr.f32.gmra.mrb[0].mxu0 %v33
  %v106 = vpop.f32.mrb[0].mxu0
  %v107 = vadd.f32 %v26, %v106
  %v108 = vpop.f32.mrb[0].mxu0
  %109 = vdwg.mxu0
  %v110 = vmax.f32 %v102, 0.0
  %v111 = vmax.f32 %v107, 0.0
  %vm112 = vcmask 130048
  %113 = vst.msk [vmem:[%s3] sm:$0xff] %vm112, %v110
  %114 = vst.msk [vmem:[%s3 + $0x8] sm:$0xff] %vm112, %v111
  // Predicated region
  $region14: #{unet1d_forward.16} parent=0 // pred_check
    _
  $region15: #{unet1d_forward.16} parent=0 // pred_check_branch
    %116 = sbr.rel (0) target = $region17
  $region16: #{unet1d_forward.16} parent=0 // pred_region
    _
  $region17: #{unet1d_forward.16} parent=0 // pred_fallthru
    _
  // Predicated region
  $region18: #{unet1d_forward.16} parent=0 // pred_check
    _
  $region19: #{unet1d_forward.16} parent=0 // pred_check_branch
    %118 = sbr.rel (0) target = $region21
  $region20: #{unet1d_forward.16} parent=0 // pred_region
    _
  $region21: #{unet1d_forward.16} parent=0 // pred_fallthru
    _

// kernel: unet1d_forward.13
$region0: #{unet1d_forward.13}
  #allocation0 [shape = 'u32[]', space=smem, size = 0x4, offset = 0x4, fixed_abs, tag = 'smem constant byte address 0x4 - core index']
  #allocation1 [shape = 'u32[144,128]{1,0:T(1,128)}', space=vmem, size = 0x12000, scoped, tag = 'internal scratch']
  %s0 = inlined_call_operand.vmem [shape: f32[8,16], index: 0, kind: input, shape index: {}]
  %s1 = inlined_call_operand.vmem [shape: f32[2,16,4], index: 1, kind: input, shape index: {}]
  %s2 = inlined_call_operand.vmem [shape: f32[2,8,4], index: 2, kind: output, shape index: {}]
  %s3 = sld [smem:[#allocation0]]
  $region41: #{unet1d_forward.13} parent=0
    _
  %s5 = ssub.s32 1, %s3
  %s6 = scalar_select 0, %s5, %s3
  loop: start=0, step=1, limit=4
  $region2: #{unet1d_forward.13} parent=0 // loop_pre_header
    _
  $region3: #{unet1d_forward.13} parent=0 // loop_header
    %s8 = sphi 0, %s12
    %p9 = scmp.ge.s32.totalorder %s8, 4
    %s16 = sphi 0, %s16
    %s18 = sphi 0, %s16
    %s19 = sphi 0, %s18
    %s33 = sphi 0, %s19
    %s39 = sphi 0, %s41
    %s42 = sphi 0, %s39
    %s43 = sphi 0, %s42
    %s59 = sphi 0, %s43
    %s65 = sphi 0, %s67
    %s68 = sphi 0, %s65
    %s69 = sphi 0, %s68
    %s85 = sphi 0, %s69
  $region4: #{unet1d_forward.13} parent=0 // loop_header_branch
    %11 = sbr.rel (%p9) target = $region8
  $region5: #{unet1d_forward.13} parent=0 // loop_body
    %s13 = ssub.s32 %s8, 1
    %s14 = ssub.s32 %s8, 2
    %s15 = sadd.s32 %s8, 1
    %s17 = sadd.s32 %s16, 1
    %p20 = scmp.eq.s32.totalorder %s8, 1
    %p21 = scmp.ne.s32.totalorder %s16, %s18
    %p22 = scmp.eq.s32.totalorder %s8, 0
    %p23 = por %p21, %p22
    %p24 = scmp.ne.s32.totalorder %s16, %s18
    %p25 = scmp.eq.s32.totalorder %s13, 1
    %p26 = por %p24, %p25
    %p27 = scmp.ne.s32.totalorder %s18, %s19
    %p28 = scmp.eq.s32.totalorder %s13, 0
    %p29 = por %p27, %p28
    %p30 = scmp.ne.s32.totalorder %s18, %s19
    %p31 = scmp.eq.s32.totalorder %s14, 1
    %p32 = por %p30, %p31
    %p34 = scmp.ne.s32.totalorder %s19, %s33
    %p35 = scmp.eq.s32.totalorder %s14, 0
    %p36 = por %p34, %p35
    %s37 = ssub.s32 %s8, %s15
    %p38 = scmp.eq.s32.totalorder %s37, 0
    %s40 = sadd.s32 %s39, 1
    %s41 = scalar_select %p38, %s39, %s40
    %p44 = pneg %p38
    %p45 = scmp.eq.s32.totalorder %s8, 1
    %p46 = por %p44, %p45
    %p47 = scmp.ne.s32.totalorder %s39, %s42
    %p48 = scmp.eq.s32.totalorder %s8, 0
    %p49 = por %p47, %p48
    %p50 = scmp.ne.s32.totalorder %s39, %s42
    %p51 = scmp.eq.s32.totalorder %s13, 1
    %p52 = por %p50, %p51
    %p53 = scmp.ne.s32.totalorder %s42, %s43
    %p54 = scmp.eq.s32.totalorder %s13, 0
    %p55 = por %p53, %p54
    %p56 = scmp.ne.s32.totalorder %s42, %s43
    %p57 = scmp.eq.s32.totalorder %s14, 1
    %p58 = por %p56, %p57
    %p60 = scmp.ne.s32.totalorder %s43, %s59
    %p61 = scmp.eq.s32.totalorder %s14, 0
    %p62 = por %p60, %p61
    %s63 = ssub.s32 %s8, %s15
    %p64 = scmp.eq.s32.totalorder %s63, 0
    %s66 = sadd.s32 %s65, 1
    %s67 = scalar_select %p64, %s65, %s66
    %p70 = pneg %p64
    %p71 = scmp.eq.s32.totalorder %s8, 1
    %p72 = por %p70, %p71
    %p73 = scmp.ne.s32.totalorder %s65, %s68
    %p74 = scmp.eq.s32.totalorder %s8, 0
    %p75 = por %p73, %p74
    %p76 = scmp.ne.s32.totalorder %s65, %s68
    %p77 = scmp.eq.s32.totalorder %s13, 1
    %p78 = por %p76, %p77
    %p79 = scmp.ne.s32.totalorder %s68, %s69
    %p80 = scmp.eq.s32.totalorder %s13, 0
    %p81 = por %p79, %p80
    %p82 = scmp.ne.s32.totalorder %s68, %s69
    %p83 = scmp.eq.s32.totalorder %s14, 1
    %p84 = por %p82, %p83
    %p86 = scmp.ne.s32.totalorder %s69, %s85
    %p87 = scmp.eq.s32.totalorder %s14, 0
    %p88 = por %p86, %p87
    %p89 = scmp.le.s32.totalorder 1, %s8
    %p90 = scmp.lt.s32.totalorder %s8, 3
    %p91 = pnand %p89, %p90
    %p92 = pneg %p91
    // Predicated region
    $region9: #{unet1d_forward.13} parent=5 // pred_check
      _
    $region10: #{unet1d_forward.13} parent=5 // pred_check_branch
      %94 = sbr.rel (%p91) target = $region12
    $region11: #{unet1d_forward.13} parent=5 // pred_region
      %s95 = ssub.s32 %s8, 1
      // Predicated region
      $region13: #{unet1d_forward.13} parent=11 // pred_check
        %p96 = pneg %p29
      $region14: #{unet1d_forward.13} parent=11 // pred_check_branch
        %98 = sbr.rel (%p96) target = $region16
      $region15: #{unet1d_forward.13} parent=11 // pred_region
        _
      $region16: #{unet1d_forward.13} parent=11 // pred_fallthru
        _
    $region12: #{unet1d_forward.13} parent=5 // pred_fallthru
      _
    %p99 = scmp.lt.s32.totalorder %s8, 2
    // Predicated region
    $region17: #{unet1d_forward.13} parent=5 // pred_check
      %p100 = pneg %p99
    $region18: #{unet1d_forward.13} parent=5 // pred_check_branch
      %102 = sbr.rel (%p100) target = $region20
    $region19: #{unet1d_forward.13} parent=5 // pred_region
      // Predicated region
      $region21: #{unet1d_forward.13} parent=19 // pred_check
        %p103 = pneg %p49
      $region22: #{unet1d_forward.13} parent=19 // pred_check_branch
        %105 = sbr.rel (%p103) target = $region24
      $region23: #{unet1d_forward.13} parent=19 // pred_region
        %p106 = scmp.lt.s32.totalorder %s8, 1
        %s107 = scalar_select %p106, %s8, 1
        %s108 = smul.addr %s107, 2
        %s109 = smul.addr %s108, 8
        %s110 = scalar_lea.vmem %s1, %s109
      $region24: #{unet1d_forward.13} parent=19 // pred_fallthru
        _
    $region20: #{unet1d_forward.13} parent=5 // pred_fallthru
      _
    %p111 = scmp.le.s32.totalorder 1, %s8
    %p112 = scmp.lt.s32.totalorder %s8, 3
    %p113 = pnand %p111, %p112
    %p114 = pneg %p113
    // Predicated region
    $region25: #{unet1d_forward.13} parent=5 // pred_check
      _
    $region26: #{unet1d_forward.13} parent=5 // pred_check_branch
      %116 = sbr.rel (%p113) target = $region28
    $region27: #{unet1d_forward.13} parent=5 // pred_region
      %s117 = ssub.s32 %s8, 1
      %p118 = pneg %p29
      %p119 = pneg %p26
      %p120 = scmp.lt.s32.totalorder %s13, 1
      %s121 = scalar_select %p120, %s13, 1
      %s122 = smul.addr %s121, 2
      %s123 = smul.addr %s122, 8
      %s124 = scalar_lea.vmem %s1, %s123
      %p125 = pneg %p55
      %p126 = pneg %p52
      %p127 = pneg %p81
      %p128 = pneg %p78
      %p129 = scmp.lt.s32.totalorder %s13, 1
      %s130 = scalar_select %p129, %s13, 1
      %s131 = smul.addr %s130, 8
      %s132 = scalar_lea.vmem %s2, %s131
      %p133 = scmp.lt.s32.totalorder %s13, 1
      %s134 = scalar_select %p133, %s13, 1
      %s135 = smul.addr %s134, 2
      %s136 = smul.addr %s135, 8
      %s137 = scalar_lea.vmem %s1, %s136
      %p138 = scmp.lt.s32.totalorder %s13, 1
      %s139 = scalar_select %p138, %s13, 1
      %s140 = smul.addr %s139, 8
      %s141 = scalar_lea.vmem %s2, %s140
      %v142 = vld [vmem:[%s0] sm:$0xff]
      %v143 = vld [vmem:[%s137] sm:$0xff]
      %v144 = vld [vmem:[%s137 + $0x8] sm:$0xff]
      %vm145 = vcmask 130048
      %v147 = vsel %vm145, %v142, 0
      %149 = vmatprep.subr.mxu0 0.0
      %150 = vmatpush1.msra.mxu0 %v143
      %151 = vmatprep.subr.mxu0 0.0
      %152 = vmatpush1.msra.mxu0 %v144
      %153 = vmatprep.subr.mxu0 0.0
      %154 = vmatpush1.msra.mxu0 0.0
      %155 = vmatprep.subr.mxu0 0.0
      %156 = vmatpush1.msra.mxu0 0.0
      %157 = vmatprep.subr.mxu0 0.0
      %158 = vmatpush1.msra.mxu0 0.0
      %159 = vmatprep.subr.mxu0 0.0
      %160 = vmatpush1.msra.mxu0 0.0
      %161 = vmatprep.subr.mxu0 0.0
      %162 = vmatpush1.msra.mxu0 0.0
      %163 = vmatprep.subr.mxu0 0.0
      %164 = vmatpush1.msra.mxu0 0.0
      %165 = vmatprep.subr.mxu0 0.0
      %166 = vmatpush1.msra.mxu0 0.0
      %167 = vmatprep.subr.mxu0 0.0
      %168 = vmatpush1.msra.mxu0 0.0
      %169 = vmatprep.subr.mxu0 0.0
      %170 = vmatpush1.msra.mxu0 0.0
      %171 = vmatprep.subr.mxu0 0.0
      %172 = vmatpush1.msra.mxu0 0.0
      %173 = vmatprep.subr.mxu0 0.0
      %174 = vmatpush1.msra.mxu0 0.0
      %175 = vmatprep.subr.mxu0 0.0
      %176 = vmatpush1.msra.mxu0 0.0
      %177 = vmatprep.subr.mxu0 0.0
      %178 = vmatpush1.msra.mxu0 0.0
      %179 = vmatprep.subr.mxu0 0.0
      %180 = vmatpush1.msra.mxu0 0.0
      %181 = vmatprep.subr.mxu0 0.0
      %182 = vmatpush1.msra.mxu0 0.0
      %183 = vmatprep.subr.mxu0 0.0
      %184 = vmatpush1.msra.mxu0 0.0
      %185 = vmatprep.subr.mxu0 0.0
      %186 = vmatpush1.msra.mxu0 0.0
      %187 = vmatprep.subr.mxu0 0.0
      %188 = vmatpush1.msra.mxu0 0.0
      %189 = vmatprep.subr.mxu0 0.0
      %190 = vmatpush1.msra.mxu0 0.0
      %191 = vmatprep.subr.mxu0 0.0
      %192 = vmatpush1.msra.mxu0 0.0
      %193 = vmatprep.subr.mxu0 0.0
      %194 = vmatpush1.msra.mxu0 0.0
      %195 = vmatprep.subr.mxu0 0.0
      %196 = vmatpush1.msra.mxu0 0.0
      %197 = vmatprep.subr.mxu0 0.0
      %198 = vmatpush1.msra.mxu0 0.0
      %199 = vmatprep.subr.mxu0 0.0
      %200 = vmatpush1.msra.mxu0 0.0
      %201 = vmatprep.subr.mxu0 0.0
      %202 = vmatpush1.msra.mxu0 0.0
      %203 = vmatprep.subr.mxu0 0.0
      %204 = vmatpush1.msra.mxu0 0.0
      %205 = vmatprep.subr.mxu0 0.0
      %206 = vmatpush1.msra.mxu0 0.0
      %207 = vmatprep.subr.mxu0 0.0
      %208 = vmatpush1.msra.mxu0 0.0
      %209 = vmatprep.subr.mxu0 0.0
      %210 = vmatpush1.msra.mxu0 0.0
      %211 = vmatprep.subr.mxu0 0.0
      %212 = vmatpush1.msra.mxu0 0.0
      %213 = vmatprep.mubr.f32.mxu0 0.0
      %214 = vmatmul.mubr.f32.gmra.mrb[0].mxu0 %v147
      %v215 = vpop.f32.mrb[0].mxu0
      %v216 = vadd.f32 0.0, %v215
      %v217 = vpop.f32.mrb[0].mxu0
      %218 = vdwg.mxu0
      %vm219 = vcmask 31744
      %220 = vst.msk [vmem:[%s141] sm:$0xff] %vm219, %v216
      %p221 = scmp.lt.s32.totalorder %s13, 1
      %s222 = scalar_select %p221, %s13, 1
      %s223 = smul.addr %s222, 8
      %s224 = scalar_lea.vmem %s2, %s223
      // Predicated region
      $region29: #{unet1d_forward.13} parent=27 // pred_check
        %p225 = pneg %p78
      $region30: #{unet1d_forward.13} parent=27 // pred_check_branch
        %227 = sbr.rel (%p225) target = $region32
      $region31: #{unet1d_forward.13} parent=27 // pred_region
        _
      $region32: #{unet1d_forward.13} parent=27 // pred_fallthru
        _
    $region28: #{unet1d_forward.13} parent=5 // pred_fallthru
      _
    %p228 = scmp.le.s32.totalorder 2, %s8
    // Predicated region
    $region33: #{unet1d_forward.13} parent=5 // pred_check
      %p229 = pneg %p228
    $region34: #{unet1d_forward.13} parent=5 // pred_check_branch
      %231 = sbr.rel (%p229) target = $region36
    $region35: #{unet1d_forward.13} parent=5 // pred_region
      %s232 = ssub.s32 %s8, 2
      // Predicated region
      $region37: #{unet1d_forward.13} parent=35 // pred_check
        %p233 = pneg %p84
      $region38: #{unet1d_forward.13} parent=35 // pred_check_branch
        %235 = sbr.rel (%p233) target = $region40
      $region39: #{unet1d_forward.13} parent=35 // pred_region
        %p236 = scmp.lt.s32.totalorder %s14, 1
        %s237 = scalar_select %p236, %s14, 1
        %s238 = smul.addr %s237, 8
        %s239 = scalar_lea.vmem %s2, %s238
      $region40: #{unet1d_forward.13} parent=35 // pred_fallthru
        _
    $region36: #{unet1d_forward.13} parent=5 // pred_fallthru
      _
  $region6: #{unet1d_forward.13} parent=0 // loop_footer
    %s12 = sadd.s32 1, %s8
  $region7: #{unet1d_forward.13} parent=0 // loop_footer_branch
    %7 = sbr.rel target = $region3
  $region8: #{unet1d_forward.13} parent=0 // loop_exit
    _

// kernel: unet1d_forward.14
$region0: #{unet1d_forward.14}
  #allocation0 [shape = 'u32[]', space=smem, size = 0x4, offset = 0x4, fixed_abs, tag = 'smem constant byte address 0x4 - core index']
  #allocation1 [shape = 'u32[144,128]{1,0:T(1,128)}', space=vmem, size = 0x12000, scoped, tag = 'internal scratch']
  %s0 = inlined_call_operand.vmem [shape: f32[4,16], index: 0, kind: input, shape index: {}]
  %s1 = inlined_call_operand.vmem [shape: f32[2,16,4], index: 1, kind: input, shape index: {}]
  %s2 = inlined_call_operand.vmem [shape: f32[2,4,4], index: 2, kind: output, shape index: {}]
  %s3 = sld [smem:[#allocation0]]
  $region41: #{unet1d_forward.14} parent=0
    _
  %s5 = ssub.s32 1, %s3
  %s6 = scalar_select 0, %s5, %s3
  loop: start=0, step=1, limit=4
  $region2: #{unet1d_forward.14} parent=0 // loop_pre_header
    _
  $region3: #{unet1d_forward.14} parent=0 // loop_header
    %s8 = sphi 0, %s12
    %p9 = scmp.ge.s32.totalorder %s8, 4
    %s16 = sphi 0, %s16
    %s18 = sphi 0, %s16
    %s19 = sphi 0, %s18
    %s33 = sphi 0, %s19
    %s39 = sphi 0, %s41
    %s42 = sphi 0, %s39
    %s43 = sphi 0, %s42
    %s59 = sphi 0, %s43
    %s65 = sphi 0, %s67
    %s68 = sphi 0, %s65
    %s69 = sphi 0, %s68
    %s85 = sphi 0, %s69
  $region4: #{unet1d_forward.14} parent=0 // loop_header_branch
    %11 = sbr.rel (%p9) target = $region8
  $region5: #{unet1d_forward.14} parent=0 // loop_body
    %s13 = ssub.s32 %s8, 1
    %s14 = ssub.s32 %s8, 2
    %s15 = sadd.s32 %s8, 1
    %s17 = sadd.s32 %s16, 1
    %p20 = scmp.eq.s32.totalorder %s8, 1
    %p21 = scmp.ne.s32.totalorder %s16, %s18
    %p22 = scmp.eq.s32.totalorder %s8, 0
    %p23 = por %p21, %p22
    %p24 = scmp.ne.s32.totalorder %s16, %s18
    %p25 = scmp.eq.s32.totalorder %s13, 1
    %p26 = por %p24, %p25
    %p27 = scmp.ne.s32.totalorder %s18, %s19
    %p28 = scmp.eq.s32.totalorder %s13, 0
    %p29 = por %p27, %p28
    %p30 = scmp.ne.s32.totalorder %s18, %s19
    %p31 = scmp.eq.s32.totalorder %s14, 1
    %p32 = por %p30, %p31
    %p34 = scmp.ne.s32.totalorder %s19, %s33
    %p35 = scmp.eq.s32.totalorder %s14, 0
    %p36 = por %p34, %p35
    %s37 = ssub.s32 %s8, %s15
    %p38 = scmp.eq.s32.totalorder %s37, 0
    %s40 = sadd.s32 %s39, 1
    %s41 = scalar_select %p38, %s39, %s40
    %p44 = pneg %p38
    %p45 = scmp.eq.s32.totalorder %s8, 1
    %p46 = por %p44, %p45
    %p47 = scmp.ne.s32.totalorder %s39, %s42
    %p48 = scmp.eq.s32.totalorder %s8, 0
    %p49 = por %p47, %p48
    %p50 = scmp.ne.s32.totalorder %s39, %s42
    %p51 = scmp.eq.s32.totalorder %s13, 1
    %p52 = por %p50, %p51
    %p53 = scmp.ne.s32.totalorder %s42, %s43
    %p54 = scmp.eq.s32.totalorder %s13, 0
    %p55 = por %p53, %p54
    %p56 = scmp.ne.s32.totalorder %s42, %s43
    %p57 = scmp.eq.s32.totalorder %s14, 1
    %p58 = por %p56, %p57
    %p60 = scmp.ne.s32.totalorder %s43, %s59
    %p61 = scmp.eq.s32.totalorder %s14, 0
    %p62 = por %p60, %p61
    %s63 = ssub.s32 %s8, %s15
    %p64 = scmp.eq.s32.totalorder %s63, 0
    %s66 = sadd.s32 %s65, 1
    %s67 = scalar_select %p64, %s65, %s66
    %p70 = pneg %p64
    %p71 = scmp.eq.s32.totalorder %s8, 1
    %p72 = por %p70, %p71
    %p73 = scmp.ne.s32.totalorder %s65, %s68
    %p74 = scmp.eq.s32.totalorder %s8, 0
    %p75 = por %p73, %p74
    %p76 = scmp.ne.s32.totalorder %s65, %s68
    %p77 = scmp.eq.s32.totalorder %s13, 1
    %p78 = por %p76, %p77
    %p79 = scmp.ne.s32.totalorder %s68, %s69
    %p80 = scmp.eq.s32.totalorder %s13, 0
    %p81 = por %p79, %p80
    %p82 = scmp.ne.s32.totalorder %s68, %s69
    %p83 = scmp.eq.s32.totalorder %s14, 1
    %p84 = por %p82, %p83
    %p86 = scmp.ne.s32.totalorder %s69, %s85
    %p87 = scmp.eq.s32.totalorder %s14, 0
    %p88 = por %p86, %p87
    %p89 = scmp.le.s32.totalorder 1, %s8
    %p90 = scmp.lt.s32.totalorder %s8, 3
    %p91 = pnand %p89, %p90
    %p92 = pneg %p91
    // Predicated region
    $region9: #{unet1d_forward.14} parent=5 // pred_check
      _
    $region10: #{unet1d_forward.14} parent=5 // pred_check_branch
      %94 = sbr.rel (%p91) target = $region12
    $region11: #{unet1d_forward.14} parent=5 // pred_region
      %s95 = ssub.s32 %s8, 1
      // Predicated region
      $region13: #{unet1d_forward.14} parent=11 // pred_check
        %p96 = pneg %p29
      $region14: #{unet1d_forward.14} parent=11 // pred_check_branch
        %98 = sbr.rel (%p96) target = $region16
      $region15: #{unet1d_forward.14} parent=11 // pred_region
        _
      $region16: #{unet1d_forward.14} parent=11 // pred_fallthru
        _
    $region12: #{unet1d_forward.14} parent=5 // pred_fallthru
      _
    %p99 = scmp.lt.s32.totalorder %s8, 2
    // Predicated region
    $region17: #{unet1d_forward.14} parent=5 // pred_check
      %p100 = pneg %p99
    $region18: #{unet1d_forward.14} parent=5 // pred_check_branch
      %102 = sbr.rel (%p100) target = $region20
    $region19: #{unet1d_forward.14} parent=5 // pred_region
      // Predicated region
      $region21: #{unet1d_forward.14} parent=19 // pred_check
        %p103 = pneg %p49
      $region22: #{unet1d_forward.14} parent=19 // pred_check_branch
        %105 = sbr.rel (%p103) target = $region24
      $region23: #{unet1d_forward.14} parent=19 // pred_region
        %p106 = scmp.lt.s32.totalorder %s8, 1
        %s107 = scalar_select %p106, %s8, 1
        %s108 = smul.addr %s107, 2
        %s109 = smul.addr %s108, 8
        %s110 = scalar_lea.vmem %s1, %s109
      $region24: #{unet1d_forward.14} parent=19 // pred_fallthru
        _
    $region20: #{unet1d_forward.14} parent=5 // pred_fallthru
      _
    %p111 = scmp.le.s32.totalorder 1, %s8
    %p112 = scmp.lt.s32.totalorder %s8, 3
    %p113 = pnand %p111, %p112
    %p114 = pneg %p113
    // Predicated region
    $region25: #{unet1d_forward.14} parent=5 // pred_check
      _
    $region26: #{unet1d_forward.14} parent=5 // pred_check_branch
      %116 = sbr.rel (%p113) target = $region28
    $region27: #{unet1d_forward.14} parent=5 // pred_region
      %s117 = ssub.s32 %s8, 1
      %p118 = pneg %p29
      %p119 = pneg %p26
      %p120 = scmp.lt.s32.totalorder %s13, 1
      %s121 = scalar_select %p120, %s13, 1
      %s122 = smul.addr %s121, 2
      %s123 = smul.addr %s122, 8
      %s124 = scalar_lea.vmem %s1, %s123
      %p125 = pneg %p55
      %p126 = pneg %p52
      %p127 = pneg %p81
      %p128 = pneg %p78
      %p129 = scmp.lt.s32.totalorder %s13, 1
      %s130 = scalar_select %p129, %s13, 1
      %s131 = smul.addr %s130, 4
      %s132 = scalar_lea.vmem %s2, %s131
      %p133 = scmp.lt.s32.totalorder %s13, 1
      %s134 = scalar_select %p133, %s13, 1
      %s135 = smul.addr %s134, 2
      %s136 = smul.addr %s135, 8
      %s137 = scalar_lea.vmem %s1, %s136
      %p138 = scmp.lt.s32.totalorder %s13, 1
      %s139 = scalar_select %p138, %s13, 1
      %s140 = smul.addr %s139, 4
      %s141 = scalar_lea.vmem %s2, %s140
      %v142 = vld [vmem:[%s0] sm:$0xf]
      %v143 = vld [vmem:[%s137] sm:$0xff]
      %v144 = vld [vmem:[%s137 + $0x8] sm:$0xff]
      %vm145 = vcmask 130048
      %v147 = vsel %vm145, %v142, 0
      %149 = vmatprep.subr.mxu0 0.0
      %150 = vmatpush1.msra.mxu0 %v143
      %151 = vmatprep.subr.mxu0 0.0
      %152 = vmatpush1.msra.mxu0 %v144
      %153 = vmatprep.subr.mxu0 0.0
      %154 = vmatpush1.msra.mxu0 0.0
      %155 = vmatprep.subr.mxu0 0.0
      %156 = vmatpush1.msra.mxu0 0.0
      %157 = vmatprep.subr.mxu0 0.0
      %158 = vmatpush1.msra.mxu0 0.0
      %159 = vmatprep.subr.mxu0 0.0
      %160 = vmatpush1.msra.mxu0 0.0
      %161 = vmatprep.subr.mxu0 0.0
      %162 = vmatpush1.msra.mxu0 0.0
      %163 = vmatprep.subr.mxu0 0.0
      %164 = vmatpush1.msra.mxu0 0.0
      %165 = vmatprep.subr.mxu0 0.0
      %166 = vmatpush1.msra.mxu0 0.0
      %167 = vmatprep.subr.mxu0 0.0
      %168 = vmatpush1.msra.mxu0 0.0
      %169 = vmatprep.subr.mxu0 0.0
      %170 = vmatpush1.msra.mxu0 0.0
      %171 = vmatprep.subr.mxu0 0.0
      %172 = vmatpush1.msra.mxu0 0.0
      %173 = vmatprep.subr.mxu0 0.0
      %174 = vmatpush1.msra.mxu0 0.0
      %175 = vmatprep.subr.mxu0 0.0
      %176 = vmatpush1.msra.mxu0 0.0
      %177 = vmatprep.subr.mxu0 0.0
      %178 = vmatpush1.msra.mxu0 0.0
      %179 = vmatprep.subr.mxu0 0.0
      %180 = vmatpush1.msra.mxu0 0.0
      %181 = vmatprep.subr.mxu0 0.0
      %182 = vmatpush1.msra.mxu0 0.0
      %183 = vmatprep.subr.mxu0 0.0
      %184 = vmatpush1.msra.mxu0 0.0
      %185 = vmatprep.subr.mxu0 0.0
      %186 = vmatpush1.msra.mxu0 0.0
      %187 = vmatprep.subr.mxu0 0.0
      %188 = vmatpush1.msra.mxu0 0.0
      %189 = vmatprep.subr.mxu0 0.0
      %190 = vmatpush1.msra.mxu0 0.0
      %191 = vmatprep.subr.mxu0 0.0
      %192 = vmatpush1.msra.mxu0 0.0
      %193 = vmatprep.subr.mxu0 0.0
      %194 = vmatpush1.msra.mxu0 0.0
      %195 = vmatprep.subr.mxu0 0.0
      %196 = vmatpush1.msra.mxu0 0.0
      %197 = vmatprep.subr.mxu0 0.0
      %198 = vmatpush1.msra.mxu0 0.0
      %199 = vmatprep.subr.mxu0 0.0
      %200 = vmatpush1.msra.mxu0 0.0
      %201 = vmatprep.subr.mxu0 0.0
      %202 = vmatpush1.msra.mxu0 0.0
      %203 = vmatprep.subr.mxu0 0.0
      %204 = vmatpush1.msra.mxu0 0.0
      %205 = vmatprep.subr.mxu0 0.0
      %206 = vmatpush1.msra.mxu0 0.0
      %207 = vmatprep.subr.mxu0 0.0
      %208 = vmatpush1.msra.mxu0 0.0
      %209 = vmatprep.subr.mxu0 0.0
      %210 = vmatpush1.msra.mxu0 0.0
      %211 = vmatprep.subr.mxu0 0.0
      %212 = vmatpush1.msra.mxu0 0.0
      %213 = vmatprep.mubr.f32.mxu0 0.0
      %214 = vmatmul.mubr.f32.gmra.mrb[0].mxu0 %v147
      %v215 = vpop.f32.mrb[0].mxu0
      %v216 = vadd.f32 0.0, %v215
      %v217 = vpop.f32.mrb[0].mxu0
      %218 = vdwg.mxu0
      %vm219 = vcmask 27648
      %220 = vst.msk [vmem:[%s141] sm:$0xf] %vm219, %v216
      %p221 = scmp.lt.s32.totalorder %s13, 1
      %s222 = scalar_select %p221, %s13, 1
      %s223 = smul.addr %s222, 4
      %s224 = scalar_lea.vmem %s2, %s223
      // Predicated region
      $region29: #{unet1d_forward.14} parent=27 // pred_check
        %p225 = pneg %p78
      $region30: #{unet1d_forward.14} parent=27 // pred_check_branch
        %227 = sbr.rel (%p225) target = $region32
      $region31: #{unet1d_forward.14} parent=27 // pred_region
        _
      $region32: #{unet1d_forward.14} parent=27 // pred_fallthru
        _
    $region28: #{unet1d_forward.14} parent=5 // pred_fallthru
      _
    %p228 = scmp.le.s32.totalorder 2, %s8
    // Predicated region
    $region33: #{unet1d_forward.14} parent=5 // pred_check
      %p229 = pneg %p228
    $region34: #{unet1d_forward.14} parent=5 // pred_check_branch
      %231 = sbr.rel (%p229) target = $region36
    $region35: #{unet1d_forward.14} parent=5 // pred_region
      %s232 = ssub.s32 %s8, 2
      // Predicated region
      $region37: #{unet1d_forward.14} parent=35 // pred_check
        %p233 = pneg %p84
      $region38: #{unet1d_forward.14} parent=35 // pred_check_branch
        %235 = sbr.rel (%p233) target = $region40
      $region39: #{unet1d_forward.14} parent=35 // pred_region
        %p236 = scmp.lt.s32.totalorder %s14, 1
        %s237 = scalar_select %p236, %s14, 1
        %s238 = smul.addr %s237, 4
        %s239 = scalar_lea.vmem %s2, %s238
      $region40: #{unet1d_forward.14} parent=35 // pred_fallthru
        _
    $region36: #{unet1d_forward.14} parent=5 // pred_fallthru
      _
  $region6: #{unet1d_forward.14} parent=0 // loop_footer
    %s12 = sadd.s32 1, %s8
  $region7: #{unet1d_forward.14} parent=0 // loop_footer_branch
    %7 = sbr.rel target = $region3
  $region8: #{unet1d_forward.14} parent=0 // loop_exit
    _

// kernel: unet1d_forward.17
$region0: #{unet1d_forward.17}
  #allocation0 [shape = 'u32[]', space=smem, size = 0x4, offset = 0x4, fixed_abs, tag = 'smem constant byte address 0x4 - core index']
  #allocation1 [shape = 'u32[144,128]{1,0:T(1,128)}', space=vmem, size = 0x12000, scoped, tag = 'internal scratch']
  %s0 = inlined_call_operand.vmem [shape: f32[8,100], index: 0, kind: input, shape index: {}]
  %s1 = inlined_call_operand.vmem [shape: f32[100,24], index: 1, kind: input, shape index: {}]
  %s2 = inlined_call_operand.vmem [shape: f32[1,24], index: 2, kind: input, shape index: {}]
  %s3 = inlined_call_operand.vmem [shape: f32[8,24], index: 3, kind: output, shape index: {}]
  %s4 = sld [smem:[#allocation0]]
  $region22: #{unet1d_forward.17} parent=0
    _
  %s6 = ssub.s32 1, %s4
  %s7 = scalar_select 0, %s6, %s4
  // Predicated region
  $region2: #{unet1d_forward.17} parent=0 // pred_check
    _
  $region3: #{unet1d_forward.17} parent=0 // pred_check_branch
    %9 = sbr.rel (0) target = $region5
  $region4: #{unet1d_forward.17} parent=0 // pred_region
    _
  $region5: #{unet1d_forward.17} parent=0 // pred_fallthru
    _
  // Predicated region
  $region6: #{unet1d_forward.17} parent=0 // pred_check
    _
  $region7: #{unet1d_forward.17} parent=0 // pred_check_branch
    %11 = sbr.rel (0) target = $region9
  $region8: #{unet1d_forward.17} parent=0 // pred_region
    _
  $region9: #{unet1d_forward.17} parent=0 // pred_fallthru
    _
  // Predicated region
  $region10: #{unet1d_forward.17} parent=0 // pred_check
    _
  $region11: #{unet1d_forward.17} parent=0 // pred_check_branch
    %13 = sbr.rel (0) target = $region13
  $region12: #{unet1d_forward.17} parent=0 // pred_region
    _
  $region13: #{unet1d_forward.17} parent=0 // pred_fallthru
    _
  %v14 = vld [vmem:[%s0] sm:$0xff]
  %v15 = vld [vmem:[%s1] sm:$0xff]
  %v16 = vld [vmem:[%s1 + $0x8] sm:$0xff]
  %v17 = vld [vmem:[%s1 + $0x10] sm:$0xff]
  %v18 = vld [vmem:[%s1 + $0x18] sm:$0xff]
  %v19 = vld [vmem:[%s1 + $0x20] sm:$0xff]
  %v20 = vld [vmem:[%s1 + $0x28] sm:$0xff]
  %v21 = vld [vmem:[%s1 + $0x30] sm:$0xff]
  %v22 = vld [vmem:[%s1 + $0x38] sm:$0xff]
  %v23 = vld [vmem:[%s1 + $0x40] sm:$0xff]
  %v24 = vld [vmem:[%s1 + $0x48] sm:$0xff]
  %v25 = vld [vmem:[%s1 + $0x50] sm:$0xff]
  %v26 = vld [vmem:[%s1 + $0x58] sm:$0xff]
  %v27 = vld [vmem:[%s1 + $0x60] sm:$0xf]
  %v28 = vld [vmem:[%s2] sm:$0x1]
  %v30 = vlaneseq
  %v31 = vshrl.u32 %v30, 7
  %v32 = vsub.s32 0, %v31
  %v33 = vrot.slane %v28, %v32
  %vm35 = vcmask 818176
  %v37 = vsel %vm35, %v14, 0
  %vm39 = vcmask 1043456
  %v41 = vsel %vm39, %v27, 0
  %43 = vmatprep.subr.mxu0 0.0
  %44 = vmatpush1.msra.mxu0 %v15
  %45 = vmatprep.subr.mxu0 0.0
  %46 = vmatpush1.msra.mxu0 %v16
  %47 = vmatprep.subr.mxu0 0.0
  %48 = vmatpush1.msra.mxu0 %v17
  %49 = vmatprep.subr.mxu0 0.0
  %50 = vmatpush1.msra.mxu0 %v18
  %51 = vmatprep.subr.mxu0 0.0
  %52 = vmatpush1.msra.mxu0 %v19
  %53 = vmatprep.subr.mxu0 0.0
  %54 = vmatpush1.msra.mxu0 %v20
  %55 = vmatprep.subr.mxu0 0.0
  %56 = vmatpush1.msra.mxu0 %v21
  %57 = vmatprep.subr.mxu0 0.0
  %58 = vmatpush1.msra.mxu0 %v22
  %59 = vmatprep.subr.mxu0 0.0
  %60 = vmatpush1.msra.mxu0 %v23
  %61 = vmatprep.subr.mxu0 0.0
  %62 = vmatpush1.msra.mxu0 %v24
  %63 = vmatprep.subr.mxu0 0.0
  %64 = vmatpush1.msra.mxu0 %v25
  %65 = vmatprep.subr.mxu0 0.0
  %66 = vmatpush1.msra.mxu0 %v26
  %67 = vmatprep.subr.mxu0 0.0
  %68 = vmatpush1.msra.mxu0 %v41
  %69 = vmatprep.subr.mxu0 0.0
  %70 = vmatpush1.msra.mxu0 0.0
  %71 = vmatprep.subr.mxu0 0.0
  %72 = vmatpush1.msra.mxu0 0.0
  %73 = vmatprep.subr.mxu0 0.0
  %74 = vmatpush1.msra.mxu0 0.0
  %75 = vmatprep.subr.mxu0 0.0
  %76 = vmatpush1.msra.mxu0 0.0
  %77 = vmatprep.subr.mxu0 0.0
  %78 = vmatpush1.msra.mxu0 0.0
  %79 = vmatprep.subr.mxu0 0.0
  %80 = vmatpush1.msra.mxu0 0.0
  %81 = vmatprep.subr.mxu0 0.0
  %82 = vmatpush1.msra.mxu0 0.0
  %83 = vmatprep.subr.mxu0 0.0
  %84 = vmatpush1.msra.mxu0 0.0
  %85 = vmatprep.subr.mxu0 0.0
  %86 = vmatpush1.msra.mxu0 0.0
  %87 = vmatprep.subr.mxu0 0.0
  %88 = vmatpush1.msra.mxu0 0.0
  %89 = vmatprep.subr.mxu0 0.0
  %90 = vmatpush1.msra.mxu0 0.0
  %91 = vmatprep.subr.mxu0 0.0
  %92 = vmatpush1.msra.mxu0 0.0
  %93 = vmatprep.subr.mxu0 0.0
  %94 = vmatpush1.msra.mxu0 0.0
  %95 = vmatprep.subr.mxu0 0.0
  %96 = vmatpush1.msra.mxu0 0.0
  %97 = vmatprep.subr.mxu0 0.0
  %98 = vmatpush1.msra.mxu0 0.0
  %99 = vmatprep.subr.mxu0 0.0
  %100 = vmatpush1.msra.mxu0 0.0
  %101 = vmatprep.subr.mxu0 0.0
  %102 = vmatpush1.msra.mxu0 0.0
  %103 = vmatprep.subr.mxu0 0.0
  %104 = vmatpush1.msra.mxu0 0.0
  %105 = vmatprep.subr.mxu0 0.0
  %106 = vmatpush1.msra.mxu0 0.0
  %107 = vmatprep.mubr.f32.mxu0 0.0
  %108 = vmatmul.mubr.f32.gmra.mrb[0].mxu0 %v37
  %v109 = vpop.f32.mrb[0].mxu0
  %v110 = vadd.f32 %v33, %v109
  %v111 = vpop.f32.mrb[0].mxu0
  %112 = vdwg.mxu0
  %v113 = vmax.f32 %v110, 0.0
  %vm114 = vcmask 195584
  %115 = vst.msk [vmem:[%s3] sm:$0xff] %vm114, %v113
  // Predicated region
  $region14: #{unet1d_forward.17} parent=0 // pred_check
    _
  $region15: #{unet1d_forward.17} parent=0 // pred_check_branch
    %117 = sbr.rel (0) target = $region17
  $region16: #{unet1d_forward.17} parent=0 // pred_region
    _
  $region17: #{unet1d_forward.17} parent=0 // pred_fallthru
    _
  // Predicated region
  $region18: #{unet1d_forward.17} parent=0 // pred_check
    _
  $region19: #{unet1d_forward.17} parent=0 // pred_check_branch
    %119 = sbr.rel (0) target = $region21
  $region20: #{unet1d_forward.17} parent=0 // pred_region
    _
  $region21: #{unet1d_forward.17} parent=0 // pred_fallthru
    _

// kernel: unet1d_forward.18
$region0: #{unet1d_forward.18}
  #allocation0 [shape = 'u32[]', space=smem, size = 0x4, offset = 0x4, fixed_abs, tag = 'smem constant byte address 0x4 - core index']
  #allocation1 [shape = 'u32[144,128]{1,0:T(1,128)}', space=vmem, size = 0x12000, scoped, tag = 'internal scratch']
  %s0 = inlined_call_operand.vmem [shape: f32[8,140], index: 0, kind: input, shape index: {}]
  %s1 = inlined_call_operand.vmem [shape: f32[140,32], index: 1, kind: input, shape index: {}]
  %s2 = inlined_call_operand.vmem [shape: f32[1,32], index: 2, kind: input, shape index: {}]
  %s3 = inlined_call_operand.vmem [shape: f32[8,32], index: 3, kind: output, shape index: {}]
  %s4 = sld [smem:[#allocation0]]
  $region22: #{unet1d_forward.18} parent=0
    _
  %s6 = ssub.s32 1, %s4
  %s7 = scalar_select 0, %s6, %s4
  // Predicated region
  $region2: #{unet1d_forward.18} parent=0 // pred_check
    _
  $region3: #{unet1d_forward.18} parent=0 // pred_check_branch
    %9 = sbr.rel (0) target = $region5
  $region4: #{unet1d_forward.18} parent=0 // pred_region
    _
  $region5: #{unet1d_forward.18} parent=0 // pred_fallthru
    _
  // Predicated region
  $region6: #{unet1d_forward.18} parent=0 // pred_check
    _
  $region7: #{unet1d_forward.18} parent=0 // pred_check_branch
    %11 = sbr.rel (0) target = $region9
  $region8: #{unet1d_forward.18} parent=0 // pred_region
    _
  $region9: #{unet1d_forward.18} parent=0 // pred_fallthru
    _
  // Predicated region
  $region10: #{unet1d_forward.18} parent=0 // pred_check
    _
  $region11: #{unet1d_forward.18} parent=0 // pred_check_branch
    %13 = sbr.rel (0) target = $region13
  $region12: #{unet1d_forward.18} parent=0 // pred_region
    _
  $region13: #{unet1d_forward.18} parent=0 // pred_fallthru
    _
  %v14 = vld [vmem:[%s0] sm:$0xff]
  %v15 = vld [vmem:[%s0 + $0x8] sm:$0xff]
  %v16 = vld [vmem:[%s1] sm:$0xff]
  %v17 = vld [vmem:[%s1 + $0x8] sm:$0xff]
  %v18 = vld [vmem:[%s1 + $0x10] sm:$0xff]
  %v19 = vld [vmem:[%s1 + $0x18] sm:$0xff]
  %v20 = vld [vmem:[%s1 + $0x20] sm:$0xff]
  %v21 = vld [vmem:[%s1 + $0x28] sm:$0xff]
  %v22 = vld [vmem:[%s1 + $0x30] sm:$0xff]
  %v23 = vld [vmem:[%s1 + $0x38] sm:$0xff]
  %v24 = vld [vmem:[%s1 + $0x40] sm:$0xff]
  %v25 = vld [vmem:[%s1 + $0x48] sm:$0xff]
  %v26 = vld [vmem:[%s1 + $0x50] sm:$0xff]
  %v27 = vld [vmem:[%s1 + $0x58] sm:$0xff]
  %v28 = vld [vmem:[%s1 + $0x60] sm:$0xff]
  %v29 = vld [vmem:[%s1 + $0x68] sm:$0xff]
  %v30 = vld [vmem:[%s1 + $0x70] sm:$0xff]
  %v31 = vld [vmem:[%s1 + $0x78] sm:$0xff]
  %v32 = vld [vmem:[%s1 + $0x80] sm:$0xff]
  %v33 = vld [vmem:[%s1 + $0x88] sm:$0xf]
  %v34 = vld [vmem:[%s2] sm:$0x1]
  %v36 = vlaneseq
  %v37 = vshrl.u32 %v36, 7
  %v38 = vsub.s32 0, %v37
  %v39 = vrot.slane %v34, %v38
  %vm41 = vcmask 97280
  %v43 = vsel %vm41, %v15, 0
  %vm45 = vcmask 1043456
  %v47 = vsel %vm45, %v33, 0
  %49 = vmatprep.subr.mxu0 0.0
  %50 = vmatpush1.msra.mxu0 %v16
  %51 = vmatprep.subr.mxu0 0.0
  %52 = vmatpush1.msra.mxu0 %v17
  %53 = vmatprep.subr.mxu0 0.0
  %54 = vmatpush1.msra.mxu0 %v18
  %55 = vmatprep.subr.mxu0 0.0
  %56 = vmatpush1.msra.mxu0 %v19
  %57 = vmatprep.subr.mxu0 0.0
  %58 = vmatpush1.msra.mxu0 %v20
  %59 = vmatprep.subr.mxu0 0.0
  %60 = vmatpush1.msra.mxu0 %v21
  %61 = vmatprep.subr.mxu0 0.0
  %62 = vmatpush1.msra.mxu0 %v22
  %63 = vmatprep.subr.mxu0 0.0
  %64 = vmatpush1.msra.mxu0 %v23
  %65 = vmatprep.subr.mxu0 0.0
  %66 = vmatpush1.msra.mxu0 %v24
  %67 = vmatprep.subr.mxu0 0.0
  %68 = vmatpush1.msra.mxu0 %v25
  %69 = vmatprep.subr.mxu0 0.0
  %70 = vmatpush1.msra.mxu0 %v26
  %71 = vmatprep.subr.mxu0 0.0
  %72 = vmatpush1.msra.mxu0 %v27
  %73 = vmatprep.subr.mxu0 0.0
  %74 = vmatpush1.msra.mxu0 %v28
  %75 = vmatprep.subr.mxu0 0.0
  %76 = vmatpush1.msra.mxu0 %v29
  %77 = vmatprep.subr.mxu0 0.0
  %78 = vmatpush1.msra.mxu0 %v30
  %79 = vmatprep.subr.mxu0 0.0
  %80 = vmatpush1.msra.mxu0 %v31
  %81 = vmatprep.subr.mxu0 0.0
  %82 = vmatpush1.msra.mxu0 %v32
  %83 = vmatprep.subr.mxu0 0.0
  %84 = vmatpush1.msra.mxu0 %v47
  %85 = vmatprep.subr.mxu0 0.0
  %86 = vmatpush1.msra.mxu0 0.0
  %87 = vmatprep.subr.mxu0 0.0
  %88 = vmatpush1.msra.mxu0 0.0
  %89 = vmatprep.subr.mxu0 0.0
  %90 = vmatpush1.msra.mxu0 0.0
  %91 = vmatprep.subr.mxu0 0.0
  %92 = vmatpush1.msra.mxu0 0.0
  %93 = vmatprep.subr.mxu0 0.0
  %94 = vmatpush1.msra.mxu0 0.0
  %95 = vmatprep.subr.mxu0 0.0
  %96 = vmatpush1.msra.mxu0 0.0
  %97 = vmatprep.subr.mxu0 0.0
  %98 = vmatpush1.msra.mxu0 0.0
  %99 = vmatprep.subr.mxu0 0.0
  %100 = vmatpush1.msra.mxu0 0.0
  %101 = vmatprep.subr.mxu0 0.0
  %102 = vmatpush1.msra.mxu0 0.0
  %103 = vmatprep.subr.mxu0 0.0
  %104 = vmatpush1.msra.mxu0 0.0
  %105 = vmatprep.subr.mxu0 0.0
  %106 = vmatpush1.msra.mxu0 0.0
  %107 = vmatprep.subr.mxu0 0.0
  %108 = vmatpush1.msra.mxu0 0.0
  %109 = vmatprep.subr.mxu0 0.0
  %110 = vmatpush1.msra.mxu0 0.0
  %111 = vmatprep.subr.mxu0 0.0
  %112 = vmatpush1.msra.mxu0 0.0
  %113 = vmatprep.mubr.f32.mxu0 %v43
  %114 = vmatmul.mubr.f32.gmra.mrb[0].mxu0 %v14
  %v115 = vpop.f32.mrb[0].mxu0
  %v116 = vadd.f32 %v39, %v115
  %v117 = vpop.f32.mrb[0].mxu0
  %118 = vdwg.mxu0
  %v119 = vmax.f32 %v116, 0.0
  %vm120 = vcmask 261120
  %121 = vst.msk [vmem:[%s3] sm:$0xff] %vm120, %v119
  // Predicated region
  $region14: #{unet1d_forward.18} parent=0 // pred_check
    _
  $region15: #{unet1d_forward.18} parent=0 // pred_check_branch
    %123 = sbr.rel (0) target = $region17
  $region16: #{unet1d_forward.18} parent=0 // pred_region
    _
  $region17: #{unet1d_forward.18} parent=0 // pred_fallthru
    _
  // Predicated region
  $region18: #{unet1d_forward.18} parent=0 // pred_check
    _
  $region19: #{unet1d_forward.18} parent=0 // pred_check_branch
    %125 = sbr.rel (0) target = $region21
  $region20: #{unet1d_forward.18} parent=0 // pred_region
    _
  $region21: #{unet1d_forward.18} parent=0 // pred_fallthru
    _

// kernel: unet1d_forward.19
$region0: #{unet1d_forward.19}
  #allocation0 [shape = 'u32[]', space=smem, size = 0x4, offset = 0x4, fixed_abs, tag = 'smem constant byte address 0x4 - core index']
  #allocation1 [shape = 'u32[144,128]{1,0:T(1,128)}', space=vmem, size = 0x12000, scoped, tag = 'internal scratch']
  %s0 = inlined_call_operand.vmem [shape: f32[4,2], index: 0, kind: input, shape index: {}]
  %s1 = inlined_call_operand.vmem [shape: f32[2,2,32], index: 1, kind: input, shape index: {}]
  %s2 = inlined_call_operand.vmem [shape: f32[2,4,32], index: 2, kind: output, shape index: {}]
  %s3 = sld [smem:[#allocation0]]
  $region41: #{unet1d_forward.19} parent=0
    _
  %s5 = ssub.s32 1, %s3
  %s6 = scalar_select 0, %s5, %s3
  loop: start=0, step=1, limit=4
  $region2: #{unet1d_forward.19} parent=0 // loop_pre_header
    _
  $region3: #{unet1d_forward.19} parent=0 // loop_header
    %s8 = sphi 0, %s12
    %p9 = scmp.ge.s32.totalorder %s8, 4
    %s16 = sphi 0, %s16
    %s18 = sphi 0, %s16
    %s19 = sphi 0, %s18
    %s33 = sphi 0, %s19
    %s39 = sphi 0, %s41
    %s42 = sphi 0, %s39
    %s43 = sphi 0, %s42
    %s59 = sphi 0, %s43
    %s65 = sphi 0, %s67
    %s68 = sphi 0, %s65
    %s69 = sphi 0, %s68
    %s85 = sphi 0, %s69
  $region4: #{unet1d_forward.19} parent=0 // loop_header_branch
    %11 = sbr.rel (%p9) target = $region8
  $region5: #{unet1d_forward.19} parent=0 // loop_body
    %s13 = ssub.s32 %s8, 1
    %s14 = ssub.s32 %s8, 2
    %s15 = sadd.s32 %s8, 1
    %s17 = sadd.s32 %s16, 1
    %p20 = scmp.eq.s32.totalorder %s8, 1
    %p21 = scmp.ne.s32.totalorder %s16, %s18
    %p22 = scmp.eq.s32.totalorder %s8, 0
    %p23 = por %p21, %p22
    %p24 = scmp.ne.s32.totalorder %s16, %s18
    %p25 = scmp.eq.s32.totalorder %s13, 1
    %p26 = por %p24, %p25
    %p27 = scmp.ne.s32.totalorder %s18, %s19
    %p28 = scmp.eq.s32.totalorder %s13, 0
    %p29 = por %p27, %p28
    %p30 = scmp.ne.s32.totalorder %s18, %s19
    %p31 = scmp.eq.s32.totalorder %s14, 1
    %p32 = por %p30, %p31
    %p34 = scmp.ne.s32.totalorder %s19, %s33
    %p35 = scmp.eq.s32.totalorder %s14, 0
    %p36 = por %p34, %p35
    %s37 = ssub.s32 %s8, %s15
    %p38 = scmp.eq.s32.totalorder %s37, 0
    %s40 = sadd.s32 %s39, 1
    %s41 = scalar_select %p38, %s39, %s40
    %p44 = pneg %p38
    %p45 = scmp.eq.s32.totalorder %s8, 1
    %p46 = por %p44, %p45
    %p47 = scmp.ne.s32.totalorder %s39, %s42
    %p48 = scmp.eq.s32.totalorder %s8, 0
    %p49 = por %p47, %p48
    %p50 = scmp.ne.s32.totalorder %s39, %s42
    %p51 = scmp.eq.s32.totalorder %s13, 1
    %p52 = por %p50, %p51
    %p53 = scmp.ne.s32.totalorder %s42, %s43
    %p54 = scmp.eq.s32.totalorder %s13, 0
    %p55 = por %p53, %p54
    %p56 = scmp.ne.s32.totalorder %s42, %s43
    %p57 = scmp.eq.s32.totalorder %s14, 1
    %p58 = por %p56, %p57
    %p60 = scmp.ne.s32.totalorder %s43, %s59
    %p61 = scmp.eq.s32.totalorder %s14, 0
    %p62 = por %p60, %p61
    %s63 = ssub.s32 %s8, %s15
    %p64 = scmp.eq.s32.totalorder %s63, 0
    %s66 = sadd.s32 %s65, 1
    %s67 = scalar_select %p64, %s65, %s66
    %p70 = pneg %p64
    %p71 = scmp.eq.s32.totalorder %s8, 1
    %p72 = por %p70, %p71
    %p73 = scmp.ne.s32.totalorder %s65, %s68
    %p74 = scmp.eq.s32.totalorder %s8, 0
    %p75 = por %p73, %p74
    %p76 = scmp.ne.s32.totalorder %s65, %s68
    %p77 = scmp.eq.s32.totalorder %s13, 1
    %p78 = por %p76, %p77
    %p79 = scmp.ne.s32.totalorder %s68, %s69
    %p80 = scmp.eq.s32.totalorder %s13, 0
    %p81 = por %p79, %p80
    %p82 = scmp.ne.s32.totalorder %s68, %s69
    %p83 = scmp.eq.s32.totalorder %s14, 1
    %p84 = por %p82, %p83
    %p86 = scmp.ne.s32.totalorder %s69, %s85
    %p87 = scmp.eq.s32.totalorder %s14, 0
    %p88 = por %p86, %p87
    %p89 = scmp.le.s32.totalorder 1, %s8
    %p90 = scmp.lt.s32.totalorder %s8, 3
    %p91 = pnand %p89, %p90
    %p92 = pneg %p91
    // Predicated region
    $region9: #{unet1d_forward.19} parent=5 // pred_check
      _
    $region10: #{unet1d_forward.19} parent=5 // pred_check_branch
      %94 = sbr.rel (%p91) target = $region12
    $region11: #{unet1d_forward.19} parent=5 // pred_region
      %s95 = ssub.s32 %s8, 1
      // Predicated region
      $region13: #{unet1d_forward.19} parent=11 // pred_check
        %p96 = pneg %p29
      $region14: #{unet1d_forward.19} parent=11 // pred_check_branch
        %98 = sbr.rel (%p96) target = $region16
      $region15: #{unet1d_forward.19} parent=11 // pred_region
        _
      $region16: #{unet1d_forward.19} parent=11 // pred_fallthru
        _
    $region12: #{unet1d_forward.19} parent=5 // pred_fallthru
      _
    %p99 = scmp.lt.s32.totalorder %s8, 2
    // Predicated region
    $region17: #{unet1d_forward.19} parent=5 // pred_check
      %p100 = pneg %p99
    $region18: #{unet1d_forward.19} parent=5 // pred_check_branch
      %102 = sbr.rel (%p100) target = $region20
    $region19: #{unet1d_forward.19} parent=5 // pred_region
      // Predicated region
      $region21: #{unet1d_forward.19} parent=19 // pred_check
        %p103 = pneg %p49
      $region22: #{unet1d_forward.19} parent=19 // pred_check_branch
        %105 = sbr.rel (%p103) target = $region24
      $region23: #{unet1d_forward.19} parent=19 // pred_region
        %p106 = scmp.lt.s32.totalorder %s8, 1
        %s107 = scalar_select %p106, %s8, 1
        %s108 = smul.addr %s107, 2
        %s109 = scalar_lea.vmem %s1, %s108
      $region24: #{unet1d_forward.19} parent=19 // pred_fallthru
        _
    $region20: #{unet1d_forward.19} parent=5 // pred_fallthru
      _
    %p110 = scmp.le.s32.totalorder 1, %s8
    %p111 = scmp.lt.s32.totalorder %s8, 3
    %p112 = pnand %p110, %p111
    %p113 = pneg %p112
    // Predicated region
    $region25: #{unet1d_forward.19} parent=5 // pred_check
      _
    $region26: #{unet1d_forward.19} parent=5 // pred_check_branch
      %115 = sbr.rel (%p112) target = $region28
    $region27: #{unet1d_forward.19} parent=5 // pred_region
      %s116 = ssub.s32 %s8, 1
      %p117 = pneg %p29
      %p118 = pneg %p26
      %p119 = scmp.lt.s32.totalorder %s13, 1
      %s120 = scalar_select %p119, %s13, 1
      %s121 = smul.addr %s120, 2
      %s122 = scalar_lea.vmem %s1, %s121
      %p123 = pneg %p55
      %p124 = pneg %p52
      %p125 = pneg %p81
      %p126 = pneg %p78
      %p127 = scmp.lt.s32.totalorder %s13, 1
      %s128 = scalar_select %p127, %s13, 1
      %s129 = smul.addr %s128, 4
      %s130 = scalar_lea.vmem %s2, %s129
      %p131 = scmp.lt.s32.totalorder %s13, 1
      %s132 = scalar_select %p131, %s13, 1
      %s133 = smul.addr %s132, 2
      %s134 = scalar_lea.vmem %s1, %s133
      %p135 = scmp.lt.s32.totalorder %s13, 1
      %s136 = scalar_select %p135, %s13, 1
      %s137 = smul.addr %s136, 4
      %s138 = scalar_lea.vmem %s2, %s137
      %v139 = vld [vmem:[%s0] sm:$0xf]
      %v140 = vld [vmem:[%s134] sm:$0x3]
      %vm141 = vcmask 15360
      %v143 = vsel %vm141, %v139, 0
      %vm145 = vcmask 1041408
      %v147 = vsel %vm145, %v140, 0
      %149 = vmatprep.subr.mxu0 0.0
      %150 = vmatpush1.msra.mxu0 %v147
      %151 = vmatprep.subr.mxu0 0.0
      %152 = vmatpush1.msra.mxu0 0.0
      %153 = vmatprep.subr.mxu0 0.0
      %154 = vmatpush1.msra.mxu0 0.0
      %155 = vmatprep.subr.mxu0 0.0
      %156 = vmatpush1.msra.mxu0 0.0
      %157 = vmatprep.subr.mxu0 0.0
      %158 = vmatpush1.msra.mxu0 0.0
      %159 = vmatprep.subr.mxu0 0.0
      %160 = vmatpush1.msra.mxu0 0.0
      %161 = vmatprep.subr.mxu0 0.0
      %162 = vmatpush1.msra.mxu0 0.0
      %163 = vmatprep.subr.mxu0 0.0
      %164 = vmatpush1.msra.mxu0 0.0
      %165 = vmatprep.subr.mxu0 0.0
      %166 = vmatpush1.msra.mxu0 0.0
      %167 = vmatprep.subr.mxu0 0.0
      %168 = vmatpush1.msra.mxu0 0.0
      %169 = vmatprep.subr.mxu0 0.0
      %170 = vmatpush1.msra.mxu0 0.0
      %171 = vmatprep.subr.mxu0 0.0
      %172 = vmatpush1.msra.mxu0 0.0
      %173 = vmatprep.subr.mxu0 0.0
      %174 = vmatpush1.msra.mxu0 0.0
      %175 = vmatprep.subr.mxu0 0.0
      %176 = vmatpush1.msra.mxu0 0.0
      %177 = vmatprep.subr.mxu0 0.0
      %178 = vmatpush1.msra.mxu0 0.0
      %179 = vmatprep.subr.mxu0 0.0
      %180 = vmatpush1.msra.mxu0 0.0
      %181 = vmatprep.subr.mxu0 0.0
      %182 = vmatpush1.msra.mxu0 0.0
      %183 = vmatprep.subr.mxu0 0.0
      %184 = vmatpush1.msra.mxu0 0.0
      %185 = vmatprep.subr.mxu0 0.0
      %186 = vmatpush1.msra.mxu0 0.0
      %187 = vmatprep.subr.mxu0 0.0
      %188 = vmatpush1.msra.mxu0 0.0
      %189 = vmatprep.subr.mxu0 0.0
      %190 = vmatpush1.msra.mxu0 0.0
      %191 = vmatprep.subr.mxu0 0.0
      %192 = vmatpush1.msra.mxu0 0.0
      %193 = vmatprep.subr.mxu0 0.0
      %194 = vmatpush1.msra.mxu0 0.0
      %195 = vmatprep.subr.mxu0 0.0
      %196 = vmatpush1.msra.mxu0 0.0
      %197 = vmatprep.subr.mxu0 0.0
      %198 = vmatpush1.msra.mxu0 0.0
      %199 = vmatprep.subr.mxu0 0.0
      %200 = vmatpush1.msra.mxu0 0.0
      %201 = vmatprep.subr.mxu0 0.0
      %202 = vmatpush1.msra.mxu0 0.0
      %203 = vmatprep.subr.mxu0 0.0
      %204 = vmatpush1.msra.mxu0 0.0
      %205 = vmatprep.subr.mxu0 0.0
      %206 = vmatpush1.msra.mxu0 0.0
      %207 = vmatprep.subr.mxu0 0.0
      %208 = vmatpush1.msra.mxu0 0.0
      %209 = vmatprep.subr.mxu0 0.0
      %210 = vmatpush1.msra.mxu0 0.0
      %211 = vmatprep.subr.mxu0 0.0
      %212 = vmatpush1.msra.mxu0 0.0
      %213 = vmatprep.mubr.f32.mxu0 0.0
      %214 = vmatmul.mubr.f32.gmra.mrb[0].mxu0 %v143
      %v215 = vpop.f32.mrb[0].mxu0
      %v216 = vadd.f32 0.0, %v215
      %v217 = vpop.f32.mrb[0].mxu0
      %218 = vdwg.mxu0
      %vm219 = vcmask 257024
      %220 = vst.msk [vmem:[%s138] sm:$0xf] %vm219, %v216
      %p221 = scmp.lt.s32.totalorder %s13, 1
      %s222 = scalar_select %p221, %s13, 1
      %s223 = smul.addr %s222, 4
      %s224 = scalar_lea.vmem %s2, %s223
      // Predicated region
      $region29: #{unet1d_forward.19} parent=27 // pred_check
        %p225 = pneg %p78
      $region30: #{unet1d_forward.19} parent=27 // pred_check_branch
        %227 = sbr.rel (%p225) target = $region32
      $region31: #{unet1d_forward.19} parent=27 // pred_region
        _
      $region32: #{unet1d_forward.19} parent=27 // pred_fallthru
        _
    $region28: #{unet1d_forward.19} parent=5 // pred_fallthru
      _
    %p228 = scmp.le.s32.totalorder 2, %s8
    // Predicated region
    $region33: #{unet1d_forward.19} parent=5 // pred_check
      %p229 = pneg %p228
    $region34: #{unet1d_forward.19} parent=5 // pred_check_branch
      %231 = sbr.rel (%p229) target = $region36
    $region35: #{unet1d_forward.19} parent=5 // pred_region
      %s232 = ssub.s32 %s8, 2
      // Predicated region
      $region37: #{unet1d_forward.19} parent=35 // pred_check
        %p233 = pneg %p84
      $region38: #{unet1d_forward.19} parent=35 // pred_check_branch
        %235 = sbr.rel (%p233) target = $region40
      $region39: #{unet1d_forward.19} parent=35 // pred_region
        %p236 = scmp.lt.s32.totalorder %s14, 1
        %s237 = scalar_select %p236, %s14, 1
        %s238 = smul.addr %s237, 4
        %s239 = scalar_lea.vmem %s2, %s238
      $region40: #{unet1d_forward.19} parent=35 // pred_fallthru
        _
    $region36: #{unet1d_forward.19} parent=5 // pred_fallthru
      _
  $region6: #{unet1d_forward.19} parent=0 // loop_footer
    %s12 = sadd.s32 1, %s8
  $region7: #{unet1d_forward.19} parent=0 // loop_footer_branch
    %7 = sbr.rel target = $region3
  $region8: #{unet1d_forward.19} parent=0 // loop_exit
    _

// kernel: unet1d_forward.20
$region0: #{unet1d_forward.20}
  #allocation0 [shape = 'u32[]', space=smem, size = 0x4, offset = 0x4, fixed_abs, tag = 'smem constant byte address 0x4 - core index']
  #allocation1 [shape = 'u32[144,128]{1,0:T(1,128)}', space=vmem, size = 0x12000, scoped, tag = 'internal scratch']
  %s0 = inlined_call_operand.vmem [shape: f32[8,280], index: 0, kind: input, shape index: {}]
  %s1 = inlined_call_operand.vmem [shape: f32[280,24], index: 1, kind: input, shape index: {}]
  %s2 = inlined_call_operand.vmem [shape: f32[1,24], index: 2, kind: input, shape index: {}]
  %s3 = inlined_call_operand.vmem [shape: f32[8,24], index: 3, kind: output, shape index: {}]
  %s4 = sld [smem:[#allocation0]]
  $region22: #{unet1d_forward.20} parent=0
    _
  %s6 = ssub.s32 1, %s4
  %s7 = scalar_select 0, %s6, %s4
  // Predicated region
  $region2: #{unet1d_forward.20} parent=0 // pred_check
    _
  $region3: #{unet1d_forward.20} parent=0 // pred_check_branch
    %9 = sbr.rel (0) target = $region5
  $region4: #{unet1d_forward.20} parent=0 // pred_region
    _
  $region5: #{unet1d_forward.20} parent=0 // pred_fallthru
    _
  // Predicated region
  $region6: #{unet1d_forward.20} parent=0 // pred_check
    _
  $region7: #{unet1d_forward.20} parent=0 // pred_check_branch
    %11 = sbr.rel (0) target = $region9
  $region8: #{unet1d_forward.20} parent=0 // pred_region
    _
  $region9: #{unet1d_forward.20} parent=0 // pred_fallthru
    _
  // Predicated region
  $region10: #{unet1d_forward.20} parent=0 // pred_check
    _
  $region11: #{unet1d_forward.20} parent=0 // pred_check_branch
    %13 = sbr.rel (0) target = $region13
  $region12: #{unet1d_forward.20} parent=0 // pred_region
    _
  $region13: #{unet1d_forward.20} parent=0 // pred_fallthru
    _
  %v14 = vld [vmem:[%s0] sm:$0xff]
  %v15 = vld [vmem:[%s0 + $0x8] sm:$0xff]
  %v16 = vld [vmem:[%s0 + $0x10] sm:$0xff]
  %v17 = vld [vmem:[%s1] sm:$0xff]
  %v18 = vld [vmem:[%s1 + $0x8] sm:$0xff]
  %v19 = vld [vmem:[%s1 + $0x10] sm:$0xff]
  %v20 = vld [vmem:[%s1 + $0x18] sm:$0xff]
  %v21 = vld [vmem:[%s1 + $0x20] sm:$0xff]
  %v22 = vld [vmem:[%s1 + $0x28] sm:$0xff]
  %v23 = vld [vmem:[%s1 + $0x30] sm:$0xff]
  %v24 = vld [vmem:[%s1 + $0x38] sm:$0xff]
  %v25 = vld [vmem:[%s1 + $0x40] sm:$0xff]
  %v26 = vld [vmem:[%s1 + $0x48] sm:$0xff]
  %v27 = vld [vmem:[%s1 + $0x50] sm:$0xff]
  %v28 = vld [vmem:[%s1 + $0x58] sm:$0xff]
  %v29 = vld [vmem:[%s1 + $0x60] sm:$0xff]
  %v30 = vld [vmem:[%s1 + $0x68] sm:$0xff]
  %v31 = vld [vmem:[%s1 + $0x70] sm:$0xff]
  %v32 = vld [vmem:[%s1 + $0x78] sm:$0xff]
  %v33 = vld [vmem:[%s1 + $0x80] sm:$0xff]
  %v34 = vld [vmem:[%s1 + $0x88] sm:$0xff]
  %v35 = vld [vmem:[%s1 + $0x90] sm:$0xff]
  %v36 = vld [vmem:[%s1 + $0x98] sm:$0xff]
  %v37 = vld [vmem:[%s1 + $0xa0] sm:$0xff]
  %v38 = vld [vmem:[%s1 + $0xa8] sm:$0xff]
  %v39 = vld [vmem:[%s1 + $0xb0] sm:$0xff]
  %v40 = vld [vmem:[%s1 + $0xb8] sm:$0xff]
  %v41 = vld [vmem:[%s1 + $0xc0] sm:$0xff]
  %v42 = vld [vmem:[%s1 + $0xc8] sm:$0xff]
  %v43 = vld [vmem:[%s1 + $0xd0] sm:$0xff]
  %v44 = vld [vmem:[%s1 + $0xd8] sm:$0xff]
  %v45 = vld [vmem:[%s1 + $0xe0] sm:$0xff]
  %v46 = vld [vmem:[%s1 + $0xe8] sm:$0xff]
  %v47 = vld [vmem:[%s1 + $0xf0] sm:$0xff]
  %v48 = vld [vmem:[%s1 + $0xf8] sm:$0xff]
  %v49 = vld [vmem:[%s1 + $0x100] sm:$0xff]
  %v50 = vld [vmem:[%s1 + $0x108] sm:$0xff]
  %v51 = vld [vmem:[%s1 + $0x110] sm:$0xff]
  %v52 = vld [vmem:[%s2] sm:$0x1]
  %v54 = vlaneseq
  %v55 = vshrl.u32 %v54, 7
  %v56 = vsub.s32 0, %v55
  %v57 = vrot.slane %v52, %v56
  %vm59 = vcmask 195584
  %v61 = vsel %vm59, %v16, 0
  %63 = vmatprep.subr.mxu0 0.0
  %64 = vmatpush1.msra.mxu0 %v17
  %65 = vmatprep.subr.mxu0 0.0
  %66 = vmatpush1.msra.mxu0 %v18
  %67 = vmatprep.subr.mxu0 0.0
  %68 = vmatpush1.msra.mxu0 %v19
  %69 = vmatprep.subr.mxu0 0.0
  %70 = vmatpush1.msra.mxu0 %v20
  %71 = vmatprep.subr.mxu0 0.0
  %72 = vmatpush1.msra.mxu0 %v21
  %73 = vmatprep.subr.mxu0 0.0
  %74 = vmatpush1.msra.mxu0 %v22
  %75 = vmatprep.subr.mxu0 0.0
  %76 = vmatpush1.msra.mxu0 %v23
  %77 = vmatprep.subr.mxu0 0.0
  %78 = vmatpush1.msra.mxu0 %v24
  %79 = vmatprep.subr.mxu0 0.0
  %80 = vmatpush1.msra.mxu0 %v25
  %81 = vmatprep.subr.mxu0 0.0
  %82 = vmatpush1.msra.mxu0 %v26
  %83 = vmatprep.subr.mxu0 0.0
  %84 = vmatpush1.msra.mxu0 %v27
  %85 = vmatprep.subr.mxu0 0.0
  %86 = vmatpush1.msra.mxu0 %v28
  %87 = vmatprep.subr.mxu0 0.0
  %88 = vmatpush1.msra.mxu0 %v29
  %89 = vmatprep.subr.mxu0 0.0
  %90 = vmatpush1.msra.mxu0 %v30
  %91 = vmatprep.subr.mxu0 0.0
  %92 = vmatpush1.msra.mxu0 %v31
  %93 = vmatprep.subr.mxu0 0.0
  %94 = vmatpush1.msra.mxu0 %v32
  %95 = vmatprep.subr.mxu0 0.0
  %96 = vmatpush1.msra.mxu0 %v33
  %97 = vmatprep.subr.mxu0 0.0
  %98 = vmatpush1.msra.mxu0 %v34
  %99 = vmatprep.subr.mxu0 0.0
  %100 = vmatpush1.msra.mxu0 %v35
  %101 = vmatprep.subr.mxu0 0.0
  %102 = vmatpush1.msra.mxu0 %v36
  %103 = vmatprep.subr.mxu0 0.0
  %104 = vmatpush1.msra.mxu0 %v37
  %105 = vmatprep.subr.mxu0 0.0
  %106 = vmatpush1.msra.mxu0 %v38
  %107 = vmatprep.subr.mxu0 0.0
  %108 = vmatpush1.msra.mxu0 %v39
  %109 = vmatprep.subr.mxu0 0.0
  %110 = vmatpush1.msra.mxu0 %v40
  %111 = vmatprep.subr.mxu0 0.0
  %112 = vmatpush1.msra.mxu0 %v41
  %113 = vmatprep.subr.mxu0 0.0
  %114 = vmatpush1.msra.mxu0 %v42
  %115 = vmatprep.subr.mxu0 0.0
  %116 = vmatpush1.msra.mxu0 %v43
  %117 = vmatprep.subr.mxu0 0.0
  %118 = vmatpush1.msra.mxu0 %v44
  %119 = vmatprep.subr.mxu0 0.0
  %120 = vmatpush1.msra.mxu0 %v45
  %121 = vmatprep.subr.mxu0 0.0
  %122 = vmatpush1.msra.mxu0 %v46
  %123 = vmatprep.subr.mxu0 0.0
  %124 = vmatpush1.msra.mxu0 %v47
  %125 = vmatprep.subr.mxu0 0.0
  %126 = vmatpush1.msra.mxu0 %v48
  %127 = vmatprep.mubr.f32.mxu0 %v15
  %128 = vmatmul.mubr.f32.gmra.mrb[0].mxu0 %v14
  %v129 = vpop.f32.mrb[0].mxu0
  %v130 = vadd.f32 %v57, %v129
  %v131 = vpop.f32.mrb[0].mxu0
  %132 = vdwg.mxu0
  %133 = vmatprep.subr.mxu0 0.0
  %134 = vmatpush1.msra.mxu0 %v49
  %135 = vmatprep.subr.mxu0 0.0
  %136 = vmatpush1.msra.mxu0 %v50
  %137 = vmatprep.subr.mxu0 0.0
  %138 = vmatpush1.msra.mxu0 %v51
  %139 = vmatprep.subr.mxu0 0.0
  %140 = vmatpush1.msra.mxu0 0.0
  %141 = vmatprep.subr.mxu0 0.0
  %142 = vmatpush1.msra.mxu0 0.0
  %143 = vmatprep.subr.mxu0 0.0
  %144 = vmatpush1.msra.mxu0 0.0
  %145 = vmatprep.subr.mxu0 0.0
  %146 = vmatpush1.msra.mxu0 0.0
  %147 = vmatprep.subr.mxu0 0.0
  %148 = vmatpush1.msra.mxu0 0.0
  %149 = vmatprep.subr.mxu0 0.0
  %150 = vmatpush1.msra.mxu0 0.0
  %151 = vmatprep.subr.mxu0 0.0
  %152 = vmatpush1.msra.mxu0 0.0
  %153 = vmatprep.subr.mxu0 0.0
  %154 = vmatpush1.msra.mxu0 0.0
  %155 = vmatprep.subr.mxu0 0.0
  %156 = vmatpush1.msra.mxu0 0.0
  %157 = vmatprep.subr.mxu0 0.0
  %158 = vmatpush1.msra.mxu0 0.0
  %159 = vmatprep.subr.mxu0 0.0
  %160 = vmatpush1.msra.mxu0 0.0
  %161 = vmatprep.subr.mxu0 0.0
  %162 = vmatpush1.msra.mxu0 0.0
  %163 = vmatprep.subr.mxu0 0.0
  %164 = vmatpush1.msra.mxu0 0.0
  %165 = vmatprep.subr.mxu0 0.0
  %166 = vmatpush1.msra.mxu0 0.0
  %167 = vmatprep.subr.mxu0 0.0
  %168 = vmatpush1.msra.mxu0 0.0
  %169 = vmatprep.subr.mxu0 0.0
  %170 = vmatpush1.msra.mxu0 0.0
  %171 = vmatprep.subr.mxu0 0.0
  %172 = vmatpush1.msra.mxu0 0.0
  %173 = vmatprep.subr.mxu0 0.0
  %174 = vmatpush1.msra.mxu0 0.0
  %175 = vmatprep.subr.mxu0 0.0
  %176 = vmatpush1.msra.mxu0 0.0
  %177 = vmatprep.subr.mxu0 0.0
  %178 = vmatpush1.msra.mxu0 0.0
  %179 = vmatprep.subr.mxu0 0.0
  %180 = vmatpush1.msra.mxu0 0.0
  %181 = vmatprep.subr.mxu0 0.0
  %182 = vmatpush1.msra.mxu0 0.0
  %183 = vmatprep.subr.mxu0 0.0
  %184 = vmatpush1.msra.mxu0 0.0
  %185 = vmatprep.subr.mxu0 0.0
  %186 = vmatpush1.msra.mxu0 0.0
  %187 = vmatprep.subr.mxu0 0.0
  %188 = vmatpush1.msra.mxu0 0.0
  %189 = vmatprep.subr.mxu0 0.0
  %190 = vmatpush1.msra.mxu0 0.0
  %191 = vmatprep.subr.mxu0 0.0
  %192 = vmatpush1.msra.mxu0 0.0
  %193 = vmatprep.subr.mxu0 0.0
  %194 = vmatpush1.msra.mxu0 0.0
  %195 = vmatprep.subr.mxu0 0.0
  %196 = vmatpush1.msra.mxu0 0.0
  %197 = vmatprep.mubr.f32.mxu0 0.0
  %198 = vmatmul.mubr.f32.gmra.mrb[0].mxu0 %v61
  %v199 = vpop.f32.mrb[0].mxu0
  %v200 = vadd.f32 %v130, %v199
  %v201 = vpop.f32.mrb[0].mxu0
  %202 = vdwg.mxu0
  %v203 = vmax.f32 %v200, 0.0
  %204 = vst.msk [vmem:[%s3] sm:$0xff] %vm59, %v203
  // Predicated region
  $region14: #{unet1d_forward.20} parent=0 // pred_check
    _
  $region15: #{unet1d_forward.20} parent=0 // pred_check_branch
    %206 = sbr.rel (0) target = $region17
  $region16: #{unet1d_forward.20} parent=0 // pred_region
    _
  $region17: #{unet1d_forward.20} parent=0 // pred_fallthru
    _
  // Predicated region
  $region18: #{unet1d_forward.20} parent=0 // pred_check
    _
  $region19: #{unet1d_forward.20} parent=0 // pred_check_branch
    %208 = sbr.rel (0) target = $region21
  $region20: #{unet1d_forward.20} parent=0 // pred_region
    _
  $region21: #{unet1d_forward.20} parent=0 // pred_fallthru
    _

// kernel: unet1d_forward.21
$region0: #{unet1d_forward.21}
  #allocation0 [shape = 'u32[]', space=smem, size = 0x4, offset = 0x4, fixed_abs, tag = 'smem constant byte address 0x4 - core index']
  #allocation1 [shape = 'u32[144,128]{1,0:T(1,128)}', space=vmem, size = 0x12000, scoped, tag = 'internal scratch']
  %s0 = inlined_call_operand.vmem [shape: f32[8,4], index: 0, kind: input, shape index: {}]
  %s1 = inlined_call_operand.vmem [shape: f32[2,4,24], index: 1, kind: input, shape index: {}]
  %s2 = inlined_call_operand.vmem [shape: f32[2,8,24], index: 2, kind: output, shape index: {}]
  %s3 = sld [smem:[#allocation0]]
  $region41: #{unet1d_forward.21} parent=0
    _
  %s5 = ssub.s32 1, %s3
  %s6 = scalar_select 0, %s5, %s3
  loop: start=0, step=1, limit=4
  $region2: #{unet1d_forward.21} parent=0 // loop_pre_header
    _
  $region3: #{unet1d_forward.21} parent=0 // loop_header
    %s8 = sphi 0, %s12
    %p9 = scmp.ge.s32.totalorder %s8, 4
    %s16 = sphi 0, %s16
    %s18 = sphi 0, %s16
    %s19 = sphi 0, %s18
    %s33 = sphi 0, %s19
    %s39 = sphi 0, %s41
    %s42 = sphi 0, %s39
    %s43 = sphi 0, %s42
    %s59 = sphi 0, %s43
    %s65 = sphi 0, %s67
    %s68 = sphi 0, %s65
    %s69 = sphi 0, %s68
    %s85 = sphi 0, %s69
  $region4: #{unet1d_forward.21} parent=0 // loop_header_branch
    %11 = sbr.rel (%p9) target = $region8
  $region5: #{unet1d_forward.21} parent=0 // loop_body
    %s13 = ssub.s32 %s8, 1
    %s14 = ssub.s32 %s8, 2
    %s15 = sadd.s32 %s8, 1
    %s17 = sadd.s32 %s16, 1
    %p20 = scmp.eq.s32.totalorder %s8, 1
    %p21 = scmp.ne.s32.totalorder %s16, %s18
    %p22 = scmp.eq.s32.totalorder %s8, 0
    %p23 = por %p21, %p22
    %p24 = scmp.ne.s32.totalorder %s16, %s18
    %p25 = scmp.eq.s32.totalorder %s13, 1
    %p26 = por %p24, %p25
    %p27 = scmp.ne.s32.totalorder %s18, %s19
    %p28 = scmp.eq.s32.totalorder %s13, 0
    %p29 = por %p27, %p28
    %p30 = scmp.ne.s32.totalorder %s18, %s19
    %p31 = scmp.eq.s32.totalorder %s14, 1
    %p32 = por %p30, %p31
    %p34 = scmp.ne.s32.totalorder %s19, %s33
    %p35 = scmp.eq.s32.totalorder %s14, 0
    %p36 = por %p34, %p35
    %s37 = ssub.s32 %s8, %s15
    %p38 = scmp.eq.s32.totalorder %s37, 0
    %s40 = sadd.s32 %s39, 1
    %s41 = scalar_select %p38, %s39, %s40
    %p44 = pneg %p38
    %p45 = scmp.eq.s32.totalorder %s8, 1
    %p46 = por %p44, %p45
    %p47 = scmp.ne.s32.totalorder %s39, %s42
    %p48 = scmp.eq.s32.totalorder %s8, 0
    %p49 = por %p47, %p48
    %p50 = scmp.ne.s32.totalorder %s39, %s42
    %p51 = scmp.eq.s32.totalorder %s13, 1
    %p52 = por %p50, %p51
    %p53 = scmp.ne.s32.totalorder %s42, %s43
    %p54 = scmp.eq.s32.totalorder %s13, 0
    %p55 = por %p53, %p54
    %p56 = scmp.ne.s32.totalorder %s42, %s43
    %p57 = scmp.eq.s32.totalorder %s14, 1
    %p58 = por %p56, %p57
    %p60 = scmp.ne.s32.totalorder %s43, %s59
    %p61 = scmp.eq.s32.totalorder %s14, 0
    %p62 = por %p60, %p61
    %s63 = ssub.s32 %s8, %s15
    %p64 = scmp.eq.s32.totalorder %s63, 0
    %s66 = sadd.s32 %s65, 1
    %s67 = scalar_select %p64, %s65, %s66
    %p70 = pneg %p64
    %p71 = scmp.eq.s32.totalorder %s8, 1
    %p72 = por %p70, %p71
    %p73 = scmp.ne.s32.totalorder %s65, %s68
    %p74 = scmp.eq.s32.totalorder %s8, 0
    %p75 = por %p73, %p74
    %p76 = scmp.ne.s32.totalorder %s65, %s68
    %p77 = scmp.eq.s32.totalorder %s13, 1
    %p78 = por %p76, %p77
    %p79 = scmp.ne.s32.totalorder %s68, %s69
    %p80 = scmp.eq.s32.totalorder %s13, 0
    %p81 = por %p79, %p80
    %p82 = scmp.ne.s32.totalorder %s68, %s69
    %p83 = scmp.eq.s32.totalorder %s14, 1
    %p84 = por %p82, %p83
    %p86 = scmp.ne.s32.totalorder %s69, %s85
    %p87 = scmp.eq.s32.totalorder %s14, 0
    %p88 = por %p86, %p87
    %p89 = scmp.le.s32.totalorder 1, %s8
    %p90 = scmp.lt.s32.totalorder %s8, 3
    %p91 = pnand %p89, %p90
    %p92 = pneg %p91
    // Predicated region
    $region9: #{unet1d_forward.21} parent=5 // pred_check
      _
    $region10: #{unet1d_forward.21} parent=5 // pred_check_branch
      %94 = sbr.rel (%p91) target = $region12
    $region11: #{unet1d_forward.21} parent=5 // pred_region
      %s95 = ssub.s32 %s8, 1
      // Predicated region
      $region13: #{unet1d_forward.21} parent=11 // pred_check
        %p96 = pneg %p29
      $region14: #{unet1d_forward.21} parent=11 // pred_check_branch
        %98 = sbr.rel (%p96) target = $region16
      $region15: #{unet1d_forward.21} parent=11 // pred_region
        _
      $region16: #{unet1d_forward.21} parent=11 // pred_fallthru
        _
    $region12: #{unet1d_forward.21} parent=5 // pred_fallthru
      _
    %p99 = scmp.lt.s32.totalorder %s8, 2
    // Predicated region
    $region17: #{unet1d_forward.21} parent=5 // pred_check
      %p100 = pneg %p99
    $region18: #{unet1d_forward.21} parent=5 // pred_check_branch
      %102 = sbr.rel (%p100) target = $region20
    $region19: #{unet1d_forward.21} parent=5 // pred_region
      // Predicated region
      $region21: #{unet1d_forward.21} parent=19 // pred_check
        %p103 = pneg %p49
      $region22: #{unet1d_forward.21} parent=19 // pred_check_branch
        %105 = sbr.rel (%p103) target = $region24
      $region23: #{unet1d_forward.21} parent=19 // pred_region
        %p106 = scmp.lt.s32.totalorder %s8, 1
        %s107 = scalar_select %p106, %s8, 1
        %s108 = smul.addr %s107, 4
        %s109 = scalar_lea.vmem %s1, %s108
      $region24: #{unet1d_forward.21} parent=19 // pred_fallthru
        _
    $region20: #{unet1d_forward.21} parent=5 // pred_fallthru
      _
    %p110 = scmp.le.s32.totalorder 1, %s8
    %p111 = scmp.lt.s32.totalorder %s8, 3
    %p112 = pnand %p110, %p111
    %p113 = pneg %p112
    // Predicated region
    $region25: #{unet1d_forward.21} parent=5 // pred_check
      _
    $region26: #{unet1d_forward.21} parent=5 // pred_check_branch
      %115 = sbr.rel (%p112) target = $region28
    $region27: #{unet1d_forward.21} parent=5 // pred_region
      %s116 = ssub.s32 %s8, 1
      %p117 = pneg %p29
      %p118 = pneg %p26
      %p119 = scmp.lt.s32.totalorder %s13, 1
      %s120 = scalar_select %p119, %s13, 1
      %s121 = smul.addr %s120, 4
      %s122 = scalar_lea.vmem %s1, %s121
      %p123 = pneg %p55
      %p124 = pneg %p52
      %p125 = pneg %p81
      %p126 = pneg %p78
      %p127 = scmp.lt.s32.totalorder %s13, 1
      %s128 = scalar_select %p127, %s13, 1
      %s129 = smul.addr %s128, 8
      %s130 = scalar_lea.vmem %s2, %s129
      %p131 = scmp.lt.s32.totalorder %s13, 1
      %s132 = scalar_select %p131, %s13, 1
      %s133 = smul.addr %s132, 4
      %s134 = scalar_lea.vmem %s1, %s133
      %p135 = scmp.lt.s32.totalorder %s13, 1
      %s136 = scalar_select %p135, %s13, 1
      %s137 = smul.addr %s136, 8
      %s138 = scalar_lea.vmem %s2, %s137
      %v139 = vld [vmem:[%s0] sm:$0xff]
      %v140 = vld [vmem:[%s134] sm:$0xf]
      %vm141 = vcmask 31744
      %v143 = vsel %vm141, %v139, 0
      %vm145 = vcmask 1043456
      %v147 = vsel %vm145, %v140, 0
      %149 = vmatprep.subr.mxu0 0.0
      %150 = vmatpush1.msra.mxu0 %v147
      %151 = vmatprep.subr.mxu0 0.0
      %152 = vmatpush1.msra.mxu0 0.0
      %153 = vmatprep.subr.mxu0 0.0
      %154 = vmatpush1.msra.mxu0 0.0
      %155 = vmatprep.subr.mxu0 0.0
      %156 = vmatpush1.msra.mxu0 0.0
      %157 = vmatprep.subr.mxu0 0.0
      %158 = vmatpush1.msra.mxu0 0.0
      %159 = vmatprep.subr.mxu0 0.0
      %160 = vmatpush1.msra.mxu0 0.0
      %161 = vmatprep.subr.mxu0 0.0
      %162 = vmatpush1.msra.mxu0 0.0
      %163 = vmatprep.subr.mxu0 0.0
      %164 = vmatpush1.msra.mxu0 0.0
      %165 = vmatprep.subr.mxu0 0.0
      %166 = vmatpush1.msra.mxu0 0.0
      %167 = vmatprep.subr.mxu0 0.0
      %168 = vmatpush1.msra.mxu0 0.0
      %169 = vmatprep.subr.mxu0 0.0
      %170 = vmatpush1.msra.mxu0 0.0
      %171 = vmatprep.subr.mxu0 0.0
      %172 = vmatpush1.msra.mxu0 0.0
      %173 = vmatprep.subr.mxu0 0.0
      %174 = vmatpush1.msra.mxu0 0.0
      %175 = vmatprep.subr.mxu0 0.0
      %176 = vmatpush1.msra.mxu0 0.0
      %177 = vmatprep.subr.mxu0 0.0
      %178 = vmatpush1.msra.mxu0 0.0
      %179 = vmatprep.subr.mxu0 0.0
      %180 = vmatpush1.msra.mxu0 0.0
      %181 = vmatprep.subr.mxu0 0.0
      %182 = vmatpush1.msra.mxu0 0.0
      %183 = vmatprep.subr.mxu0 0.0
      %184 = vmatpush1.msra.mxu0 0.0
      %185 = vmatprep.subr.mxu0 0.0
      %186 = vmatpush1.msra.mxu0 0.0
      %187 = vmatprep.subr.mxu0 0.0
      %188 = vmatpush1.msra.mxu0 0.0
      %189 = vmatprep.subr.mxu0 0.0
      %190 = vmatpush1.msra.mxu0 0.0
      %191 = vmatprep.subr.mxu0 0.0
      %192 = vmatpush1.msra.mxu0 0.0
      %193 = vmatprep.subr.mxu0 0.0
      %194 = vmatpush1.msra.mxu0 0.0
      %195 = vmatprep.subr.mxu0 0.0
      %196 = vmatpush1.msra.mxu0 0.0
      %197 = vmatprep.subr.mxu0 0.0
      %198 = vmatpush1.msra.mxu0 0.0
      %199 = vmatprep.subr.mxu0 0.0
      %200 = vmatpush1.msra.mxu0 0.0
      %201 = vmatprep.subr.mxu0 0.0
      %202 = vmatpush1.msra.mxu0 0.0
      %203 = vmatprep.subr.mxu0 0.0
      %204 = vmatpush1.msra.mxu0 0.0
      %205 = vmatprep.subr.mxu0 0.0
      %206 = vmatpush1.msra.mxu0 0.0
      %207 = vmatprep.subr.mxu0 0.0
      %208 = vmatpush1.msra.mxu0 0.0
      %209 = vmatprep.subr.mxu0 0.0
      %210 = vmatpush1.msra.mxu0 0.0
      %211 = vmatprep.subr.mxu0 0.0
      %212 = vmatpush1.msra.mxu0 0.0
      %213 = vmatprep.mubr.f32.mxu0 0.0
      %214 = vmatmul.mubr.f32.gmra.mrb[0].mxu0 %v143
      %v215 = vpop.f32.mrb[0].mxu0
      %v216 = vadd.f32 0.0, %v215
      %v217 = vpop.f32.mrb[0].mxu0
      %218 = vdwg.mxu0
      %vm219 = vcmask 195584
      %220 = vst.msk [vmem:[%s138] sm:$0xff] %vm219, %v216
      %p221 = scmp.lt.s32.totalorder %s13, 1
      %s222 = scalar_select %p221, %s13, 1
      %s223 = smul.addr %s222, 8
      %s224 = scalar_lea.vmem %s2, %s223
      // Predicated region
      $region29: #{unet1d_forward.21} parent=27 // pred_check
        %p225 = pneg %p78
      $region30: #{unet1d_forward.21} parent=27 // pred_check_branch
        %227 = sbr.rel (%p225) target = $region32
      $region31: #{unet1d_forward.21} parent=27 // pred_region
        _
      $region32: #{unet1d_forward.21} parent=27 // pred_fallthru
        _
    $region28: #{unet1d_forward.21} parent=5 // pred_fallthru
      _
    %p228 = scmp.le.s32.totalorder 2, %s8
    // Predicated region
    $region33: #{unet1d_forward.21} parent=5 // pred_check
      %p229 = pneg %p228
    $region34: #{unet1d_forward.21} parent=5 // pred_check_branch
      %231 = sbr.rel (%p229) target = $region36
    $region35: #{unet1d_forward.21} parent=5 // pred_region
      %s232 = ssub.s32 %s8, 2
      // Predicated region
      $region37: #{unet1d_forward.21} parent=35 // pred_check
        %p233 = pneg %p84
      $region38: #{unet1d_forward.21} parent=35 // pred_check_branch
        %235 = sbr.rel (%p233) target = $region40
      $region39: #{unet1d_forward.21} parent=35 // pred_region
        %p236 = scmp.lt.s32.totalorder %s14, 1
        %s237 = scalar_select %p236, %s14, 1
        %s238 = smul.addr %s237, 8
        %s239 = scalar_lea.vmem %s2, %s238
      $region40: #{unet1d_forward.21} parent=35 // pred_fallthru
        _
    $region36: #{unet1d_forward.21} parent=5 // pred_fallthru
      _
  $region6: #{unet1d_forward.21} parent=0 // loop_footer
    %s12 = sadd.s32 1, %s8
  $region7: #{unet1d_forward.21} parent=0 // loop_footer_branch
    %7 = sbr.rel target = $region3
  $region8: #{unet1d_forward.21} parent=0 // loop_exit
    _

// kernel: unet1d_forward.22
$region0: #{unet1d_forward.22}
  #allocation0 [shape = 'u32[]', space=smem, size = 0x4, offset = 0x4, fixed_abs, tag = 'smem constant byte address 0x4 - core index']
  #allocation1 [shape = 'u32[144,128]{1,0:T(1,128)}', space=vmem, size = 0x12000, scoped, tag = 'internal scratch']
  %s0 = inlined_call_operand.vmem [shape: f32[16,200], index: 0, kind: input, shape index: {}]
  %s1 = inlined_call_operand.vmem [shape: f32[200,16], index: 1, kind: input, shape index: {}]
  %s2 = inlined_call_operand.vmem [shape: f32[1,16], index: 2, kind: input, shape index: {}]
  %s3 = inlined_call_operand.vmem [shape: f32[16,16], index: 3, kind: output, shape index: {}]
  %s4 = sld [smem:[#allocation0]]
  $region22: #{unet1d_forward.22} parent=0
    _
  %s6 = ssub.s32 1, %s4
  %s7 = scalar_select 0, %s6, %s4
  // Predicated region
  $region2: #{unet1d_forward.22} parent=0 // pred_check
    _
  $region3: #{unet1d_forward.22} parent=0 // pred_check_branch
    %9 = sbr.rel (0) target = $region5
  $region4: #{unet1d_forward.22} parent=0 // pred_region
    _
  $region5: #{unet1d_forward.22} parent=0 // pred_fallthru
    _
  // Predicated region
  $region6: #{unet1d_forward.22} parent=0 // pred_check
    _
  $region7: #{unet1d_forward.22} parent=0 // pred_check_branch
    %11 = sbr.rel (0) target = $region9
  $region8: #{unet1d_forward.22} parent=0 // pred_region
    _
  $region9: #{unet1d_forward.22} parent=0 // pred_fallthru
    _
  // Predicated region
  $region10: #{unet1d_forward.22} parent=0 // pred_check
    _
  $region11: #{unet1d_forward.22} parent=0 // pred_check_branch
    %13 = sbr.rel (0) target = $region13
  $region12: #{unet1d_forward.22} parent=0 // pred_region
    _
  $region13: #{unet1d_forward.22} parent=0 // pred_fallthru
    _
  %v14 = vld [vmem:[%s0] sm:$0xff]
  %v15 = vld [vmem:[%s0 + $0x8] sm:$0xff]
  %v16 = vld [vmem:[%s0 + $0x10] sm:$0xff]
  %v17 = vld [vmem:[%s0 + $0x18] sm:$0xff]
  %v18 = vld [vmem:[%s1] sm:$0xff]
  %v19 = vld [vmem:[%s1 + $0x8] sm:$0xff]
  %v20 = vld [vmem:[%s1 + $0x10] sm:$0xff]
  %v21 = vld [vmem:[%s1 + $0x18] sm:$0xff]
  %v22 = vld [vmem:[%s1 + $0x20] sm:$0xff]
  %v23 = vld [vmem:[%s1 + $0x28] sm:$0xff]
  %v24 = vld [vmem:[%s1 + $0x30] sm:$0xff]
  %v25 = vld [vmem:[%s1 + $0x38] sm:$0xff]
  %v26 = vld [vmem:[%s1 + $0x40] sm:$0xff]
  %v27 = vld [vmem:[%s1 + $0x48] sm:$0xff]
  %v28 = vld [vmem:[%s1 + $0x50] sm:$0xff]
  %v29 = vld [vmem:[%s1 + $0x58] sm:$0xff]
  %v30 = vld [vmem:[%s1 + $0x60] sm:$0xff]
  %v31 = vld [vmem:[%s1 + $0x68] sm:$0xff]
  %v32 = vld [vmem:[%s1 + $0x70] sm:$0xff]
  %v33 = vld [vmem:[%s1 + $0x78] sm:$0xff]
  %v34 = vld [vmem:[%s1 + $0x80] sm:$0xff]
  %v35 = vld [vmem:[%s1 + $0x88] sm:$0xff]
  %v36 = vld [vmem:[%s1 + $0x90] sm:$0xff]
  %v37 = vld [vmem:[%s1 + $0x98] sm:$0xff]
  %v38 = vld [vmem:[%s1 + $0xa0] sm:$0xff]
  %v39 = vld [vmem:[%s1 + $0xa8] sm:$0xff]
  %v40 = vld [vmem:[%s1 + $0xb0] sm:$0xff]
  %v41 = vld [vmem:[%s1 + $0xb8] sm:$0xff]
  %v42 = vld [vmem:[%s1 + $0xc0] sm:$0xff]
  %v43 = vld [vmem:[%s2] sm:$0x1]
  %v45 = vlaneseq
  %v46 = vshrl.u32 %v45, 7
  %v47 = vsub.s32 0, %v46
  %v48 = vrot.slane %v43, %v47
  %vm50 = vcmask 588800
  %v52 = vsel %vm50, %v15, 0
  %v55 = vsel %vm50, %v17, 0
  %57 = vmatprep.subr.mxu0 0.0
  %58 = vmatpush1.msra.mxu0 %v18
  %59 = vmatprep.subr.mxu0 0.0
  %60 = vmatpush1.msra.mxu0 %v19
  %61 = vmatprep.subr.mxu0 0.0
  %62 = vmatpush1.msra.mxu0 %v20
  %63 = vmatprep.subr.mxu0 0.0
  %64 = vmatpush1.msra.mxu0 %v21
  %65 = vmatprep.subr.mxu0 0.0
  %66 = vmatpush1.msra.mxu0 %v22
  %67 = vmatprep.subr.mxu0 0.0
  %68 = vmatpush1.msra.mxu0 %v23
  %69 = vmatprep.subr.mxu0 0.0
  %70 = vmatpush1.msra.mxu0 %v24
  %71 = vmatprep.subr.mxu0 0.0
  %72 = vmatpush1.msra.mxu0 %v25
  %73 = vmatprep.subr.mxu0 0.0
  %74 = vmatpush1.msra.mxu0 %v26
  %75 = vmatprep.subr.mxu0 0.0
  %76 = vmatpush1.msra.mxu0 %v27
  %77 = vmatprep.subr.mxu0 0.0
  %78 = vmatpush1.msra.mxu0 %v28
  %79 = vmatprep.subr.mxu0 0.0
  %80 = vmatpush1.msra.mxu0 %v29
  %81 = vmatprep.subr.mxu0 0.0
  %82 = vmatpush1.msra.mxu0 %v30
  %83 = vmatprep.subr.mxu0 0.0
  %84 = vmatpush1.msra.mxu0 %v31
  %85 = vmatprep.subr.mxu0 0.0
  %86 = vmatpush1.msra.mxu0 %v32
  %87 = vmatprep.subr.mxu0 0.0
  %88 = vmatpush1.msra.mxu0 %v33
  %89 = vmatprep.subr.mxu0 0.0
  %90 = vmatpush1.msra.mxu0 %v34
  %91 = vmatprep.subr.mxu0 0.0
  %92 = vmatpush1.msra.mxu0 %v35
  %93 = vmatprep.subr.mxu0 0.0
  %94 = vmatpush1.msra.mxu0 %v36
  %95 = vmatprep.subr.mxu0 0.0
  %96 = vmatpush1.msra.mxu0 %v37
  %97 = vmatprep.subr.mxu0 0.0
  %98 = vmatpush1.msra.mxu0 %v38
  %99 = vmatprep.subr.mxu0 0.0
  %100 = vmatpush1.msra.mxu0 %v39
  %101 = vmatprep.subr.mxu0 0.0
  %102 = vmatpush1.msra.mxu0 %v40
  %103 = vmatprep.subr.mxu0 0.0
  %104 = vmatpush1.msra.mxu0 %v41
  %105 = vmatprep.subr.mxu0 0.0
  %106 = vmatpush1.msra.mxu0 %v42
  %107 = vmatprep.subr.mxu0 0.0
  %108 = vmatpush1.msra.mxu0 0.0
  %109 = vmatprep.subr.mxu0 0.0
  %110 = vmatpush1.msra.mxu0 0.0
  %111 = vmatprep.subr.mxu0 0.0
  %112 = vmatpush1.msra.mxu0 0.0
  %113 = vmatprep.subr.mxu0 0.0
  %114 = vmatpush1.msra.mxu0 0.0
  %115 = vmatprep.subr.mxu0 0.0
  %116 = vmatpush1.msra.mxu0 0.0
  %117 = vmatprep.subr.mxu0 0.0
  %118 = vmatpush1.msra.mxu0 0.0
  %119 = vmatprep.subr.mxu0 0.0
  %120 = vmatpush1.msra.mxu0 0.0
  %121 = vmatprep.mubr.f32.mxu0 %v52
  %122 = vmatmul.mubr.f32.gmra.mrb[0].mxu0 %v14
  %v123 = vpop.f32.mrb[0].mxu0
  %v124 = vadd.f32 %v48, %v123
  %v125 = vpop.f32.mrb[0].mxu0
  %126 = vmatprep.mubr.f32.mxu0 %v55
  %127 = vmatmul.mubr.f32.gmra.mrb[0].mxu0 %v16
  %v128 = vpop.f32.mrb[0].mxu0
  %v129 = vadd.f32 %v48, %v128
  %v130 = vpop.f32.mrb[0].mxu0
  %131 = vdwg.mxu0
  %v132 = vmax.f32 %v124, 0.0
  %v133 = vmax.f32 %v129, 0.0
  %vm134 = vcmask 130048
  %135 = vst.msk [vmem:[%s3] sm:$0xff] %vm134, %v132
  %136 = vst.msk [vmem:[%s3 + $0x8] sm:$0xff] %vm134, %v133
  // Predicated region
  $region14: #{unet1d_forward.22} parent=0 // pred_check
    _
  $region15: #{unet1d_forward.22} parent=0 // pred_check_branch
    %138 = sbr.rel (0) target = $region17
  $region16: #{unet1d_forward.22} parent=0 // pred_region
    _
  $region17: #{unet1d_forward.22} parent=0 // pred_fallthru
    _
  // Predicated region
  $region18: #{unet1d_forward.22} parent=0 // pred_check
    _
  $region19: #{unet1d_forward.22} parent=0 // pred_check_branch
    %140 = sbr.rel (0) target = $region21
  $region20: #{unet1d_forward.22} parent=0 // pred_region
    _
  $region21: #{unet1d_forward.22} parent=0 // pred_fallthru
    _

// kernel: unet1d_forward.23
$region0: #{unet1d_forward.23}
  #allocation0 [shape = 'u32[]', space=smem, size = 0x4, offset = 0x4, fixed_abs, tag = 'smem constant byte address 0x4 - core index']
  #allocation1 [shape = 'u32[144,128]{1,0:T(1,128)}', space=vmem, size = 0x12000, scoped, tag = 'internal scratch']
  %s0 = inlined_call_operand.vmem [shape: f32[16,8], index: 0, kind: input, shape index: {}]
  %s1 = inlined_call_operand.vmem [shape: f32[2,8,16], index: 1, kind: input, shape index: {}]
  %s2 = inlined_call_operand.vmem [shape: f32[2,16,16], index: 2, kind: output, shape index: {}]
  %s3 = sld [smem:[#allocation0]]
  $region41: #{unet1d_forward.23} parent=0
    _
  %s5 = ssub.s32 1, %s3
  %s6 = scalar_select 0, %s5, %s3
  loop: start=0, step=1, limit=4
  $region2: #{unet1d_forward.23} parent=0 // loop_pre_header
    _
  $region3: #{unet1d_forward.23} parent=0 // loop_header
    %s8 = sphi 0, %s12
    %p9 = scmp.ge.s32.totalorder %s8, 4
    %s16 = sphi 0, %s16
    %s18 = sphi 0, %s16
    %s19 = sphi 0, %s18
    %s33 = sphi 0, %s19
    %s39 = sphi 0, %s41
    %s42 = sphi 0, %s39
    %s43 = sphi 0, %s42
    %s59 = sphi 0, %s43
    %s65 = sphi 0, %s67
    %s68 = sphi 0, %s65
    %s69 = sphi 0, %s68
    %s85 = sphi 0, %s69
  $region4: #{unet1d_forward.23} parent=0 // loop_header_branch
    %11 = sbr.rel (%p9) target = $region8
  $region5: #{unet1d_forward.23} parent=0 // loop_body
    %s13 = ssub.s32 %s8, 1
    %s14 = ssub.s32 %s8, 2
    %s15 = sadd.s32 %s8, 1
    %s17 = sadd.s32 %s16, 1
    %p20 = scmp.eq.s32.totalorder %s8, 1
    %p21 = scmp.ne.s32.totalorder %s16, %s18
    %p22 = scmp.eq.s32.totalorder %s8, 0
    %p23 = por %p21, %p22
    %p24 = scmp.ne.s32.totalorder %s16, %s18
    %p25 = scmp.eq.s32.totalorder %s13, 1
    %p26 = por %p24, %p25
    %p27 = scmp.ne.s32.totalorder %s18, %s19
    %p28 = scmp.eq.s32.totalorder %s13, 0
    %p29 = por %p27, %p28
    %p30 = scmp.ne.s32.totalorder %s18, %s19
    %p31 = scmp.eq.s32.totalorder %s14, 1
    %p32 = por %p30, %p31
    %p34 = scmp.ne.s32.totalorder %s19, %s33
    %p35 = scmp.eq.s32.totalorder %s14, 0
    %p36 = por %p34, %p35
    %s37 = ssub.s32 %s8, %s15
    %p38 = scmp.eq.s32.totalorder %s37, 0
    %s40 = sadd.s32 %s39, 1
    %s41 = scalar_select %p38, %s39, %s40
    %p44 = pneg %p38
    %p45 = scmp.eq.s32.totalorder %s8, 1
    %p46 = por %p44, %p45
    %p47 = scmp.ne.s32.totalorder %s39, %s42
    %p48 = scmp.eq.s32.totalorder %s8, 0
    %p49 = por %p47, %p48
    %p50 = scmp.ne.s32.totalorder %s39, %s42
    %p51 = scmp.eq.s32.totalorder %s13, 1
    %p52 = por %p50, %p51
    %p53 = scmp.ne.s32.totalorder %s42, %s43
    %p54 = scmp.eq.s32.totalorder %s13, 0
    %p55 = por %p53, %p54
    %p56 = scmp.ne.s32.totalorder %s42, %s43
    %p57 = scmp.eq.s32.totalorder %s14, 1
    %p58 = por %p56, %p57
    %p60 = scmp.ne.s32.totalorder %s43, %s59
    %p61 = scmp.eq.s32.totalorder %s14, 0
    %p62 = por %p60, %p61
    %s63 = ssub.s32 %s8, %s15
    %p64 = scmp.eq.s32.totalorder %s63, 0
    %s66 = sadd.s32 %s65, 1
    %s67 = scalar_select %p64, %s65, %s66
    %p70 = pneg %p64
    %p71 = scmp.eq.s32.totalorder %s8, 1
    %p72 = por %p70, %p71
    %p73 = scmp.ne.s32.totalorder %s65, %s68
    %p74 = scmp.eq.s32.totalorder %s8, 0
    %p75 = por %p73, %p74
    %p76 = scmp.ne.s32.totalorder %s65, %s68
    %p77 = scmp.eq.s32.totalorder %s13, 1
    %p78 = por %p76, %p77
    %p79 = scmp.ne.s32.totalorder %s68, %s69
    %p80 = scmp.eq.s32.totalorder %s13, 0
    %p81 = por %p79, %p80
    %p82 = scmp.ne.s32.totalorder %s68, %s69
    %p83 = scmp.eq.s32.totalorder %s14, 1
    %p84 = por %p82, %p83
    %p86 = scmp.ne.s32.totalorder %s69, %s85
    %p87 = scmp.eq.s32.totalorder %s14, 0
    %p88 = por %p86, %p87
    %p89 = scmp.le.s32.totalorder 1, %s8
    %p90 = scmp.lt.s32.totalorder %s8, 3
    %p91 = pnand %p89, %p90
    %p92 = pneg %p91
    // Predicated region
    $region9: #{unet1d_forward.23} parent=5 // pred_check
      _
    $region10: #{unet1d_forward.23} parent=5 // pred_check_branch
      %94 = sbr.rel (%p91) target = $region12
    $region11: #{unet1d_forward.23} parent=5 // pred_region
      %s95 = ssub.s32 %s8, 1
      // Predicated region
      $region13: #{unet1d_forward.23} parent=11 // pred_check
        %p96 = pneg %p29
      $region14: #{unet1d_forward.23} parent=11 // pred_check_branch
        %98 = sbr.rel (%p96) target = $region16
      $region15: #{unet1d_forward.23} parent=11 // pred_region
        _
      $region16: #{unet1d_forward.23} parent=11 // pred_fallthru
        _
    $region12: #{unet1d_forward.23} parent=5 // pred_fallthru
      _
    %p99 = scmp.lt.s32.totalorder %s8, 2
    // Predicated region
    $region17: #{unet1d_forward.23} parent=5 // pred_check
      %p100 = pneg %p99
    $region18: #{unet1d_forward.23} parent=5 // pred_check_branch
      %102 = sbr.rel (%p100) target = $region20
    $region19: #{unet1d_forward.23} parent=5 // pred_region
      // Predicated region
      $region21: #{unet1d_forward.23} parent=19 // pred_check
        %p103 = pneg %p49
      $region22: #{unet1d_forward.23} parent=19 // pred_check_branch
        %105 = sbr.rel (%p103) target = $region24
      $region23: #{unet1d_forward.23} parent=19 // pred_region
        %p106 = scmp.lt.s32.totalorder %s8, 1
        %s107 = scalar_select %p106, %s8, 1
        %s108 = smul.addr %s107, 8
        %s109 = scalar_lea.vmem %s1, %s108
      $region24: #{unet1d_forward.23} parent=19 // pred_fallthru
        _
    $region20: #{unet1d_forward.23} parent=5 // pred_fallthru
      _
    %p110 = scmp.le.s32.totalorder 1, %s8
    %p111 = scmp.lt.s32.totalorder %s8, 3
    %p112 = pnand %p110, %p111
    %p113 = pneg %p112
    // Predicated region
    $region25: #{unet1d_forward.23} parent=5 // pred_check
      _
    $region26: #{unet1d_forward.23} parent=5 // pred_check_branch
      %115 = sbr.rel (%p112) target = $region28
    $region27: #{unet1d_forward.23} parent=5 // pred_region
      %s116 = ssub.s32 %s8, 1
      %p117 = pneg %p29
      %p118 = pneg %p26
      %p119 = scmp.lt.s32.totalorder %s13, 1
      %s120 = scalar_select %p119, %s13, 1
      %s121 = smul.addr %s120, 8
      %s122 = scalar_lea.vmem %s1, %s121
      %p123 = pneg %p55
      %p124 = pneg %p52
      %p125 = pneg %p81
      %p126 = pneg %p78
      %p127 = scmp.lt.s32.totalorder %s13, 1
      %s128 = scalar_select %p127, %s13, 1
      %s129 = smul.addr %s128, 2
      %s130 = smul.addr %s129, 8
      %s131 = scalar_lea.vmem %s2, %s130
      %p132 = scmp.lt.s32.totalorder %s13, 1
      %s133 = scalar_select %p132, %s13, 1
      %s134 = smul.addr %s133, 8
      %s135 = scalar_lea.vmem %s1, %s134
      %p136 = scmp.lt.s32.totalorder %s13, 1
      %s137 = scalar_select %p136, %s13, 1
      %s138 = smul.addr %s137, 2
      %s139 = smul.addr %s138, 8
      %s140 = scalar_lea.vmem %s2, %s139
      %v141 = vld [vmem:[%s0] sm:$0xff]
      %v142 = vld [vmem:[%s0 + $0x8] sm:$0xff]
      %v143 = vld [vmem:[%s135] sm:$0xff]
      %vm144 = vcmask 64512
      %v146 = vsel %vm144, %v141, 0
      %v149 = vsel %vm144, %v142, 0
      %151 = vmatprep.subr.mxu0 0.0
      %152 = vmatpush1.msra.mxu0 %v143
      %153 = vmatprep.subr.mxu0 0.0
      %154 = vmatpush1.msra.mxu0 0.0
      %155 = vmatprep.subr.mxu0 0.0
      %156 = vmatpush1.msra.mxu0 0.0
      %157 = vmatprep.subr.mxu0 0.0
      %158 = vmatpush1.msra.mxu0 0.0
      %159 = vmatprep.subr.mxu0 0.0
      %160 = vmatpush1.msra.mxu0 0.0
      %161 = vmatprep.subr.mxu0 0.0
      %162 = vmatpush1.msra.mxu0 0.0
      %163 = vmatprep.subr.mxu0 0.0
      %164 = vmatpush1.msra.mxu0 0.0
      %165 = vmatprep.subr.mxu0 0.0
      %166 = vmatpush1.msra.mxu0 0.0
      %167 = vmatprep.subr.mxu0 0.0
      %168 = vmatpush1.msra.mxu0 0.0
      %169 = vmatprep.subr.mxu0 0.0
      %170 = vmatpush1.msra.mxu0 0.0
      %171 = vmatprep.subr.mxu0 0.0
      %172 = vmatpush1.msra.mxu0 0.0
      %173 = vmatprep.subr.mxu0 0.0
      %174 = vmatpush1.msra.mxu0 0.0
      %175 = vmatprep.subr.mxu0 0.0
      %176 = vmatpush1.msra.mxu0 0.0
      %177 = vmatprep.subr.mxu0 0.0
      %178 = vmatpush1.msra.mxu0 0.0
      %179 = vmatprep.subr.mxu0 0.0
      %180 = vmatpush1.msra.mxu0 0.0
      %181 = vmatprep.subr.mxu0 0.0
      %182 = vmatpush1.msra.mxu0 0.0
      %183 = vmatprep.subr.mxu0 0.0
      %184 = vmatpush1.msra.mxu0 0.0
      %185 = vmatprep.subr.mxu0 0.0
      %186 = vmatpush1.msra.mxu0 0.0
      %187 = vmatprep.subr.mxu0 0.0
      %188 = vmatpush1.msra.mxu0 0.0
      %189 = vmatprep.subr.mxu0 0.0
      %190 = vmatpush1.msra.mxu0 0.0
      %191 = vmatprep.subr.mxu0 0.0
      %192 = vmatpush1.msra.mxu0 0.0
      %193 = vmatprep.subr.mxu0 0.0
      %194 = vmatpush1.msra.mxu0 0.0
      %195 = vmatprep.subr.mxu0 0.0
      %196 = vmatpush1.msra.mxu0 0.0
      %197 = vmatprep.subr.mxu0 0.0
      %198 = vmatpush1.msra.mxu0 0.0
      %199 = vmatprep.subr.mxu0 0.0
      %200 = vmatpush1.msra.mxu0 0.0
      %201 = vmatprep.subr.mxu0 0.0
      %202 = vmatpush1.msra.mxu0 0.0
      %203 = vmatprep.subr.mxu0 0.0
      %204 = vmatpush1.msra.mxu0 0.0
      %205 = vmatprep.subr.mxu0 0.0
      %206 = vmatpush1.msra.mxu0 0.0
      %207 = vmatprep.subr.mxu0 0.0
      %208 = vmatpush1.msra.mxu0 0.0
      %209 = vmatprep.subr.mxu0 0.0
      %210 = vmatpush1.msra.mxu0 0.0
      %211 = vmatprep.subr.mxu0 0.0
      %212 = vmatpush1.msra.mxu0 0.0
      %213 = vmatprep.subr.mxu0 0.0
      %214 = vmatpush1.msra.mxu0 0.0
      %215 = vmatprep.mubr.f32.mxu0 0.0
      %216 = vmatmul.mubr.f32.gmra.mrb[0].mxu0 %v146
      %v217 = vpop.f32.mrb[0].mxu0
      %v218 = vadd.f32 0.0, %v217
      %v219 = vpop.f32.mrb[0].mxu0
      %220 = vmatprep.mubr.f32.mxu0 0.0
      %221 = vmatmul.mubr.f32.gmra.mrb[0].mxu0 %v149
      %v222 = vpop.f32.mrb[0].mxu0
      %v223 = vadd.f32 0.0, %v222
      %v224 = vpop.f32.mrb[0].mxu0
      %225 = vdwg.mxu0
      %vm226 = vcmask 130048
      %227 = vst.msk [vmem:[%s140] sm:$0xff] %vm226, %v218
      %228 = vst.msk [vmem:[%s140 + $0x8] sm:$0xff] %vm226, %v223
      %p229 = scmp.lt.s32.totalorder %s13, 1
      %s230 = scalar_select %p229, %s13, 1
      %s231 = smul.addr %s230, 2
      %s232 = smul.addr %s231, 8
      %s233 = scalar_lea.vmem %s2, %s232
      // Predicated region
      $region29: #{unet1d_forward.23} parent=27 // pred_check
        %p234 = pneg %p78
      $region30: #{unet1d_forward.23} parent=27 // pred_check_branch
        %236 = sbr.rel (%p234) target = $region32
      $region31: #{unet1d_forward.23} parent=27 // pred_region
        _
      $region32: #{unet1d_forward.23} parent=27 // pred_fallthru
        _
    $region28: #{unet1d_forward.23} parent=5 // pred_fallthru
      _
    %p237 = scmp.le.s32.totalorder 2, %s8
    // Predicated region
    $region33: #{unet1d_forward.23} parent=5 // pred_check
      %p238 = pneg %p237
    $region34: #{unet1d_forward.23} parent=5 // pred_check_branch
      %240 = sbr.rel (%p238) target = $region36
    $region35: #{unet1d_forward.23} parent=5 // pred_region
      %s241 = ssub.s32 %s8, 2
      // Predicated region
      $region37: #{unet1d_forward.23} parent=35 // pred_check
        %p242 = pneg %p84
      $region38: #{unet1d_forward.23} parent=35 // pred_check_branch
        %244 = sbr.rel (%p242) target = $region40
      $region39: #{unet1d_forward.23} parent=35 // pred_region
        %p245 = scmp.lt.s32.totalorder %s14, 1
        %s246 = scalar_select %p245, %s14, 1
        %s247 = smul.addr %s246, 2
        %s248 = smul.addr %s247, 8
        %s249 = scalar_lea.vmem %s2, %s248
      $region40: #{unet1d_forward.23} parent=35 // pred_fallthru
        _
    $region36: #{unet1d_forward.23} parent=5 // pred_fallthru
      _
  $region6: #{unet1d_forward.23} parent=0 // loop_footer
    %s12 = sadd.s32 1, %s8
  $region7: #{unet1d_forward.23} parent=0 // loop_footer_branch
    %7 = sbr.rel target = $region3
  $region8: #{unet1d_forward.23} parent=0 // loop_exit
    _

// kernel: unet1d_forward.24
$region0: #{unet1d_forward.24}
  #allocation0 [shape = 'u32[]', space=smem, size = 0x4, offset = 0x4, fixed_abs, tag = 'smem constant byte address 0x4 - core index']
  #allocation1 [shape = 'u32[144,128]{1,0:T(1,128)}', space=vmem, size = 0x12000, scoped, tag = 'internal scratch']
  %s0 = inlined_call_operand.vmem [shape: f32[32,120], index: 0, kind: input, shape index: {}]
  %s1 = inlined_call_operand.vmem [shape: f32[120,8], index: 1, kind: input, shape index: {}]
  %s2 = inlined_call_operand.vmem [shape: f32[1,8], index: 2, kind: input, shape index: {}]
  %s3 = inlined_call_operand.vmem [shape: f32[32,8], index: 3, kind: output, shape index: {}]
  %s4 = sld [smem:[#allocation0]]
  $region22: #{unet1d_forward.24} parent=0
    _
  %s6 = ssub.s32 1, %s4
  %s7 = scalar_select 0, %s6, %s4
  // Predicated region
  $region2: #{unet1d_forward.24} parent=0 // pred_check
    _
  $region3: #{unet1d_forward.24} parent=0 // pred_check_branch
    %9 = sbr.rel (0) target = $region5
  $region4: #{unet1d_forward.24} parent=0 // pred_region
    _
  $region5: #{unet1d_forward.24} parent=0 // pred_fallthru
    _
  // Predicated region
  $region6: #{unet1d_forward.24} parent=0 // pred_check
    _
  $region7: #{unet1d_forward.24} parent=0 // pred_check_branch
    %11 = sbr.rel (0) target = $region9
  $region8: #{unet1d_forward.24} parent=0 // pred_region
    _
  $region9: #{unet1d_forward.24} parent=0 // pred_fallthru
    _
  // Predicated region
  $region10: #{unet1d_forward.24} parent=0 // pred_check
    _
  $region11: #{unet1d_forward.24} parent=0 // pred_check_branch
    %13 = sbr.rel (0) target = $region13
  $region12: #{unet1d_forward.24} parent=0 // pred_region
    _
  $region13: #{unet1d_forward.24} parent=0 // pred_fallthru
    _
  %v14 = vld [vmem:[%s0] sm:$0xff]
  %v15 = vld [vmem:[%s0 + $0x8] sm:$0xff]
  %v16 = vld [vmem:[%s0 + $0x10] sm:$0xff]
  %v17 = vld [vmem:[%s0 + $0x18] sm:$0xff]
  %v18 = vld [vmem:[%s1] sm:$0xff]
  %v19 = vld [vmem:[%s1 + $0x8] sm:$0xff]
  %v20 = vld [vmem:[%s1 + $0x10] sm:$0xff]
  %v21 = vld [vmem:[%s1 + $0x18] sm:$0xff]
  %v22 = vld [vmem:[%s1 + $0x20] sm:$0xff]
  %v23 = vld [vmem:[%s1 + $0x28] sm:$0xff]
  %v24 = vld [vmem:[%s1 + $0x30] sm:$0xff]
  %v25 = vld [vmem:[%s1 + $0x38] sm:$0xff]
  %v26 = vld [vmem:[%s1 + $0x40] sm:$0xff]
  %v27 = vld [vmem:[%s1 + $0x48] sm:$0xff]
  %v28 = vld [vmem:[%s1 + $0x50] sm:$0xff]
  %v29 = vld [vmem:[%s1 + $0x58] sm:$0xff]
  %v30 = vld [vmem:[%s1 + $0x60] sm:$0xff]
  %v31 = vld [vmem:[%s1 + $0x68] sm:$0xff]
  %v32 = vld [vmem:[%s1 + $0x70] sm:$0xff]
  %v33 = vld [vmem:[%s2] sm:$0x1]
  %v35 = vlaneseq
  %v36 = vshrl.u32 %v35, 7
  %v37 = vsub.s32 0, %v36
  %v38 = vrot.slane %v33, %v37
  %vm40 = vcmask 982016
  %v42 = vsel %vm40, %v14, 0
  %v45 = vsel %vm40, %v15, 0
  %v48 = vsel %vm40, %v16, 0
  %v51 = vsel %vm40, %v17, 0
  %53 = vmatprep.subr.mxu0 0.0
  %54 = vmatpush1.msra.mxu0 %v18
  %55 = vmatprep.subr.mxu0 0.0
  %56 = vmatpush1.msra.mxu0 %v19
  %57 = vmatprep.subr.mxu0 0.0
  %58 = vmatpush1.msra.mxu0 %v20
  %59 = vmatprep.subr.mxu0 0.0
  %60 = vmatpush1.msra.mxu0 %v21
  %61 = vmatprep.subr.mxu0 0.0
  %62 = vmatpush1.msra.mxu0 %v22
  %63 = vmatprep.subr.mxu0 0.0
  %64 = vmatpush1.msra.mxu0 %v23
  %65 = vmatprep.subr.mxu0 0.0
  %66 = vmatpush1.msra.mxu0 %v24
  %67 = vmatprep.subr.mxu0 0.0
  %68 = vmatpush1.msra.mxu0 %v25
  %69 = vmatprep.subr.mxu0 0.0
  %70 = vmatpush1.msra.mxu0 %v26
  %71 = vmatprep.subr.mxu0 0.0
  %72 = vmatpush1.msra.mxu0 %v27
  %73 = vmatprep.subr.mxu0 0.0
  %74 = vmatpush1.msra.mxu0 %v28
  %75 = vmatprep.subr.mxu0 0.0
  %76 = vmatpush1.msra.mxu0 %v29
  %77 = vmatprep.subr.mxu0 0.0
  %78 = vmatpush1.msra.mxu0 %v30
  %79 = vmatprep.subr.mxu0 0.0
  %80 = vmatpush1.msra.mxu0 %v31
  %81 = vmatprep.subr.mxu0 0.0
  %82 = vmatpush1.msra.mxu0 %v32
  %83 = vmatprep.subr.mxu0 0.0
  %84 = vmatpush1.msra.mxu0 0.0
  %85 = vmatprep.subr.mxu0 0.0
  %86 = vmatpush1.msra.mxu0 0.0
  %87 = vmatprep.subr.mxu0 0.0
  %88 = vmatpush1.msra.mxu0 0.0
  %89 = vmatprep.subr.mxu0 0.0
  %90 = vmatpush1.msra.mxu0 0.0
  %91 = vmatprep.subr.mxu0 0.0
  %92 = vmatpush1.msra.mxu0 0.0
  %93 = vmatprep.subr.mxu0 0.0
  %94 = vmatpush1.msra.mxu0 0.0
  %95 = vmatprep.subr.mxu0 0.0
  %96 = vmatpush1.msra.mxu0 0.0
  %97 = vmatprep.subr.mxu0 0.0
  %98 = vmatpush1.msra.mxu0 0.0
  %99 = vmatprep.subr.mxu0 0.0
  %100 = vmatpush1.msra.mxu0 0.0
  %101 = vmatprep.subr.mxu0 0.0
  %102 = vmatpush1.msra.mxu0 0.0
  %103 = vmatprep.subr.mxu0 0.0
  %104 = vmatpush1.msra.mxu0 0.0
  %105 = vmatprep.subr.mxu0 0.0
  %106 = vmatpush1.msra.mxu0 0.0
  %107 = vmatprep.subr.mxu0 0.0
  %108 = vmatpush1.msra.mxu0 0.0
  %109 = vmatprep.subr.mxu0 0.0
  %110 = vmatpush1.msra.mxu0 0.0
  %111 = vmatprep.subr.mxu0 0.0
  %112 = vmatpush1.msra.mxu0 0.0
  %113 = vmatprep.subr.mxu0 0.0
  %114 = vmatpush1.msra.mxu0 0.0
  %115 = vmatprep.subr.mxu0 0.0
  %116 = vmatpush1.msra.mxu0 0.0
  %117 = vmatprep.mubr.f32.mxu0 0.0
  %118 = vmatmul.mubr.f32.gmra.mrb[0].mxu0 %v42
  %v119 = vpop.f32.mrb[0].mxu0
  %v120 = vadd.f32 %v38, %v119
  %v121 = vpop.f32.mrb[0].mxu0
  %122 = vmatprep.mubr.f32.mxu0 0.0
  %123 = vmatmul.mubr.f32.gmra.mrb[0].mxu0 %v45
  %v124 = vpop.f32.mrb[0].mxu0
  %v125 = vadd.f32 %v38, %v124
  %v126 = vpop.f32.mrb[0].mxu0
  %127 = vmatprep.mubr.f32.mxu0 0.0
  %128 = vmatmul.mubr.f32.gmra.mrb[0].mxu0 %v48
  %v129 = vpop.f32.mrb[0].mxu0
  %v130 = vadd.f32 %v38, %v129
  %v131 = vpop.f32.mrb[0].mxu0
  %132 = vmatprep.mubr.f32.mxu0 0.0
  %133 = vmatmul.mubr.f32.gmra.mrb[0].mxu0 %v51
  %v134 = vpop.f32.mrb[0].mxu0
  %v135 = vadd.f32 %v38, %v134
  %v136 = vpop.f32.mrb[0].mxu0
  %137 = vdwg.mxu0
  %v138 = vmax.f32 %v120, 0.0
  %v139 = vmax.f32 %v125, 0.0
  %v140 = vmax.f32 %v130, 0.0
  %v141 = vmax.f32 %v135, 0.0
  %vm142 = vcmask 64512
  %143 = vst.msk [vmem:[%s3] sm:$0xff] %vm142, %v138
  %144 = vst.msk [vmem:[%s3 + $0x8] sm:$0xff] %vm142, %v139
  %145 = vst.msk [vmem:[%s3 + $0x10] sm:$0xff] %vm142, %v140
  %146 = vst.msk [vmem:[%s3 + $0x18] sm:$0xff] %vm142, %v141
  // Predicated region
  $region14: #{unet1d_forward.24} parent=0 // pred_check
    _
  $region15: #{unet1d_forward.24} parent=0 // pred_check_branch
    %148 = sbr.rel (0) target = $region17
  $region16: #{unet1d_forward.24} parent=0 // pred_region
    _
  $region17: #{unet1d_forward.24} parent=0 // pred_fallthru
    _
  // Predicated region
  $region18: #{unet1d_forward.24} parent=0 // pred_check
    _
  $region19: #{unet1d_forward.24} parent=0 // pred_check_branch
    %150 = sbr.rel (0) target = $region21
  $region20: #{unet1d_forward.24} parent=0 // pred_region
    _
  $region21: #{unet1d_forward.24} parent=0 // pred_fallthru
    _

// kernel: unet1d_forward.25
$region0: #{unet1d_forward.25}
  #allocation0 [shape = 'u32[]', space=smem, size = 0x4, offset = 0x4, fixed_abs, tag = 'smem constant byte address 0x4 - core index']
  #allocation1 [shape = 'u32[144,128]{1,0:T(1,128)}', space=vmem, size = 0x12000, scoped, tag = 'internal scratch']
  #allocation2 [shape = 'f32[1,1]{1,0:T(1,128)S(1)}', space=vmem, size = 0x200, scoped, tag = 'scoped memory for unet1d_forward.25']
  %s0 = inlined_call_operand.vmem [shape: f32[32,40], index: 0, kind: input, shape index: {}]
  %s1 = inlined_call_operand.vmem [shape: f32[40,1], index: 1, kind: input, shape index: {}]
  %s2 = inlined_call_operand.<no memory space> [shape: f32[1,1], index: 2, kind: input, shape index: {}]
  %s3 = inlined_call_operand.vmem [shape: f32[32,1], index: 3, kind: output, shape index: {}]
  %s4 = sld [smem:[#allocation0]]
  $region22: #{unet1d_forward.25} parent=0
    _
  %s6 = ssub.s32 1, %s4
  %s7 = scalar_select 0, %s6, %s4
  %v8 = vstv %s2
  %9 = vst [vmem:[#allocation2] sm:$0x1] %v8
  // Predicated region
  $region2: #{unet1d_forward.25} parent=0 // pred_check
    _
  $region3: #{unet1d_forward.25} parent=0 // pred_check_branch
    %11 = sbr.rel (0) target = $region5
  $region4: #{unet1d_forward.25} parent=0 // pred_region
    _
  $region5: #{unet1d_forward.25} parent=0 // pred_fallthru
    _
  // Predicated region
  $region6: #{unet1d_forward.25} parent=0 // pred_check
    _
  $region7: #{unet1d_forward.25} parent=0 // pred_check_branch
    %13 = sbr.rel (0) target = $region9
  $region8: #{unet1d_forward.25} parent=0 // pred_region
    _
  $region9: #{unet1d_forward.25} parent=0 // pred_fallthru
    _
  // Predicated region
  $region10: #{unet1d_forward.25} parent=0 // pred_check
    _
  $region11: #{unet1d_forward.25} parent=0 // pred_check_branch
    %15 = sbr.rel (0) target = $region13
  $region12: #{unet1d_forward.25} parent=0 // pred_region
    _
  $region13: #{unet1d_forward.25} parent=0 // pred_fallthru
    _
  %v16 = vld [vmem:[%s0] sm:$0xff]
  %v17 = vld [vmem:[%s0 + $0x8] sm:$0xff]
  %v18 = vld [vmem:[%s0 + $0x10] sm:$0xff]
  %v19 = vld [vmem:[%s0 + $0x18] sm:$0xff]
  %v20 = vld [vmem:[%s1] sm:$0xff]
  %v21 = vld [vmem:[%s1 + $0x8] sm:$0xff]
  %v22 = vld [vmem:[%s1 + $0x10] sm:$0xff]
  %v23 = vld [vmem:[%s1 + $0x18] sm:$0xff]
  %v24 = vld [vmem:[%s1 + $0x20] sm:$0xff]
  %v25 = vld [vmem:[#allocation2] sm:$0x1]
  %v27 = vlaneseq
  %v28 = vshrl.u32 %v27, 7
  %v29 = vsub.s32 0, %v28
  %v30 = vrot.slane %v25, %v29
  %vm32 = vcmask 326656
  %v34 = vsel %vm32, %v16, 0
  %v37 = vsel %vm32, %v17, 0
  %v40 = vsel %vm32, %v18, 0
  %v43 = vsel %vm32, %v19, 0
  %45 = vmatprep.subr.mxu0 0.0
  %46 = vmatpush1.msra.mxu0 %v20
  %47 = vmatprep.subr.mxu0 0.0
  %48 = vmatpush1.msra.mxu0 %v21
  %49 = vmatprep.subr.mxu0 0.0
  %50 = vmatpush1.msra.mxu0 %v22
  %51 = vmatprep.subr.mxu0 0.0
  %52 = vmatpush1.msra.mxu0 %v23
  %53 = vmatprep.subr.mxu0 0.0
  %54 = vmatpush1.msra.mxu0 %v24
  %55 = vmatprep.subr.mxu0 0.0
  %56 = vmatpush1.msra.mxu0 0.0
  %57 = vmatprep.subr.mxu0 0.0
  %58 = vmatpush1.msra.mxu0 0.0
  %59 = vmatprep.subr.mxu0 0.0
  %60 = vmatpush1.msra.mxu0 0.0
  %61 = vmatprep.subr.mxu0 0.0
  %62 = vmatpush1.msra.mxu0 0.0
  %63 = vmatprep.subr.mxu0 0.0
  %64 = vmatpush1.msra.mxu0 0.0
  %65 = vmatprep.subr.mxu0 0.0
  %66 = vmatpush1.msra.mxu0 0.0
  %67 = vmatprep.subr.mxu0 0.0
  %68 = vmatpush1.msra.mxu0 0.0
  %69 = vmatprep.subr.mxu0 0.0
  %70 = vmatpush1.msra.mxu0 0.0
  %71 = vmatprep.subr.mxu0 0.0
  %72 = vmatpush1.msra.mxu0 0.0
  %73 = vmatprep.subr.mxu0 0.0
  %74 = vmatpush1.msra.mxu0 0.0
  %75 = vmatprep.subr.mxu0 0.0
  %76 = vmatpush1.msra.mxu0 0.0
  %77 = vmatprep.subr.mxu0 0.0
  %78 = vmatpush1.msra.mxu0 0.0
  %79 = vmatprep.subr.mxu0 0.0
  %80 = vmatpush1.msra.mxu0 0.0
  %81 = vmatprep.subr.mxu0 0.0
  %82 = vmatpush1.msra.mxu0 0.0
  %83 = vmatprep.subr.mxu0 0.0
  %84 = vmatpush1.msra.mxu0 0.0
  %85 = vmatprep.subr.mxu0 0.0
  %86 = vmatpush1.msra.mxu0 0.0
  %87 = vmatprep.subr.mxu0 0.0
  %88 = vmatpush1.msra.mxu0 0.0
  %89 = vmatprep.subr.mxu0 0.0
  %90 = vmatpush1.msra.mxu0 0.0
  %91 = vmatprep.subr.mxu0 0.0
  %92 = vmatpush1.msra.mxu0 0.0
  %93 = vmatprep.subr.mxu0 0.0
  %94 = vmatpush1.msra.mxu0 0.0
  %95 = vmatprep.subr.mxu0 0.0
  %96 = vmatpush1.msra.mxu0 0.0
  %97 = vmatprep.subr.mxu0 0.0
  %98 = vmatpush1.msra.mxu0 0.0
  %99 = vmatprep.subr.mxu0 0.0
  %100 = vmatpush1.msra.mxu0 0.0
  %101 = vmatprep.subr.mxu0 0.0
  %102 = vmatpush1.msra.mxu0 0.0
  %103 = vmatprep.subr.mxu0 0.0
  %104 = vmatpush1.msra.mxu0 0.0
  %105 = vmatprep.subr.mxu0 0.0
  %106 = vmatpush1.msra.mxu0 0.0
  %107 = vmatprep.subr.mxu0 0.0
  %108 = vmatpush1.msra.mxu0 0.0
  %109 = vmatprep.mubr.f32.mxu0 0.0
  %110 = vmatmul.mubr.f32.gmra.mrb[0].mxu0 %v34
  %v111 = vpop.f32.mrb[0].mxu0
  %v112 = vadd.f32 %v30, %v111
  %v113 = vpop.f32.mrb[0].mxu0
  %114 = vmatprep.mubr.f32.mxu0 0.0
  %115 = vmatmul.mubr.f32.gmra.mrb[0].mxu0 %v37
  %v116 = vpop.f32.mrb[0].mxu0
  %v117 = vadd.f32 %v30, %v116
  %v118 = vpop.f32.mrb[0].mxu0
  %119 = vmatprep.mubr.f32.mxu0 0.0
  %120 = vmatmul.mubr.f32.gmra.mrb[0].mxu0 %v40
  %v121 = vpop.f32.mrb[0].mxu0
  %v122 = vadd.f32 %v30, %v121
  %v123 = vpop.f32.mrb[0].mxu0
  %124 = vmatprep.mubr.f32.mxu0 0.0
  %125 = vmatmul.mubr.f32.gmra.mrb[0].mxu0 %v43
  %v126 = vpop.f32.mrb[0].mxu0
  %v127 = vadd.f32 %v30, %v126
  %v128 = vpop.f32.mrb[0].mxu0
  %129 = vdwg.mxu0
  %v130 = vtanh.pop %v112
  %v131 = vtanh.pop %v117
  %v132 = vtanh.pop %v122
  %v133 = vtanh.pop %v127
  %vm134 = vcmask 7168
  %135 = vst.msk [vmem:[%s3] sm:$0xff] %vm134, %v130
  %136 = vst.msk [vmem:[%s3 + $0x8] sm:$0xff] %vm134, %v131
  %137 = vst.msk [vmem:[%s3 + $0x10] sm:$0xff] %vm134, %v132
  %138 = vst.msk [vmem:[%s3 + $0x18] sm:$0xff] %vm134, %v133
  // Predicated region
  $region14: #{unet1d_forward.25} parent=0 // pred_check
    _
  $region15: #{unet1d_forward.25} parent=0 // pred_check_branch
    %140 = sbr.rel (0) target = $region17
  $region16: #{unet1d_forward.25} parent=0 // pred_region
    _
  $region17: #{unet1d_forward.25} parent=0 // pred_fallthru
    _
  // Predicated region
  $region18: #{unet1d_forward.25} parent=0 // pred_check
    _
  $region19: #{unet1d_forward.25} parent=0 // pred_check_branch
    %142 = sbr.rel (0) target = $region21
  $region20: #{unet1d_forward.25} parent=0 // pred_region
    _
  $region21: #{unet1d_forward.25} parent=0 // pred_fallthru
    _

</llo_original>
